<compile_context>
chip_gen: v5e
topology: v5e:2x2
jax: 0.10.0
libtpu: 0.0.40
codegen_flags: <defaults>
</compile_context>

<pallas_src>
import jax
import jax.numpy as jnp
from jax.experimental import pallas as pl
from jax.experimental.pallas import tpu as pltpu

FEAT = 1024   # base_model output feature size (LSTM input_size)
HID = 128     # LSTM hidden_size
GATES = 4 * HID


# ------------------------- hardware / tiling helpers -------------------------
def _round_up(x, m):
    return -(-x // m) * m


def _tpu_vmem_bytes(default=64 << 20):
    """Physical VMEM per core; conservative (v7x-sized) default if the query fails."""
    try:
        return int(pltpu.get_tpu_info().vmem_capacity_bytes)
    except Exception:
        return default


def _tensorcores_per_chip():
    """1 (v5e/v6e) or 2 (v7x); clamp to [1,2] and default to 1 if undetectable."""
    try:
        info = pltpu.get_tpu_info()
        for name in ("num_cores", "tensorcores_per_chip", "num_tensor_cores", "core_count"):
            v = getattr(info, name, None)
            if v:
                return min(2, max(1, int(v)))
    except Exception:
        pass
    try:
        return min(2, max(1, int(getattr(jax.devices()[0], "num_cores", 1))))
    except Exception:
        return 1


def _pick_row_tile(n_rows, k_elems, itemsize, budget_bytes, cap=1024):
    """Frame rows per projection grid step: double-buffered x tile within the per-generation
    budget, 16-sublane aligned (bf16 packing), capped so the grid keeps >= 4 steps
    (pipeline depth + v7x megacore)."""
    if n_rows <= 16:
        return n_rows                                   # full dim -> always a legal block
    bytes_per_row = max(k_elems * itemsize, 1)
    t = max(16, min(budget_bytes // bytes_per_row, cap))
    t -= t % 16
    if n_rows >= 4 * 16:
        t = min(t, max(16, _round_up(pl.cdiv(n_rows, 4), 16)))
    if n_rows <= t:
        return n_rows
    for cand in range(t, 15, -16):                      # prefer an exact divisor
        if n_rows % cand == 0:
            return cand
    return t                                            # ragged tail masked by Pallas


def _pick_time_tile(s, cap=16):
    """Timesteps per LSTM grid step (amortizes ~0.35us/step overhead; sweep 8/16/32)."""
    if s <= cap:
        return s
    for cand in range(cap - cap % 16, 15, -16):         # prefer bf16-friendly multiples of 16
        if s % cand == 0:
            return cand
    for cand in range(cap - cap % 8, 7, -8):
        if s % cand == 0:
            return cand
    return s


def _batch_tiling(b, max_bt=256):
    """Batch tile for the LSTM head: split across 2 tiles only when a 2nd TensorCore exists."""
    cores = _tensorcores_per_chip()
    n_tiles = 2 if (cores >= 2 and b > 8) else 1
    bt = min(_round_up(pl.cdiv(b, n_tiles), 8), max_bt)
    n_tiles = pl.cdiv(_round_up(b, 8), bt)
    return n_tiles, bt


# ------------------------- fused GAP + projection kernel -------------------------
def _proj_kernel(x_ref, w_ref, b_ref, o_ref):
    # x_ref: (tn, C*HW) f32/bf16   w_ref: (C*HW, 4H) bf16   b_ref: (1, 4H) f32   o_ref: (tn, 4H) bf16
    x = x_ref[...].astype(jnp.bfloat16)      # in-register cast; no-op if the caller fed bf16
    acc = jnp.dot(x, w_ref[...], preferred_element_type=jnp.float32)
    o_ref[...] = (acc + b_ref[...]).astype(o_ref.dtype)


def input_projection(x2, w_exp, b_comb, *, vmem_limit):
    N, CHW = x2.shape
    F4 = w_exp.shape[1]
    # NOTE: the (CHW, 4H) weight block is VMEM-resident; for very large C*H*W add K-tiling.
    budget = (12 << 20) if vmem_limit >= (72 << 20) else (8 << 20)
    tn = _pick_row_tile(N, CHW, x2.dtype.itemsize, budget)
    flops = 2 * N * CHW * F4
    bytes_accessed = N * CHW * x2.dtype.itemsize + CHW * F4 * 2 + N * F4 * 2 + F4 * 4
    return pl.pallas_call(
        _proj_kernel,
        out_shape=jax.ShapeDtypeStruct((N, F4), jnp.bfloat16),
        grid=(pl.cdiv(N, tn),),
        in_specs=[
            pl.BlockSpec((tn, CHW), lambda i: (i, 0)),
            pl.BlockSpec((CHW, F4), lambda i: (0, 0)),
            pl.BlockSpec((1, F4), lambda i: (0, 0)),
        ],
        out_specs=pl.BlockSpec((tn, F4), lambda i: (i, 0)),
        compiler_params=pltpu.CompilerParams(
            dimension_semantics=("parallel",),      # shard frame rows across v7x's 2 TCs
            vmem_limit_bytes=int(vmem_limit),
        ),
        cost_estimate=pl.CostEstimate(flops=int(flops), transcendentals=0,
                                      bytes_accessed=int(bytes_accessed)),
    )(x2, w_exp, b_comb)


# ------------------------- LSTM recurrence + classifier kernel -------------------------
def _lstm_head_kernel(proj_ref, whh_ref, wfc_ref, bfc_ref, o_ref, h_scr, c_scr, p_scr):
    # proj_ref: (bt, ts, 4H) bf16 (all biases folded in)   whh_ref: (H, 4H) bf16
    # wfc_ref:  (1, H) f32   bfc_ref: (1, 1) f32   o_ref: (bt, 1) f32
    j = pl.program_id(1)

    @pl.when(j == 0)
    def _():                                     # re-init per batch tile (no state leak)
        h_scr[...] = jnp.zeros_like(h_scr)
        c_scr[...] = jnp.zeros_like(c_scr)

    # Bulk-relayout the tile to time-major ONCE per grid step; the recurrence below then
    # reads free leading-dim slices instead of a sublane-gather every timestep.
    ts = p_scr.shape[0]
    for t in range(ts):                          # static, independent copies -> overlappable
        p_scr[t] = proj_ref[:, t, :].astype(jnp.float32)

    whh = whh_ref[...]                           # bf16, VMEM-resident across the loop

    def step(t, carry):
        h, c = carry
        # TODO(synk): hold w_hh in MXU weight regs (matmul_push_rhs) instead of re-streaming.
        gates = p_scr[t] + jnp.dot(h.astype(jnp.bfloat16), whh,
                                   preferred_element_type=jnp.float32)
        # PyTorch gate order: i, f, g, o.  Elementwise math kept in f32 (v5e-safe).
        i_g = jax.nn.sigmoid(gates[:, 0 * HID:1 * HID])
        f_g = jax.nn.sigmoid(gates[:, 1 * HID:2 * HID])
        g_g = jnp.tanh(gates[:, 2 * HID:3 * HID])
        o_g = jax.nn.sigmoid(gates[:, 3 * HID:4 * HID])
        c = f_g * c + i_g * g_g
        h = o_g * jnp.tanh(c)
        return h, c

    h, c = jax.lax.fori_loop(0, ts, step, (h_scr[...], c_scr[...]), unroll=True)
    h_scr[...] = h
    c_scr[...] = c

    @pl.when(j == pl.num_programs(1) - 1)
    def _():
        # final_classifier(h_n[-1]): VPU multiply + lane reduce (avoids a K=128,N=1 MXU pass)
        o_ref[...] = jnp.sum(h * wfc_ref[...], axis=-1, keepdims=True) + bfc_ref[...]


def lstm_head(proj, w_hh, w_fc_row, b_fc, *, bt, vmem_limit):
    Bp, S, F4 = proj.shape
    ts = _pick_time_tile(S)
    assert Bp % bt == 0 and S % ts == 0
    flops = 2 * Bp * S * HID * F4 + 10 * Bp * S * F4
    transc = 5 * Bp * S * HID
    bytes_accessed = Bp * S * F4 * proj.dtype.itemsize + HID * F4 * 2 + Bp * 4
    return pl.pallas_call(
        _lstm_head_kernel,
        out_shape=jax.ShapeDtypeStruct((Bp, 1), jnp.float32),
        grid=(Bp // bt, S // ts),
        in_specs=[
            pl.BlockSpec((bt, ts, F4), lambda i, j: (i, j, 0)),
            pl.BlockSpec((HID, F4), lambda i, j: (0, 0)),
            pl.BlockSpec((1, HID), lambda i, j: (0, 0)),
            pl.BlockSpec((1, 1), lambda i, j: (0, 0)),
        ],
        out_specs=pl.BlockSpec((bt, 1), lambda i, j: (i, 0)),
        scratch_shapes=[
            pltpu.VMEM((bt, HID), jnp.float32),      # h
            pltpu.VMEM((bt, HID), jnp.float32),      # c
            pltpu.VMEM((ts, bt, F4), jnp.float32),   # time-major gate tile
        ],
        compiler_params=pltpu.CompilerParams(
            dimension_semantics=("parallel", "arbitrary"),   # batch tiles || , time serial
            vmem_limit_bytes=int(vmem_limit),
        ),
        cost_estimate=pl.CostEstimate(flops=int(flops), transcendentals=int(transc),
                                      bytes_accessed=int(bytes_accessed)),
    )(proj, w_hh, w_fc_row, b_fc)


# --------------------------------- weight prep (one-time) ---------------------------------
def prepare_params(params, channels, height, width):
    """Hoisted out of the per-call path: fold base_model Linear + LSTM input projection and
    fold the global-average-pool into the weight (w/HW replicated along HW), so the per-frame
    kernel is a single dense K=C*H*W matmul.  Valid only because the synthesized backbone is
    linear after GAP (see TODO at top)."""
    hw = height * width
    hp = jax.lax.Precision.HIGHEST
    w_comb = jnp.dot(params["w_feat"], params["w_ih"], precision=hp)               # (C, 4H)
    b_comb = jnp.dot(params["b_feat"], params["w_ih"], precision=hp) + params["b_gates"]
    w_exp = jnp.repeat(w_comb / hw, hw, axis=0).astype(jnp.bfloat16)               # (C*HW, 4H)
    return {
        "w_exp": w_exp,
        "b_comb": b_comb.astype(jnp.float32),                 # (1, 4H)
        "w_hh": params["w_hh"].astype(jnp.bfloat16),          # (H, 4H)
        "w_fc_row": params["w_fc"].T.astype(jnp.float32),     # (1, H)
        "b_fc": params["b_fc"].astype(jnp.float32),           # (1, 1)
    }


# --------------------------------- forward ---------------------------------
@jax.jit
def custom_fine_tune_forward(x, prep):
    """x: (B, S, C, H, W) float32 or bfloat16  ->  (B,) float32"""
    B, S, C, H, W = x.shape
    N, CHW = B * S, C * H * W
    assert prep["w_exp"].shape[0] == CHW, "prepare_params() built for a different input size"

    vmem_limit = (_tpu_vmem_bytes() * 3) // 4     # ~96 MiB on v5e/v6e, ~48 MiB on v7x

    # 1) GAP + base_model Linear + LSTM input projection, one dense MXU pass per frame row.
    x2 = x.reshape(N, CHW)                        # free reshape; no extra cast pass in HBM
    proj = input_projection(x2, prep["w_exp"], prep["b_comb"], vmem_limit=vmem_limit)
    proj = proj.reshape(B, S, GATES)              # free reshape (bf16 intermediate)

    # 2) Tiny serial recurrence; pad batch to full sublanes / batch tiles (pad rows are
    #    independent and sliced off at the end).
    n_bt, bt = _batch_tiling(B)
    Bp = n_bt * bt
    if Bp != B:
        proj = jnp.pad(proj, ((0, Bp - B), (0, 0), (0, 0)))
    out = lstm_head(proj, prep["w_hh"], prep["w_fc_row"], prep["b_fc"],
                    bt=bt, vmem_limit=vmem_limit)                 # (Bp, 1)
    return out[:B, 0]                             # squeeze(-1)


# --------------------------------- reference ---------------------------------
def reference_forward(x, params):
    B, S, C, H, W = x.shape
    hp = jax.lax.Precision.HIGHEST
    gap = jnp.mean(x.reshape(B * S, C, H * W), axis=-1)
    feats = jnp.dot(gap, params["w_feat"], precision=hp) + params["b_feat"][0]
    feats = feats.reshape(B, S, FEAT)
    h = jnp.zeros((B, HID), jnp.float32)
    c = jnp.zeros((B, HID), jnp.float32)
    for t in range(S):
        g = (jnp.dot(feats[:, t], params["w_ih"], precision=hp)
             + jnp.dot(h, params["w_hh"], precision=hp)
             + params["b_gates"][0])
        i_g = jax.nn.sigmoid(g[:, 0 * HID:1 * HID])
        f_g = jax.nn.sigmoid(g[:, 1 * HID:2 * HID])
        g_g = jnp.tanh(g[:, 2 * HID:3 * HID])
        o_g = jax.nn.sigmoid(g[:, 3 * HID:4 * HID])
        c = f_g * c + i_g * g_g
        h = o_g * jnp.tanh(c)
    out = jnp.dot(h, params["w_fc"], precision=hp) + params["b_fc"][0]
    return out[:, 0]


def init_params(key, channels):
    ks = jax.random.split(key, 6)
    scale = 0.05
    return {
        "w_feat": scale * jax.random.normal(ks[0], (channels, FEAT), jnp.float32),
        "b_feat": scale * jax.random.normal(ks[1], (1, FEAT), jnp.float32),
        "w_ih": scale * jax.random.normal(ks[2], (FEAT, GATES), jnp.float32),
        "w_hh": scale * jax.random.normal(ks[3], (HID, GATES), jnp.float32),
        # b_gates represents b_ih + b_hh already summed (PyTorch LSTM carries both vectors).
        "b_gates": scale * jax.random.normal(ks[4], (1, GATES), jnp.float32),
        "w_fc": scale * jax.random.normal(ks[5], (HID, 1), jnp.float32),
        "b_fc": jnp.zeros((1, 1), jnp.float32),
    }


if __name__ == "__main__":
    key = jax.random.PRNGKey(0)
    k_x, k_p, k_x2 = jax.random.split(key, 3)

    B, S, C, H, W = 2, 8, 4, 16, 16
    x = jax.random.normal(k_x, (B, S, C, H, W), jnp.float32)
    params = init_params(k_p, C)
    prep = prepare_params(params, C, H, W)

    # bf16-activation path (intended deployment: halves the projection kernel's HBM reads)
    out = jax.block_until_ready(custom_fine_tune_forward(x.astype(jnp.bfloat16), prep))
    assert out.shape == (B,), out.shape
    ref = reference_forward(x, params)
    # tolerance covers bf16 inputs / bf16 proj intermediate / bf16 recurrent dot (f32 accum)
    assert jnp.allclose(out, ref, atol=5e-3, rtol=5e-3), (out, ref)

    # f32-activation path + batch padding (B=3 -> Bp=8) + non-sublane-multiple row count
    B2, S2 = 3, 5
    x2 = jax.random.normal(k_x2, (B2, S2, C, H, W), jnp.float32)
    out2 = jax.block_until_ready(custom_fine_tune_forward(x2, prep))
    assert out2.shape == (B2,), out2.shape
    ref2 = reference_forward(x2, params)
    assert jnp.allclose(out2, ref2, atol=5e-3, rtol=5e-3), (out2, ref2)

    print("KERNEL_OK")
</pallas_src>

<mosaic_0001>
module attributes {stable_mosaic.version = 11 : i64} {
  func.func @_proj_kernel(%arg0: i32, %arg1: memref<16x1024xbf16, #tpu.memory_space<vmem>>, %arg2: memref<1024x512xbf16, #tpu.memory_space<vmem>>, %arg3: memref<1x512xf32, #tpu.memory_space<vmem>>, %arg4: memref<16x512xbf16, #tpu.memory_space<vmem>>) attributes {dimension_semantics = [#tpu.dimension_semantics<parallel>], iteration_bounds = array<i64: 1>, scalar_prefetch = 0 : i64, scratch_operands = 0 : i64, tpu.core_type = #tpu.core_type<tc>, window_params = [{transform_indices = @transform_0, window_bounds = array<i64: 16, 1024>}, {pipeline_mode = #tpu.pipeline_mode<synchronous>, transform_indices = @transform_1, window_bounds = array<i64: 1024, 512>}, {pipeline_mode = #tpu.pipeline_mode<synchronous>, transform_indices = @transform_2, window_bounds = array<i64: 1, 512>}, {transform_indices = @transform_3, window_bounds = array<i64: 16, 512>}]} {
    %c0 = arith.constant 0 : index
    %c0_0 = arith.constant 0 : index
    %0 = vector.load %arg1[%c0, %c0_0] : memref<16x1024xbf16, #tpu.memory_space<vmem>>, vector<16x1024xbf16>
    %c0_1 = arith.constant 0 : index
    %c0_2 = arith.constant 0 : index
    %1 = vector.load %arg2[%c0_1, %c0_2] : memref<1024x512xbf16, #tpu.memory_space<vmem>>, vector<1024x512xbf16>
    %cst = arith.constant dense<0.000000e+00> : vector<16x512xf32>
    %2 = tpu.matmul %0, %1, %cst {dimension_numbers = #tpu.dot_dimension_numbers<[1], [0], [0], [1], [0, 0, 1, 1], [], []>} : vector<16x1024xbf16>, vector<1024x512xbf16>, vector<16x512xf32> -> vector<16x512xf32>
    %c0_3 = arith.constant 0 : index
    %c0_4 = arith.constant 0 : index
    %3 = vector.load %arg3[%c0_3, %c0_4] : memref<1x512xf32, #tpu.memory_space<vmem>>, vector<1x512xf32>
    %4 = vector.broadcast %3 : vector<1x512xf32> to vector<16x512xf32>
    %5 = arith.addf %2, %4 : vector<16x512xf32>
    %6 = arith.truncf %5 : vector<16x512xf32> to vector<16x512xbf16>
    %c0_5 = arith.constant 0 : index
    %c0_6 = arith.constant 0 : index
    %7 = vector.load %arg4[%c0_5, %c0_6] : memref<16x512xbf16, #tpu.memory_space<vmem>>, vector<16x512xbf16>
    tpu.vector_store %arg4[%c0_5, %c0_6], %6 {strides = array<i32>} : memref<16x512xbf16, #tpu.memory_space<vmem>>, vector<16x512xbf16>,
    return
  }
  func.func @transform_0(%arg0: i32) -> (i32, i32) {
    %c0_i32 = arith.constant 0 : i32
    %c0_i32_0 = arith.constant 0 : i32
    return %arg0, %c0_i32 : i32, i32
  }
  func.func @transform_1(%arg0: i32) -> (i32, i32) {
    %c0_i32 = arith.constant 0 : i32
    %c0_i32_0 = arith.constant 0 : i32
    %c0_i32_1 = arith.constant 0 : i32
    return %c0_i32, %c0_i32_0 : i32, i32
  }
  func.func @transform_2(%arg0: i32) -> (i32, i32) {
    %c0_i32 = arith.constant 0 : i32
    %c0_i32_0 = arith.constant 0 : i32
    %c0_i32_1 = arith.constant 0 : i32
    return %c0_i32, %c0_i32_0 : i32, i32
  }
  func.func @transform_3(%arg0: i32) -> (i32, i32) {
    %c0_i32 = arith.constant 0 : i32
    %c0_i32_0 = arith.constant 0 : i32
    return %arg0, %c0_i32 : i32, i32
  }
}

module attributes {stable_mosaic.version = 11 : i64} {
  func.func @_lstm_head_kernel(%arg0: i32, %arg1: i32, %arg2: memref<8x8x512xbf16, #tpu.memory_space<vmem>>, %arg3: memref<128x512xbf16, #tpu.memory_space<vmem>>, %arg4: memref<1x128xf32, #tpu.memory_space<vmem>>, %arg5: memref<1x1xf32, #tpu.memory_space<vmem>>, %arg6: memref<8x1xf32, #tpu.memory_space<vmem>>, %arg7: memref<8x128xf32, #tpu.memory_space<vmem>>, %arg8: memref<8x128xf32, #tpu.memory_space<vmem>>, %arg9: memref<8x8x512xf32, #tpu.memory_space<vmem>>) attributes {dimension_semantics = [#tpu.dimension_semantics<parallel>, #tpu.dimension_semantics<arbitrary>], iteration_bounds = array<i64: 1, 1>, scalar_prefetch = 0 : i64, scratch_operands = 3 : i64, tpu.core_type = #tpu.core_type<tc>, window_params = [{transform_indices = @transform_0, window_bounds = array<i64: 8, 8, 512>}, {pipeline_mode = #tpu.pipeline_mode<synchronous>, transform_indices = @transform_1, window_bounds = array<i64: 128, 512>}, {pipeline_mode = #tpu.pipeline_mode<synchronous>, transform_indices = @transform_2, window_bounds = array<i64: 1, 128>}, {pipeline_mode = #tpu.pipeline_mode<synchronous>, transform_indices = @transform_3, window_bounds = array<i64: 1, 1>}, {transform_indices = @transform_4, window_bounds = array<i64: 8, 1>}]} {
    %c0_i32 = arith.constant 0 : i32
    %0 = arith.cmpi eq, %arg1, %c0_i32 : i32
    %1 = arith.extui %0 : i1 to i32
    %c0_i32_0 = arith.constant 0 : i32
    %2 = arith.cmpi ne, %1, %c0_i32_0 : i32
    scf.if %2 {
      %cst_101 = arith.constant 0.000000e+00 : f32
      %307 = vector.broadcast %cst_101 : f32 to vector<8x128xf32>
      %c0_102 = arith.constant 0 : index
      %c0_103 = arith.constant 0 : index
      %308 = vector.load %arg7[%c0_102, %c0_103] : memref<8x128xf32, #tpu.memory_space<vmem>>, vector<8x128xf32>
      tpu.vector_store %arg7[%c0_102, %c0_103], %307 {strides = array<i32>} : memref<8x128xf32, #tpu.memory_space<vmem>>, vector<8x128xf32>,
      %cst_104 = arith.constant 0.000000e+00 : f32
      %309 = vector.broadcast %cst_104 : f32 to vector<8x128xf32>
      %c0_105 = arith.constant 0 : index
      %c0_106 = arith.constant 0 : index
      %310 = vector.load %arg8[%c0_105, %c0_106] : memref<8x128xf32, #tpu.memory_space<vmem>>, vector<8x128xf32>
      tpu.vector_store %arg8[%c0_105, %c0_106], %309 {strides = array<i32>} : memref<8x128xf32, #tpu.memory_space<vmem>>, vector<8x128xf32>,
    } else {
    }
    %c0 = arith.constant 0 : index
    %c0_1 = arith.constant 0 : index
    %c0_2 = arith.constant 0 : index
    %3 = vector.load %arg2[%c0, %c0_1, %c0_2] : memref<8x8x512xbf16, #tpu.memory_space<vmem>>, vector<8x1x512xbf16>
    %4 = vector.shape_cast %3 : vector<8x1x512xbf16> to vector<8x512xbf16>
    %5 = arith.extf %4 : vector<8x512xbf16> to vector<8x512xf32>
    %c0_3 = arith.constant 0 : index
    %c0_4 = arith.constant 0 : index
    %c0_5 = arith.constant 0 : index
    %6 = vector.load %arg9[%c0_3, %c0_4, %c0_5] : memref<8x8x512xf32, #tpu.memory_space<vmem>>, vector<1x8x512xf32>
    %7 = vector.shape_cast %6 : vector<1x8x512xf32> to vector<8x512xf32>
    %8 = vector.shape_cast %5 : vector<8x512xf32> to vector<1x8x512xf32>
    tpu.vector_store %arg9[%c0_3, %c0_4, %c0_5], %8 {strides = array<i32>} : memref<8x8x512xf32, #tpu.memory_space<vmem>>, vector<1x8x512xf32>,
    %c0_6 = arith.constant 0 : index
    %c1 = arith.constant 1 : index
    %c0_7 = arith.constant 0 : index
    %9 = vector.load %arg2[%c0_6, %c1, %c0_7] : memref<8x8x512xbf16, #tpu.memory_space<vmem>>, vector<8x1x512xbf16>
    %10 = vector.shape_cast %9 : vector<8x1x512xbf16> to vector<8x512xbf16>
    %11 = arith.extf %10 : vector<8x512xbf16> to vector<8x512xf32>
    %c1_8 = arith.constant 1 : index
    %c0_9 = arith.constant 0 : index
    %c0_10 = arith.constant 0 : index
    %12 = vector.load %arg9[%c1_8, %c0_9, %c0_10] : memref<8x8x512xf32, #tpu.memory_space<vmem>>, vector<1x8x512xf32>
    %13 = vector.shape_cast %12 : vector<1x8x512xf32> to vector<8x512xf32>
    %14 = vector.shape_cast %11 : vector<8x512xf32> to vector<1x8x512xf32>
    tpu.vector_store %arg9[%c1_8, %c0_9, %c0_10], %14 {strides = array<i32>} : memref<8x8x512xf32, #tpu.memory_space<vmem>>, vector<1x8x512xf32>,
    %c0_11 = arith.constant 0 : index
    %c2 = arith.constant 2 : index
    %c0_12 = arith.constant 0 : index
    %15 = vector.load %arg2[%c0_11, %c2, %c0_12] : memref<8x8x512xbf16, #tpu.memory_space<vmem>>, vector<8x1x512xbf16>
    %16 = vector.shape_cast %15 : vector<8x1x512xbf16> to vector<8x512xbf16>
    %17 = arith.extf %16 : vector<8x512xbf16> to vector<8x512xf32>
    %c2_13 = arith.constant 2 : index
    %c0_14 = arith.constant 0 : index
    %c0_15 = arith.constant 0 : index
    %18 = vector.load %arg9[%c2_13, %c0_14, %c0_15] : memref<8x8x512xf32, #tpu.memory_space<vmem>>, vector<1x8x512xf32>
    %19 = vector.shape_cast %18 : vector<1x8x512xf32> to vector<8x512xf32>
    %20 = vector.shape_cast %17 : vector<8x512xf32> to vector<1x8x512xf32>
    tpu.vector_store %arg9[%c2_13, %c0_14, %c0_15], %20 {strides = array<i32>} : memref<8x8x512xf32, #tpu.memory_space<vmem>>, vector<1x8x512xf32>,
    %c0_16 = arith.constant 0 : index
    %c3 = arith.constant 3 : index
    %c0_17 = arith.constant 0 : index
    %21 = vector.load %arg2[%c0_16, %c3, %c0_17] : memref<8x8x512xbf16, #tpu.memory_space<vmem>>, vector<8x1x512xbf16>
    %22 = vector.shape_cast %21 : vector<8x1x512xbf16> to vector<8x512xbf16>
    %23 = arith.extf %22 : vector<8x512xbf16> to vector<8x512xf32>
    %c3_18 = arith.constant 3 : index
    %c0_19 = arith.constant 0 : index
    %c0_20 = arith.constant 0 : index
    %24 = vector.load %arg9[%c3_18, %c0_19, %c0_20] : memref<8x8x512xf32, #tpu.memory_space<vmem>>, vector<1x8x512xf32>
    %25 = vector.shape_cast %24 : vector<1x8x512xf32> to vector<8x512xf32>
    %26 = vector.shape_cast %23 : vector<8x512xf32> to vector<1x8x512xf32>
    tpu.vector_store %arg9[%c3_18, %c0_19, %c0_20], %26 {strides = array<i32>} : memref<8x8x512xf32, #tpu.memory_space<vmem>>, vector<1x8x512xf32>,
    %c0_21 = arith.constant 0 : index
    %c4 = arith.constant 4 : index
    %c0_22 = arith.constant 0 : index
    %27 = vector.load %arg2[%c0_21, %c4, %c0_22] : memref<8x8x512xbf16, #tpu.memory_space<vmem>>, vector<8x1x512xbf16>
    %28 = vector.shape_cast %27 : vector<8x1x512xbf16> to vector<8x512xbf16>
    %29 = arith.extf %28 : vector<8x512xbf16> to vector<8x512xf32>
    %c4_23 = arith.constant 4 : index
    %c0_24 = arith.constant 0 : index
    %c0_25 = arith.constant 0 : index
    %30 = vector.load %arg9[%c4_23, %c0_24, %c0_25] : memref<8x8x512xf32, #tpu.memory_space<vmem>>, vector<1x8x512xf32>
    %31 = vector.shape_cast %30 : vector<1x8x512xf32> to vector<8x512xf32>
    %32 = vector.shape_cast %29 : vector<8x512xf32> to vector<1x8x512xf32>
    tpu.vector_store %arg9[%c4_23, %c0_24, %c0_25], %32 {strides = array<i32>} : memref<8x8x512xf32, #tpu.memory_space<vmem>>, vector<1x8x512xf32>,
    %c0_26 = arith.constant 0 : index
    %c5 = arith.constant 5 : index
    %c0_27 = arith.constant 0 : index
    %33 = vector.load %arg2[%c0_26, %c5, %c0_27] : memref<8x8x512xbf16, #tpu.memory_space<vmem>>, vector<8x1x512xbf16>
    %34 = vector.shape_cast %33 : vector<8x1x512xbf16> to vector<8x512xbf16>
    %35 = arith.extf %34 : vector<8x512xbf16> to vector<8x512xf32>
    %c5_28 = arith.constant 5 : index
    %c0_29 = arith.constant 0 : index
    %c0_30 = arith.constant 0 : index
    %36 = vector.load %arg9[%c5_28, %c0_29, %c0_30] : memref<8x8x512xf32, #tpu.memory_space<vmem>>, vector<1x8x512xf32>
    %37 = vector.shape_cast %36 : vector<1x8x512xf32> to vector<8x512xf32>
    %38 = vector.shape_cast %35 : vector<8x512xf32> to vector<1x8x512xf32>
    tpu.vector_store %arg9[%c5_28, %c0_29, %c0_30], %38 {strides = array<i32>} : memref<8x8x512xf32, #tpu.memory_space<vmem>>, vector<1x8x512xf32>,
    %c0_31 = arith.constant 0 : index
    %c6 = arith.constant 6 : index
    %c0_32 = arith.constant 0 : index
    %39 = vector.load %arg2[%c0_31, %c6, %c0_32] : memref<8x8x512xbf16, #tpu.memory_space<vmem>>, vector<8x1x512xbf16>
    %40 = vector.shape_cast %39 : vector<8x1x512xbf16> to vector<8x512xbf16>
    %41 = arith.extf %40 : vector<8x512xbf16> to vector<8x512xf32>
    %c6_33 = arith.constant 6 : index
    %c0_34 = arith.constant 0 : index
    %c0_35 = arith.constant 0 : index
    %42 = vector.load %arg9[%c6_33, %c0_34, %c0_35] : memref<8x8x512xf32, #tpu.memory_space<vmem>>, vector<1x8x512xf32>
    %43 = vector.shape_cast %42 : vector<1x8x512xf32> to vector<8x512xf32>
    %44 = vector.shape_cast %41 : vector<8x512xf32> to vector<1x8x512xf32>
    tpu.vector_store %arg9[%c6_33, %c0_34, %c0_35], %44 {strides = array<i32>} : memref<8x8x512xf32, #tpu.memory_space<vmem>>, vector<1x8x512xf32>,
    %c0_36 = arith.constant 0 : index
    %c7 = arith.constant 7 : index
    %c0_37 = arith.constant 0 : index
    %45 = vector.load %arg2[%c0_36, %c7, %c0_37] : memref<8x8x512xbf16, #tpu.memory_space<vmem>>, vector<8x1x512xbf16>
    %46 = vector.shape_cast %45 : vector<8x1x512xbf16> to vector<8x512xbf16>
    %47 = arith.extf %46 : vector<8x512xbf16> to vector<8x512xf32>
    %c7_38 = arith.constant 7 : index
    %c0_39 = arith.constant 0 : index
    %c0_40 = arith.constant 0 : index
    %48 = vector.load %arg9[%c7_38, %c0_39, %c0_40] : memref<8x8x512xf32, #tpu.memory_space<vmem>>, vector<1x8x512xf32>
    %49 = vector.shape_cast %48 : vector<1x8x512xf32> to vector<8x512xf32>
    %50 = vector.shape_cast %47 : vector<8x512xf32> to vector<1x8x512xf32>
    tpu.vector_store %arg9[%c7_38, %c0_39, %c0_40], %50 {strides = array<i32>} : memref<8x8x512xf32, #tpu.memory_space<vmem>>, vector<1x8x512xf32>,
    %c0_41 = arith.constant 0 : index
    %c0_42 = arith.constant 0 : index
    %51 = vector.load %arg3[%c0_41, %c0_42] : memref<128x512xbf16, #tpu.memory_space<vmem>>, vector<128x512xbf16>
    %c0_43 = arith.constant 0 : index
    %c0_44 = arith.constant 0 : index
    %52 = vector.load %arg7[%c0_43, %c0_44] : memref<8x128xf32, #tpu.memory_space<vmem>>, vector<8x128xf32>
    %c0_45 = arith.constant 0 : index
    %c0_46 = arith.constant 0 : index
    %53 = vector.load %arg8[%c0_45, %c0_46] : memref<8x128xf32, #tpu.memory_space<vmem>>, vector<8x128xf32>
    %c0_i32_47 = arith.constant 0 : i32
    %54 = arith.index_cast %c0_i32_47 : i32 to index
    %c0_48 = arith.constant 0 : index
    %c0_49 = arith.constant 0 : index
    %55 = vector.load %arg9[%54, %c0_48, %c0_49] : memref<8x8x512xf32, #tpu.memory_space<vmem>>, vector<1x8x512xf32>
    %56 = vector.shape_cast %55 : vector<1x8x512xf32> to vector<8x512xf32>
    %57 = arith.truncf %52 : vector<8x128xf32> to vector<8x128xbf16>
    %cst = arith.constant dense<0.000000e+00> : vector<8x512xf32>
    %58 = tpu.matmul %57, %51, %cst {dimension_numbers = #tpu.dot_dimension_numbers<[1], [0], [0], [1], [0, 0, 1, 1], [], []>} : vector<8x128xbf16>, vector<128x512xbf16>, vector<8x512xf32> -> vector<8x512xf32>
    %59 = arith.addf %56, %58 : vector<8x512xf32>
    %60 = vector.extract_strided_slice %59 {offsets = [0, 0], sizes = [8, 128], strides = [1, 1]} : vector<8x512xf32> to vector<8x128xf32>
    %61 = arith.negf %60 : vector<8x128xf32>
    %62 = math.exp %61 : vector<8x128xf32>
    %cst_50 = arith.constant 1.000000e+00 : f32
    %63 = vector.broadcast %cst_50 : f32 to vector<8x128xf32>
    %64 = arith.addf %63, %62 : vector<8x128xf32>
    %65 = arith.divf %63, %64 : vector<8x128xf32>
    %66 = vector.extract_strided_slice %59 {offsets = [0, 128], sizes = [8, 128], strides = [1, 1]} : vector<8x512xf32> to vector<8x128xf32>
    %67 = arith.negf %66 : vector<8x128xf32>
    %68 = math.exp %67 : vector<8x128xf32>
    %cst_51 = arith.constant 1.000000e+00 : f32
    %69 = vector.broadcast %cst_51 : f32 to vector<8x128xf32>
    %70 = arith.addf %69, %68 : vector<8x128xf32>
    %71 = arith.divf %69, %70 : vector<8x128xf32>
    %72 = vector.extract_strided_slice %59 {offsets = [0, 256], sizes = [8, 128], strides = [1, 1]} : vector<8x512xf32> to vector<8x128xf32>
    %73 = math.tanh %72 : vector<8x128xf32>
    %74 = vector.extract_strided_slice %59 {offsets = [0, 384], sizes = [8, 128], strides = [1, 1]} : vector<8x512xf32> to vector<8x128xf32>
    %75 = arith.negf %74 : vector<8x128xf32>
    %76 = math.exp %75 : vector<8x128xf32>
    %cst_52 = arith.constant 1.000000e+00 : f32
    %77 = vector.broadcast %cst_52 : f32 to vector<8x128xf32>
    %78 = arith.addf %77, %76 : vector<8x128xf32>
    %79 = arith.divf %77, %78 : vector<8x128xf32>
    %80 = arith.mulf %71, %53 : vector<8x128xf32>
    %81 = arith.mulf %65, %73 : vector<8x128xf32>
    %82 = arith.addf %80, %81 : vector<8x128xf32>
    %83 = math.tanh %82 : vector<8x128xf32>
    %84 = arith.mulf %79, %83 : vector<8x128xf32>
    %c1_i32 = arith.constant 1 : i32
    %85 = arith.index_cast %c1_i32 : i32 to index
    %c0_53 = arith.constant 0 : index
    %c0_54 = arith.constant 0 : index
    %86 = vector.load %arg9[%85, %c0_53, %c0_54] : memref<8x8x512xf32, #tpu.memory_space<vmem>>, vector<1x8x512xf32>
    %87 = vector.shape_cast %86 : vector<1x8x512xf32> to vector<8x512xf32>
    %88 = arith.truncf %84 : vector<8x128xf32> to vector<8x128xbf16>
    %cst_55 = arith.constant dense<0.000000e+00> : vector<8x512xf32>
    %89 = tpu.matmul %88, %51, %cst_55 {dimension_numbers = #tpu.dot_dimension_numbers<[1], [0], [0], [1], [0, 0, 1, 1], [], []>} : vector<8x128xbf16>, vector<128x512xbf16>, vector<8x512xf32> -> vector<8x512xf32>
    %90 = arith.addf %87, %89 : vector<8x512xf32>
    %91 = vector.extract_strided_slice %90 {offsets = [0, 0], sizes = [8, 128], strides = [1, 1]} : vector<8x512xf32> to vector<8x128xf32>
    %92 = arith.negf %91 : vector<8x128xf32>
    %93 = math.exp %92 : vector<8x128xf32>
    %cst_56 = arith.constant 1.000000e+00 : f32
    %94 = vector.broadcast %cst_56 : f32 to vector<8x128xf32>
    %95 = arith.addf %94, %93 : vector<8x128xf32>
    %96 = arith.divf %94, %95 : vector<8x128xf32>
    %97 = vector.extract_strided_slice %90 {offsets = [0, 128], sizes = [8, 128], strides = [1, 1]} : vector<8x512xf32> to vector<8x128xf32>
    %98 = arith.negf %97 : vector<8x128xf32>
    %99 = math.exp %98 : vector<8x128xf32>
    %cst_57 = arith.constant 1.000000e+00 : f32
    %100 = vector.broadcast %cst_57 : f32 to vector<8x128xf32>
    %101 = arith.addf %100, %99 : vector<8x128xf32>
    %102 = arith.divf %100, %101 : vector<8x128xf32>
    %103 = vector.extract_strided_slice %90 {offsets = [0, 256], sizes = [8, 128], strides = [1, 1]} : vector<8x512xf32> to vector<8x128xf32>
    %104 = math.tanh %103 : vector<8x128xf32>
    %105 = vector.extract_strided_slice %90 {offsets = [0, 384], sizes = [8, 128], strides = [1, 1]} : vector<8x512xf32> to vector<8x128xf32>
    %106 = arith.negf %105 : vector<8x128xf32>
    %107 = math.exp %106 : vector<8x128xf32>
    %cst_58 = arith.constant 1.000000e+00 : f32
    %108 = vector.broadcast %cst_58 : f32 to vector<8x128xf32>
    %109 = arith.addf %108, %107 : vector<8x128xf32>
    %110 = arith.divf %108, %109 : vector<8x128xf32>
    %111 = arith.mulf %102, %82 : vector<8x128xf32>
    %112 = arith.mulf %96, %104 : vector<8x128xf32>
    %113 = arith.addf %111, %112 : vector<8x128xf32>
    %114 = math.tanh %113 : vector<8x128xf32>
    %115 = arith.mulf %110, %114 : vector<8x128xf32>
    %c2_i32 = arith.constant 2 : i32
    %116 = arith.index_cast %c2_i32 : i32 to index
    %c0_59 = arith.constant 0 : index
    %c0_60 = arith.constant 0 : index
    %117 = vector.load %arg9[%116, %c0_59, %c0_60] : memref<8x8x512xf32, #tpu.memory_space<vmem>>, vector<1x8x512xf32>
    %118 = vector.shape_cast %117 : vector<1x8x512xf32> to vector<8x512xf32>
    %119 = arith.truncf %115 : vector<8x128xf32> to vector<8x128xbf16>
    %cst_61 = arith.constant dense<0.000000e+00> : vector<8x512xf32>
    %120 = tpu.matmul %119, %51, %cst_61 {dimension_numbers = #tpu.dot_dimension_numbers<[1], [0], [0], [1], [0, 0, 1, 1], [], []>} : vector<8x128xbf16>, vector<128x512xbf16>, vector<8x512xf32> -> vector<8x512xf32>
    %121 = arith.addf %118, %120 : vector<8x512xf32>
    %122 = vector.extract_strided_slice %121 {offsets = [0, 0], sizes = [8, 128], strides = [1, 1]} : vector<8x512xf32> to vector<8x128xf32>
    %123 = arith.negf %122 : vector<8x128xf32>
    %124 = math.exp %123 : vector<8x128xf32>
    %cst_62 = arith.constant 1.000000e+00 : f32
    %125 = vector.broadcast %cst_62 : f32 to vector<8x128xf32>
    %126 = arith.addf %125, %124 : vector<8x128xf32>
    %127 = arith.divf %125, %126 : vector<8x128xf32>
    %128 = vector.extract_strided_slice %121 {offsets = [0, 128], sizes = [8, 128], strides = [1, 1]} : vector<8x512xf32> to vector<8x128xf32>
    %129 = arith.negf %128 : vector<8x128xf32>
    %130 = math.exp %129 : vector<8x128xf32>
    %cst_63 = arith.constant 1.000000e+00 : f32
    %131 = vector.broadcast %cst_63 : f32 to vector<8x128xf32>
    %132 = arith.addf %131, %130 : vector<8x128xf32>
    %133 = arith.divf %131, %132 : vector<8x128xf32>
    %134 = vector.extract_strided_slice %121 {offsets = [0, 256], sizes = [8, 128], strides = [1, 1]} : vector<8x512xf32> to vector<8x128xf32>
    %135 = math.tanh %134 : vector<8x128xf32>
    %136 = vector.extract_strided_slice %121 {offsets = [0, 384], sizes = [8, 128], strides = [1, 1]} : vector<8x512xf32> to vector<8x128xf32>
    %137 = arith.negf %136 : vector<8x128xf32>
    %138 = math.exp %137 : vector<8x128xf32>
    %cst_64 = arith.constant 1.000000e+00 : f32
    %139 = vector.broadcast %cst_64 : f32 to vector<8x128xf32>
    %140 = arith.addf %139, %138 : vector<8x128xf32>
    %141 = arith.divf %139, %140 : vector<8x128xf32>
    %142 = arith.mulf %133, %113 : vector<8x128xf32>
    %143 = arith.mulf %127, %135 : vector<8x128xf32>
    %144 = arith.addf %142, %143 : vector<8x128xf32>
    %145 = math.tanh %144 : vector<8x128xf32>
    %146 = arith.mulf %141, %145 : vector<8x128xf32>
    %c3_i32 = arith.constant 3 : i32
    %147 = arith.index_cast %c3_i32 : i32 to index
    %c0_65 = arith.constant 0 : index
    %c0_66 = arith.constant 0 : index
    %148 = vector.load %arg9[%147, %c0_65, %c0_66] : memref<8x8x512xf32, #tpu.memory_space<vmem>>, vector<1x8x512xf32>
    %149 = vector.shape_cast %148 : vector<1x8x512xf32> to vector<8x512xf32>
    %150 = arith.truncf %146 : vector<8x128xf32> to vector<8x128xbf16>
    %cst_67 = arith.constant dense<0.000000e+00> : vector<8x512xf32>
    %151 = tpu.matmul %150, %51, %cst_67 {dimension_numbers = #tpu.dot_dimension_numbers<[1], [0], [0], [1], [0, 0, 1, 1], [], []>} : vector<8x128xbf16>, vector<128x512xbf16>, vector<8x512xf32> -> vector<8x512xf32>
    %152 = arith.addf %149, %151 : vector<8x512xf32>
    %153 = vector.extract_strided_slice %152 {offsets = [0, 0], sizes = [8, 128], strides = [1, 1]} : vector<8x512xf32> to vector<8x128xf32>
    %154 = arith.negf %153 : vector<8x128xf32>
    %155 = math.exp %154 : vector<8x128xf32>
    %cst_68 = arith.constant 1.000000e+00 : f32
    %156 = vector.broadcast %cst_68 : f32 to vector<8x128xf32>
    %157 = arith.addf %156, %155 : vector<8x128xf32>
    %158 = arith.divf %156, %157 : vector<8x128xf32>
    %159 = vector.extract_strided_slice %152 {offsets = [0, 128], sizes = [8, 128], strides = [1, 1]} : vector<8x512xf32> to vector<8x128xf32>
    %160 = arith.negf %159 : vector<8x128xf32>
    %161 = math.exp %160 : vector<8x128xf32>
    %cst_69 = arith.constant 1.000000e+00 : f32
    %162 = vector.broadcast %cst_69 : f32 to vector<8x128xf32>
    %163 = arith.addf %162, %161 : vector<8x128xf32>
    %164 = arith.divf %162, %163 : vector<8x128xf32>
    %165 = vector.extract_strided_slice %152 {offsets = [0, 256], sizes = [8, 128], strides = [1, 1]} : vector<8x512xf32> to vector<8x128xf32>
    %166 = math.tanh %165 : vector<8x128xf32>
    %167 = vector.extract_strided_slice %152 {offsets = [0, 384], sizes = [8, 128], strides = [1, 1]} : vector<8x512xf32> to vector<8x128xf32>
    %168 = arith.negf %167 : vector<8x128xf32>
    %169 = math.exp %168 : vector<8x128xf32>
    %cst_70 = arith.constant 1.000000e+00 : f32
    %170 = vector.broadcast %cst_70 : f32 to vector<8x128xf32>
    %171 = arith.addf %170, %169 : vector<8x128xf32>
    %172 = arith.divf %170, %171 : vector<8x128xf32>
    %173 = arith.mulf %164, %144 : vector<8x128xf32>
    %174 = arith.mulf %158, %166 : vector<8x128xf32>
    %175 = arith.addf %173, %174 : vector<8x128xf32>
    %176 = math.tanh %175 : vector<8x128xf32>
    %177 = arith.mulf %172, %176 : vector<8x128xf32>
    %c4_i32 = arith.constant 4 : i32
    %178 = arith.index_cast %c4_i32 : i32 to index
    %c0_71 = arith.constant 0 : index
    %c0_72 = arith.constant 0 : index
    %179 = vector.load %arg9[%178, %c0_71, %c0_72] : memref<8x8x512xf32, #tpu.memory_space<vmem>>, vector<1x8x512xf32>
    %180 = vector.shape_cast %179 : vector<1x8x512xf32> to vector<8x512xf32>
    %181 = arith.truncf %177 : vector<8x128xf32> to vector<8x128xbf16>
    %cst_73 = arith.constant dense<0.000000e+00> : vector<8x512xf32>
    %182 = tpu.matmul %181, %51, %cst_73 {dimension_numbers = #tpu.dot_dimension_numbers<[1], [0], [0], [1], [0, 0, 1, 1], [], []>} : vector<8x128xbf16>, vector<128x512xbf16>, vector<8x512xf32> -> vector<8x512xf32>
    %183 = arith.addf %180, %182 : vector<8x512xf32>
    %184 = vector.extract_strided_slice %183 {offsets = [0, 0], sizes = [8, 128], strides = [1, 1]} : vector<8x512xf32> to vector<8x128xf32>
    %185 = arith.negf %184 : vector<8x128xf32>
    %186 = math.exp %185 : vector<8x128xf32>
    %cst_74 = arith.constant 1.000000e+00 : f32
    %187 = vector.broadcast %cst_74 : f32 to vector<8x128xf32>
    %188 = arith.addf %187, %186 : vector<8x128xf32>
    %189 = arith.divf %187, %188 : vector<8x128xf32>
    %190 = vector.extract_strided_slice %183 {offsets = [0, 128], sizes = [8, 128], strides = [1, 1]} : vector<8x512xf32> to vector<8x128xf32>
    %191 = arith.negf %190 : vector<8x128xf32>
    %192 = math.exp %191 : vector<8x128xf32>
    %cst_75 = arith.constant 1.000000e+00 : f32
    %193 = vector.broadcast %cst_75 : f32 to vector<8x128xf32>
    %194 = arith.addf %193, %192 : vector<8x128xf32>
    %195 = arith.divf %193, %194 : vector<8x128xf32>
    %196 = vector.extract_strided_slice %183 {offsets = [0, 256], sizes = [8, 128], strides = [1, 1]} : vector<8x512xf32> to vector<8x128xf32>
    %197 = math.tanh %196 : vector<8x128xf32>
    %198 = vector.extract_strided_slice %183 {offsets = [0, 384], sizes = [8, 128], strides = [1, 1]} : vector<8x512xf32> to vector<8x128xf32>
    %199 = arith.negf %198 : vector<8x128xf32>
    %200 = math.exp %199 : vector<8x128xf32>
    %cst_76 = arith.constant 1.000000e+00 : f32
    %201 = vector.broadcast %cst_76 : f32 to vector<8x128xf32>
    %202 = arith.addf %201, %200 : vector<8x128xf32>
    %203 = arith.divf %201, %202 : vector<8x128xf32>
    %204 = arith.mulf %195, %175 : vector<8x128xf32>
    %205 = arith.mulf %189, %197 : vector<8x128xf32>
    %206 = arith.addf %204, %205 : vector<8x128xf32>
    %207 = math.tanh %206 : vector<8x128xf32>
    %208 = arith.mulf %203, %207 : vector<8x128xf32>
    %c5_i32 = arith.constant 5 : i32
    %209 = arith.index_cast %c5_i32 : i32 to index
    %c0_77 = arith.constant 0 : index
    %c0_78 = arith.constant 0 : index
    %210 = vector.load %arg9[%209, %c0_77, %c0_78] : memref<8x8x512xf32, #tpu.memory_space<vmem>>, vector<1x8x512xf32>
    %211 = vector.shape_cast %210 : vector<1x8x512xf32> to vector<8x512xf32>
    %212 = arith.truncf %208 : vector<8x128xf32> to vector<8x128xbf16>
    %cst_79 = arith.constant dense<0.000000e+00> : vector<8x512xf32>
    %213 = tpu.matmul %212, %51, %cst_79 {dimension_numbers = #tpu.dot_dimension_numbers<[1], [0], [0], [1], [0, 0, 1, 1], [], []>} : vector<8x128xbf16>, vector<128x512xbf16>, vector<8x512xf32> -> vector<8x512xf32>
    %214 = arith.addf %211, %213 : vector<8x512xf32>
    %215 = vector.extract_strided_slice %214 {offsets = [0, 0], sizes = [8, 128], strides = [1, 1]} : vector<8x512xf32> to vector<8x128xf32>
    %216 = arith.negf %215 : vector<8x128xf32>
    %217 = math.exp %216 : vector<8x128xf32>
    %cst_80 = arith.constant 1.000000e+00 : f32
    %218 = vector.broadcast %cst_80 : f32 to vector<8x128xf32>
    %219 = arith.addf %218, %217 : vector<8x128xf32>
    %220 = arith.divf %218, %219 : vector<8x128xf32>
    %221 = vector.extract_strided_slice %214 {offsets = [0, 128], sizes = [8, 128], strides = [1, 1]} : vector<8x512xf32> to vector<8x128xf32>
    %222 = arith.negf %221 : vector<8x128xf32>
    %223 = math.exp %222 : vector<8x128xf32>
    %cst_81 = arith.constant 1.000000e+00 : f32
    %224 = vector.broadcast %cst_81 : f32 to vector<8x128xf32>
    %225 = arith.addf %224, %223 : vector<8x128xf32>
    %226 = arith.divf %224, %225 : vector<8x128xf32>
    %227 = vector.extract_strided_slice %214 {offsets = [0, 256], sizes = [8, 128], strides = [1, 1]} : vector<8x512xf32> to vector<8x128xf32>
    %228 = math.tanh %227 : vector<8x128xf32>
    %229 = vector.extract_strided_slice %214 {offsets = [0, 384], sizes = [8, 128], strides = [1, 1]} : vector<8x512xf32> to vector<8x128xf32>
    %230 = arith.negf %229 : vector<8x128xf32>
    %231 = math.exp %230 : vector<8x128xf32>
    %cst_82 = arith.constant 1.000000e+00 : f32
    %232 = vector.broadcast %cst_82 : f32 to vector<8x128xf32>
    %233 = arith.addf %232, %231 : vector<8x128xf32>
    %234 = arith.divf %232, %233 : vector<8x128xf32>
    %235 = arith.mulf %226, %206 : vector<8x128xf32>
    %236 = arith.mulf %220, %228 : vector<8x128xf32>
    %237 = arith.addf %235, %236 : vector<8x128xf32>
    %238 = math.tanh %237 : vector<8x128xf32>
    %239 = arith.mulf %234, %238 : vector<8x128xf32>
    %c6_i32 = arith.constant 6 : i32
    %240 = arith.index_cast %c6_i32 : i32 to index
    %c0_83 = arith.constant 0 : index
    %c0_84 = arith.constant 0 : index
    %241 = vector.load %arg9[%240, %c0_83, %c0_84] : memref<8x8x512xf32, #tpu.memory_space<vmem>>, vector<1x8x512xf32>
    %242 = vector.shape_cast %241 : vector<1x8x512xf32> to vector<8x512xf32>
    %243 = arith.truncf %239 : vector<8x128xf32> to vector<8x128xbf16>
    %cst_85 = arith.constant dense<0.000000e+00> : vector<8x512xf32>
    %244 = tpu.matmul %243, %51, %cst_85 {dimension_numbers = #tpu.dot_dimension_numbers<[1], [0], [0], [1], [0, 0, 1, 1], [], []>} : vector<8x128xbf16>, vector<128x512xbf16>, vector<8x512xf32> -> vector<8x512xf32>
    %245 = arith.addf %242, %244 : vector<8x512xf32>
    %246 = vector.extract_strided_slice %245 {offsets = [0, 0], sizes = [8, 128], strides = [1, 1]} : vector<8x512xf32> to vector<8x128xf32>
    %247 = arith.negf %246 : vector<8x128xf32>
    %248 = math.exp %247 : vector<8x128xf32>
    %cst_86 = arith.constant 1.000000e+00 : f32
    %249 = vector.broadcast %cst_86 : f32 to vector<8x128xf32>
    %250 = arith.addf %249, %248 : vector<8x128xf32>
    %251 = arith.divf %249, %250 : vector<8x128xf32>
    %252 = vector.extract_strided_slice %245 {offsets = [0, 128], sizes = [8, 128], strides = [1, 1]} : vector<8x512xf32> to vector<8x128xf32>
    %253 = arith.negf %252 : vector<8x128xf32>
    %254 = math.exp %253 : vector<8x128xf32>
    %cst_87 = arith.constant 1.000000e+00 : f32
    %255 = vector.broadcast %cst_87 : f32 to vector<8x128xf32>
    %256 = arith.addf %255, %254 : vector<8x128xf32>
    %257 = arith.divf %255, %256 : vector<8x128xf32>
    %258 = vector.extract_strided_slice %245 {offsets = [0, 256], sizes = [8, 128], strides = [1, 1]} : vector<8x512xf32> to vector<8x128xf32>
    %259 = math.tanh %258 : vector<8x128xf32>
    %260 = vector.extract_strided_slice %245 {offsets = [0, 384], sizes = [8, 128], strides = [1, 1]} : vector<8x512xf32> to vector<8x128xf32>
    %261 = arith.negf %260 : vector<8x128xf32>
    %262 = math.exp %261 : vector<8x128xf32>
    %cst_88 = arith.constant 1.000000e+00 : f32
    %263 = vector.broadcast %cst_88 : f32 to vector<8x128xf32>
    %264 = arith.addf %263, %262 : vector<8x128xf32>
    %265 = arith.divf %263, %264 : vector<8x128xf32>
    %266 = arith.mulf %257, %237 : vector<8x128xf32>
    %267 = arith.mulf %251, %259 : vector<8x128xf32>
    %268 = arith.addf %266, %267 : vector<8x128xf32>
    %269 = math.tanh %268 : vector<8x128xf32>
    %270 = arith.mulf %265, %269 : vector<8x128xf32>
    %c7_i32 = arith.constant 7 : i32
    %271 = arith.index_cast %c7_i32 : i32 to index
    %c0_89 = arith.constant 0 : index
    %c0_90 = arith.constant 0 : index
    %272 = vector.load %arg9[%271, %c0_89, %c0_90] : memref<8x8x512xf32, #tpu.memory_space<vmem>>, vector<1x8x512xf32>
    %273 = vector.shape_cast %272 : vector<1x8x512xf32> to vector<8x512xf32>
    %274 = arith.truncf %270 : vector<8x128xf32> to vector<8x128xbf16>
    %cst_91 = arith.constant dense<0.000000e+00> : vector<8x512xf32>
    %275 = tpu.matmul %274, %51, %cst_91 {dimension_numbers = #tpu.dot_dimension_numbers<[1], [0], [0], [1], [0, 0, 1, 1], [], []>} : vector<8x128xbf16>, vector<128x512xbf16>, vector<8x512xf32> -> vector<8x512xf32>
    %276 = arith.addf %273, %275 : vector<8x512xf32>
    %277 = vector.extract_strided_slice %276 {offsets = [0, 0], sizes = [8, 128], strides = [1, 1]} : vector<8x512xf32> to vector<8x128xf32>
    %278 = arith.negf %277 : vector<8x128xf32>
    %279 = math.exp %278 : vector<8x128xf32>
    %cst_92 = arith.constant 1.000000e+00 : f32
    %280 = vector.broadcast %cst_92 : f32 to vector<8x128xf32>
    %281 = arith.addf %280, %279 : vector<8x128xf32>
    %282 = arith.divf %280, %281 : vector<8x128xf32>
    %283 = vector.extract_strided_slice %276 {offsets = [0, 128], sizes = [8, 128], strides = [1, 1]} : vector<8x512xf32> to vector<8x128xf32>
    %284 = arith.negf %283 : vector<8x128xf32>
    %285 = math.exp %284 : vector<8x128xf32>
    %cst_93 = arith.constant 1.000000e+00 : f32
    %286 = vector.broadcast %cst_93 : f32 to vector<8x128xf32>
    %287 = arith.addf %286, %285 : vector<8x128xf32>
    %288 = arith.divf %286, %287 : vector<8x128xf32>
    %289 = vector.extract_strided_slice %276 {offsets = [0, 256], sizes = [8, 128], strides = [1, 1]} : vector<8x512xf32> to vector<8x128xf32>
    %290 = math.tanh %289 : vector<8x128xf32>
    %291 = vector.extract_strided_slice %276 {offsets = [0, 384], sizes = [8, 128], strides = [1, 1]} : vector<8x512xf32> to vector<8x128xf32>
    %292 = arith.negf %291 : vector<8x128xf32>
    %293 = math.exp %292 : vector<8x128xf32>
    %cst_94 = arith.constant 1.000000e+00 : f32
    %294 = vector.broadcast %cst_94 : f32 to vector<8x128xf32>
    %295 = arith.addf %294, %293 : vector<8x128xf32>
    %296 = arith.divf %294, %295 : vector<8x128xf32>
    %297 = arith.mulf %288, %268 : vector<8x128xf32>
    %298 = arith.mulf %282, %290 : vector<8x128xf32>
    %299 = arith.addf %297, %298 : vector<8x128xf32>
    %300 = math.tanh %299 : vector<8x128xf32>
    %301 = arith.mulf %296, %300 : vector<8x128xf32>
    %c8_i32 = arith.constant 8 : i32
    %c0_95 = arith.constant 0 : index
    %c0_96 = arith.constant 0 : index
    %302 = vector.load %arg7[%c0_95, %c0_96] : memref<8x128xf32, #tpu.memory_space<vmem>>, vector<8x128xf32>
    tpu.vector_store %arg7[%c0_95, %c0_96], %301 {strides = array<i32>} : memref<8x128xf32, #tpu.memory_space<vmem>>, vector<8x128xf32>,
    %c0_97 = arith.constant 0 : index
    %c0_98 = arith.constant 0 : index
    %303 = vector.load %arg8[%c0_97, %c0_98] : memref<8x128xf32, #tpu.memory_space<vmem>>, vector<8x128xf32>
    tpu.vector_store %arg8[%c0_97, %c0_98], %299 {strides = array<i32>} : memref<8x128xf32, #tpu.memory_space<vmem>>, vector<8x128xf32>,
    %c0_i32_99 = arith.constant 0 : i32
    %304 = arith.cmpi eq, %arg1, %c0_i32_99 : i32
    %305 = arith.extui %304 : i1 to i32
    %c0_i32_100 = arith.constant 0 : i32
    %306 = arith.cmpi ne, %305, %c0_i32_100 : i32
    scf.if %306 {
      %c0_101 = arith.constant 0 : index
      %c0_102 = arith.constant 0 : index
      %307 = vector.load %arg4[%c0_101, %c0_102] : memref<1x128xf32, #tpu.memory_space<vmem>>, vector<1x128xf32>
      %308 = vector.broadcast %307 : vector<1x128xf32> to vector<8x128xf32>
      %309 = arith.mulf %301, %308 : vector<8x128xf32>
      %cst_103 = arith.constant dense<0.000000e+00> : vector<8xf32>
      %310 = vector.multi_reduction <add>, %309, %cst_103 [1] : vector<8x128xf32> to vector<8xf32>
      %311 = vector.shape_cast %310 : vector<8xf32> to vector<8x1xf32>
      %c0_104 = arith.constant 0 : index
      %c0_105 = arith.constant 0 : index
      %312 = vector.load %arg5[%c0_104, %c0_105] : memref<1x1xf32, #tpu.memory_space<vmem>>, vector<1x1xf32>
      %313 = vector.broadcast %312 : vector<1x1xf32> to vector<8x1xf32>
      %314 = arith.addf %311, %313 : vector<8x1xf32>
      %c0_106 = arith.constant 0 : index
      %c0_107 = arith.constant 0 : index
      %315 = vector.load %arg6[%c0_106, %c0_107] : memref<8x1xf32, #tpu.memory_space<vmem>>, vector<8x1xf32>
      tpu.vector_store %arg6[%c0_106, %c0_107], %314 {strides = array<i32>} : memref<8x1xf32, #tpu.memory_space<vmem>>, vector<8x1xf32>,
    } else {
    }
    return
  }
  func.func @transform_0(%arg0: i32, %arg1: i32) -> (i32, i32, i32) {
    %c0_i32 = arith.constant 0 : i32
    %c0_i32_0 = arith.constant 0 : i32
    return %arg0, %arg1, %c0_i32 : i32, i32, i32
  }
  func.func @transform_1(%arg0: i32, %arg1: i32) -> (i32, i32) {
    %c0_i32 = arith.constant 0 : i32
    %c0_i32_0 = arith.constant 0 : i32
    %c0_i32_1 = arith.constant 0 : i32
    return %c0_i32, %c0_i32_0 : i32, i32
  }
  func.func @transform_2(%arg0: i32, %arg1: i32) -> (i32, i32) {
    %c0_i32 = arith.constant 0 : i32
    %c0_i32_0 = arith.constant 0 : i32
    %c0_i32_1 = arith.constant 0 : i32
    return %c0_i32, %c0_i32_0 : i32, i32
  }
  func.func @transform_3(%arg0: i32, %arg1: i32) -> (i32, i32) {
    %c0_i32 = arith.constant 0 : i32
    %c0_i32_0 = arith.constant 0 : i32
    %c0_i32_1 = arith.constant 0 : i32
    return %c0_i32, %c0_i32_0 : i32, i32
  }
  func.func @transform_4(%arg0: i32, %arg1: i32) -> (i32, i32) {
    %c0_i32 = arith.constant 0 : i32
    %c0_i32_0 = arith.constant 0 : i32
    return %arg0, %c0_i32 : i32, i32
  }
}

</mosaic_0001>

<llo_original>
// kernel: custom_fine_tune_forward.2
$region0: #{custom_fine_tune_forward.2}
  #allocation0 [shape = 'u32[]', space=smem, size = 0x4, offset = 0x4, fixed_abs, tag = 'smem constant byte address 0x4 - core index']
  #allocation1 [shape = 'u32[72,128]{1,0:T(1,128)}', space=vmem, size = 0x9000, scoped, tag = 'internal scratch']
  %s0 = inlined_call_operand.vmem [shape: bf16[16,1024], index: 0, kind: input, shape index: {}]
  %s1 = inlined_call_operand.hbm [shape: bf16[1024,512], index: 1, kind: input, shape index: {}]
  %s2 = inlined_call_operand.vmem [shape: f32[1,512], index: 2, kind: input, shape index: {}]
  %s3 = inlined_call_operand.vmem [shape: bf16[16,512], index: 3, kind: output, shape index: {}]
  %s4 = sld [smem:[#allocation0]]
  $region26: #{custom_fine_tune_forward.2} parent=0
    _
  %s6 = ssub.s32 1, %s4
  %s7 = scalar_select 0, %s6, %s4
  $region1: #{custom_fine_tune_forward.2} parent=0
    #allocation2 [shape = 'u8[1048576]{0}', space=vmem, size = 0x100000, scoped, tag = 'input window, operand 1, single buffered']
    #allocation3 [shape = 's32[1]{0}', space=sflag, size = 0x4, scoped, tag = 'scoped memory for custom_fine_tune_forward.2']
    %8 = vsyncpa [#allocation3], 0
    // Predicated region
    $region2: #{custom_fine_tune_forward.2} parent=1 // pred_check
      _
    $region3: #{custom_fine_tune_forward.2} parent=1 // pred_check_branch
      %10 = sbr.rel (0) target = $region5
    $region4: #{custom_fine_tune_forward.2} parent=1 // pred_region
      _
    $region5: #{custom_fine_tune_forward.2} parent=1 // pred_fallthru
      _
    // Predicated region
    $region6: #{custom_fine_tune_forward.2} parent=1 // pred_check
      _
    $region7: #{custom_fine_tune_forward.2} parent=1 // pred_check_branch
      %12 = sbr.rel (0) target = $region9
    $region8: #{custom_fine_tune_forward.2} parent=1 // pred_region
      %14 = vsyncadd [#allocation3], 0
      %s15 = sshll.u32 %s1, 4
      %s16 = int_to_ptr.hbm [resolvable:$true] %s15
      %s17 = sshll.u32 [#allocation2], 4
      %s18 = int_to_ptr.vmem [resolvable:$true] %s17
      %23 = dma.hbm_to_vmem [thread:$0]  %s16, 32768, %s18, [#allocation3], 256, 256, 16
    $region9: #{custom_fine_tune_forward.2} parent=1 // pred_fallthru
      _
    // Predicated region
    $region10: #{custom_fine_tune_forward.2} parent=1 // pred_check
      _
    $region11: #{custom_fine_tune_forward.2} parent=1 // pred_check_branch
      %25 = sbr.rel (0) target = $region13
    $region12: #{custom_fine_tune_forward.2} parent=1 // pred_region
      _
    $region13: #{custom_fine_tune_forward.2} parent=1 // pred_fallthru
      _
    // Predicated region
    $region14: #{custom_fine_tune_forward.2} parent=1 // pred_check
      _
    $region15: #{custom_fine_tune_forward.2} parent=1 // pred_check_branch
      %27 = sbr.rel (0) target = $region17
    $region16: #{custom_fine_tune_forward.2} parent=1 // pred_region
      %29 = dma.done [#allocation3], 32768
    $region17: #{custom_fine_tune_forward.2} parent=1 // pred_fallthru
      _
    %v30 = vld [vmem:[%s0] sm:$0xff]
    %v31 = vld [vmem:[%s0 + $0x8] sm:$0xff]
    %v32 = vld [vmem:[%s0 + $0x10] sm:$0xff]
    %v33 = vld [vmem:[%s0 + $0x18] sm:$0xff]
    %v34 = vld [vmem:[%s0 + $0x20] sm:$0xff]
    %v35 = vld [vmem:[%s0 + $0x28] sm:$0xff]
    %v36 = vld [vmem:[%s0 + $0x30] sm:$0xff]
    %v37 = vld [vmem:[%s0 + $0x38] sm:$0xff]
    %v38 = vld [vmem:[#allocation2] sm:$0xff]
    %v39 = vld [vmem:[#allocation2 + $0x8] sm:$0xff]
    %v40 = vld [vmem:[#allocation2 + $0x10] sm:$0xff]
    %v41 = vld [vmem:[#allocation2 + $0x18] sm:$0xff]
    %v42 = vld [vmem:[#allocation2 + $0x20] sm:$0xff]
    %v43 = vld [vmem:[#allocation2 + $0x28] sm:$0xff]
    %v44 = vld [vmem:[#allocation2 + $0x30] sm:$0xff]
    %v45 = vld [vmem:[#allocation2 + $0x38] sm:$0xff]
    %v46 = vld [vmem:[#allocation2 + $0x40] sm:$0xff]
    %v47 = vld [vmem:[#allocation2 + $0x48] sm:$0xff]
    %v48 = vld [vmem:[#allocation2 + $0x50] sm:$0xff]
    %v49 = vld [vmem:[#allocation2 + $0x58] sm:$0xff]
    %v50 = vld [vmem:[#allocation2 + $0x60] sm:$0xff]
    %v51 = vld [vmem:[#allocation2 + $0x68] sm:$0xff]
    %v52 = vld [vmem:[#allocation2 + $0x70] sm:$0xff]
    %v53 = vld [vmem:[#allocation2 + $0x78] sm:$0xff]
    %v54 = vld [vmem:[#allocation2 + $0x80] sm:$0xff]
    %v55 = vld [vmem:[#allocation2 + $0x88] sm:$0xff]
    %v56 = vld [vmem:[#allocation2 + $0x90] sm:$0xff]
    %v57 = vld [vmem:[#allocation2 + $0x98] sm:$0xff]
    %v58 = vld [vmem:[#allocation2 + $0xa0] sm:$0xff]
    %v59 = vld [vmem:[#allocation2 + $0xa8] sm:$0xff]
    %v60 = vld [vmem:[#allocation2 + $0xb0] sm:$0xff]
    %v61 = vld [vmem:[#allocation2 + $0xb8] sm:$0xff]
    %v62 = vld [vmem:[#allocation2 + $0xc0] sm:$0xff]
    %v63 = vld [vmem:[#allocation2 + $0xc8] sm:$0xff]
    %v64 = vld [vmem:[#allocation2 + $0xd0] sm:$0xff]
    %v65 = vld [vmem:[#allocation2 + $0xd8] sm:$0xff]
    %v66 = vld [vmem:[#allocation2 + $0xe0] sm:$0xff]
    %v67 = vld [vmem:[#allocation2 + $0xe8] sm:$0xff]
    %v68 = vld [vmem:[#allocation2 + $0xf0] sm:$0xff]
    %v69 = vld [vmem:[#allocation2 + $0xf8] sm:$0xff]
    %v70 = vld [vmem:[#allocation2 + $0x100] sm:$0xff]
    %v71 = vld [vmem:[#allocation2 + $0x108] sm:$0xff]
    %v72 = vld [vmem:[#allocation2 + $0x110] sm:$0xff]
    %v73 = vld [vmem:[#allocation2 + $0x118] sm:$0xff]
    %v74 = vld [vmem:[#allocation2 + $0x120] sm:$0xff]
    %v75 = vld [vmem:[#allocation2 + $0x128] sm:$0xff]
    %v76 = vld [vmem:[#allocation2 + $0x130] sm:$0xff]
    %v77 = vld [vmem:[#allocation2 + $0x138] sm:$0xff]
    %v78 = vld [vmem:[#allocation2 + $0x140] sm:$0xff]
    %v79 = vld [vmem:[#allocation2 + $0x148] sm:$0xff]
    %v80 = vld [vmem:[#allocation2 + $0x150] sm:$0xff]
    %v81 = vld [vmem:[#allocation2 + $0x158] sm:$0xff]
    %v82 = vld [vmem:[#allocation2 + $0x160] sm:$0xff]
    %v83 = vld [vmem:[#allocation2 + $0x168] sm:$0xff]
    %v84 = vld [vmem:[#allocation2 + $0x170] sm:$0xff]
    %v85 = vld [vmem:[#allocation2 + $0x178] sm:$0xff]
    %v86 = vld [vmem:[#allocation2 + $0x180] sm:$0xff]
    %v87 = vld [vmem:[#allocation2 + $0x188] sm:$0xff]
    %v88 = vld [vmem:[#allocation2 + $0x190] sm:$0xff]
    %v89 = vld [vmem:[#allocation2 + $0x198] sm:$0xff]
    %v90 = vld [vmem:[#allocation2 + $0x1a0] sm:$0xff]
    %v91 = vld [vmem:[#allocation2 + $0x1a8] sm:$0xff]
    %v92 = vld [vmem:[#allocation2 + $0x1b0] sm:$0xff]
    %v93 = vld [vmem:[#allocation2 + $0x1b8] sm:$0xff]
    %v94 = vld [vmem:[#allocation2 + $0x1c0] sm:$0xff]
    %v95 = vld [vmem:[#allocation2 + $0x1c8] sm:$0xff]
    %v96 = vld [vmem:[#allocation2 + $0x1d0] sm:$0xff]
    %v97 = vld [vmem:[#allocation2 + $0x1d8] sm:$0xff]
    %v98 = vld [vmem:[#allocation2 + $0x1e0] sm:$0xff]
    %v99 = vld [vmem:[#allocation2 + $0x1e8] sm:$0xff]
    %v100 = vld [vmem:[#allocation2 + $0x1f0] sm:$0xff]
    %v101 = vld [vmem:[#allocation2 + $0x1f8] sm:$0xff]
    %v102 = vld [vmem:[#allocation2 + $0x200] sm:$0xff]
    %v103 = vld [vmem:[#allocation2 + $0x208] sm:$0xff]
    %v104 = vld [vmem:[#allocation2 + $0x210] sm:$0xff]
    %v105 = vld [vmem:[#allocation2 + $0x218] sm:$0xff]
    %v106 = vld [vmem:[#allocation2 + $0x220] sm:$0xff]
    %v107 = vld [vmem:[#allocation2 + $0x228] sm:$0xff]
    %v108 = vld [vmem:[#allocation2 + $0x230] sm:$0xff]
    %v109 = vld [vmem:[#allocation2 + $0x238] sm:$0xff]
    %v110 = vld [vmem:[#allocation2 + $0x240] sm:$0xff]
    %v111 = vld [vmem:[#allocation2 + $0x248] sm:$0xff]
    %v112 = vld [vmem:[#allocation2 + $0x250] sm:$0xff]
    %v113 = vld [vmem:[#allocation2 + $0x258] sm:$0xff]
    %v114 = vld [vmem:[#allocation2 + $0x260] sm:$0xff]
    %v115 = vld [vmem:[#allocation2 + $0x268] sm:$0xff]
    %v116 = vld [vmem:[#allocation2 + $0x270] sm:$0xff]
    %v117 = vld [vmem:[#allocation2 + $0x278] sm:$0xff]
    %v118 = vld [vmem:[#allocation2 + $0x280] sm:$0xff]
    %v119 = vld [vmem:[#allocation2 + $0x288] sm:$0xff]
    %v120 = vld [vmem:[#allocation2 + $0x290] sm:$0xff]
    %v121 = vld [vmem:[#allocation2 + $0x298] sm:$0xff]
    %v122 = vld [vmem:[#allocation2 + $0x2a0] sm:$0xff]
    %v123 = vld [vmem:[#allocation2 + $0x2a8] sm:$0xff]
    %v124 = vld [vmem:[#allocation2 + $0x2b0] sm:$0xff]
    %v125 = vld [vmem:[#allocation2 + $0x2b8] sm:$0xff]
    %v126 = vld [vmem:[#allocation2 + $0x2c0] sm:$0xff]
    %v127 = vld [vmem:[#allocation2 + $0x2c8] sm:$0xff]
    %v128 = vld [vmem:[#allocation2 + $0x2d0] sm:$0xff]
    %v129 = vld [vmem:[#allocation2 + $0x2d8] sm:$0xff]
    %v130 = vld [vmem:[#allocation2 + $0x2e0] sm:$0xff]
    %v131 = vld [vmem:[#allocation2 + $0x2e8] sm:$0xff]
    %v132 = vld [vmem:[#allocation2 + $0x2f0] sm:$0xff]
    %v133 = vld [vmem:[#allocation2 + $0x2f8] sm:$0xff]
    %v134 = vld [vmem:[#allocation2 + $0x300] sm:$0xff]
    %v135 = vld [vmem:[#allocation2 + $0x308] sm:$0xff]
    %v136 = vld [vmem:[#allocation2 + $0x310] sm:$0xff]
    %v137 = vld [vmem:[#allocation2 + $0x318] sm:$0xff]
    %v138 = vld [vmem:[#allocation2 + $0x320] sm:$0xff]
    %v139 = vld [vmem:[#allocation2 + $0x328] sm:$0xff]
    %v140 = vld [vmem:[#allocation2 + $0x330] sm:$0xff]
    %v141 = vld [vmem:[#allocation2 + $0x338] sm:$0xff]
    %v142 = vld [vmem:[#allocation2 + $0x340] sm:$0xff]
    %v143 = vld [vmem:[#allocation2 + $0x348] sm:$0xff]
    %v144 = vld [vmem:[#allocation2 + $0x350] sm:$0xff]
    %v145 = vld [vmem:[#allocation2 + $0x358] sm:$0xff]
    %v146 = vld [vmem:[#allocation2 + $0x360] sm:$0xff]
    %v147 = vld [vmem:[#allocation2 + $0x368] sm:$0xff]
    %v148 = vld [vmem:[#allocation2 + $0x370] sm:$0xff]
    %v149 = vld [vmem:[#allocation2 + $0x378] sm:$0xff]
    %v150 = vld [vmem:[#allocation2 + $0x380] sm:$0xff]
    %v151 = vld [vmem:[#allocation2 + $0x388] sm:$0xff]
    %v152 = vld [vmem:[#allocation2 + $0x390] sm:$0xff]
    %v153 = vld [vmem:[#allocation2 + $0x398] sm:$0xff]
    %v154 = vld [vmem:[#allocation2 + $0x3a0] sm:$0xff]
    %v155 = vld [vmem:[#allocation2 + $0x3a8] sm:$0xff]
    %v156 = vld [vmem:[#allocation2 + $0x3b0] sm:$0xff]
    %v157 = vld [vmem:[#allocation2 + $0x3b8] sm:$0xff]
    %v158 = vld [vmem:[#allocation2 + $0x3c0] sm:$0xff]
    %v159 = vld [vmem:[#allocation2 + $0x3c8] sm:$0xff]
    %v160 = vld [vmem:[#allocation2 + $0x3d0] sm:$0xff]
    %v161 = vld [vmem:[#allocation2 + $0x3d8] sm:$0xff]
    %v162 = vld [vmem:[#allocation2 + $0x3e0] sm:$0xff]
    %v163 = vld [vmem:[#allocation2 + $0x3e8] sm:$0xff]
    %v164 = vld [vmem:[#allocation2 + $0x3f0] sm:$0xff]
    %v165 = vld [vmem:[#allocation2 + $0x3f8] sm:$0xff]
    %v166 = vld [vmem:[#allocation2 + $0x400] sm:$0xff]
    %v167 = vld [vmem:[#allocation2 + $0x408] sm:$0xff]
    %v168 = vld [vmem:[#allocation2 + $0x410] sm:$0xff]
    %v169 = vld [vmem:[#allocation2 + $0x418] sm:$0xff]
    %v170 = vld [vmem:[#allocation2 + $0x420] sm:$0xff]
    %v171 = vld [vmem:[#allocation2 + $0x428] sm:$0xff]
    %v172 = vld [vmem:[#allocation2 + $0x430] sm:$0xff]
    %v173 = vld [vmem:[#allocation2 + $0x438] sm:$0xff]
    %v174 = vld [vmem:[#allocation2 + $0x440] sm:$0xff]
    %v175 = vld [vmem:[#allocation2 + $0x448] sm:$0xff]
    %v176 = vld [vmem:[#allocation2 + $0x450] sm:$0xff]
    %v177 = vld [vmem:[#allocation2 + $0x458] sm:$0xff]
    %v178 = vld [vmem:[#allocation2 + $0x460] sm:$0xff]
    %v179 = vld [vmem:[#allocation2 + $0x468] sm:$0xff]
    %v180 = vld [vmem:[#allocation2 + $0x470] sm:$0xff]
    %v181 = vld [vmem:[#allocation2 + $0x478] sm:$0xff]
    %v182 = vld [vmem:[#allocation2 + $0x480] sm:$0xff]
    %v183 = vld [vmem:[#allocation2 + $0x488] sm:$0xff]
    %v184 = vld [vmem:[#allocation2 + $0x490] sm:$0xff]
    %v185 = vld [vmem:[#allocation2 + $0x498] sm:$0xff]
    %v186 = vld [vmem:[#allocation2 + $0x4a0] sm:$0xff]
    %v187 = vld [vmem:[#allocation2 + $0x4a8] sm:$0xff]
    %v188 = vld [vmem:[#allocation2 + $0x4b0] sm:$0xff]
    %v189 = vld [vmem:[#allocation2 + $0x4b8] sm:$0xff]
    %v190 = vld [vmem:[#allocation2 + $0x4c0] sm:$0xff]
    %v191 = vld [vmem:[#allocation2 + $0x4c8] sm:$0xff]
    %v192 = vld [vmem:[#allocation2 + $0x4d0] sm:$0xff]
    %v193 = vld [vmem:[#allocation2 + $0x4d8] sm:$0xff]
    %v194 = vld [vmem:[#allocation2 + $0x4e0] sm:$0xff]
    %v195 = vld [vmem:[#allocation2 + $0x4e8] sm:$0xff]
    %v196 = vld [vmem:[#allocation2 + $0x4f0] sm:$0xff]
    %v197 = vld [vmem:[#allocation2 + $0x4f8] sm:$0xff]
    %v198 = vld [vmem:[#allocation2 + $0x500] sm:$0xff]
    %v199 = vld [vmem:[#allocation2 + $0x508] sm:$0xff]
    %v200 = vld [vmem:[#allocation2 + $0x510] sm:$0xff]
    %v201 = vld [vmem:[#allocation2 + $0x518] sm:$0xff]
    %v202 = vld [vmem:[#allocation2 + $0x520] sm:$0xff]
    %v203 = vld [vmem:[#allocation2 + $0x528] sm:$0xff]
    %v204 = vld [vmem:[#allocation2 + $0x530] sm:$0xff]
    %v205 = vld [vmem:[#allocation2 + $0x538] sm:$0xff]
    %v206 = vld [vmem:[#allocation2 + $0x540] sm:$0xff]
    %v207 = vld [vmem:[#allocation2 + $0x548] sm:$0xff]
    %v208 = vld [vmem:[#allocation2 + $0x550] sm:$0xff]
    %v209 = vld [vmem:[#allocation2 + $0x558] sm:$0xff]
    %v210 = vld [vmem:[#allocation2 + $0x560] sm:$0xff]
    %v211 = vld [vmem:[#allocation2 + $0x568] sm:$0xff]
    %v212 = vld [vmem:[#allocation2 + $0x570] sm:$0xff]
    %v213 = vld [vmem:[#allocation2 + $0x578] sm:$0xff]
    %v214 = vld [vmem:[#allocation2 + $0x580] sm:$0xff]
    %v215 = vld [vmem:[#allocation2 + $0x588] sm:$0xff]
    %v216 = vld [vmem:[#allocation2 + $0x590] sm:$0xff]
    %v217 = vld [vmem:[#allocation2 + $0x598] sm:$0xff]
    %v218 = vld [vmem:[#allocation2 + $0x5a0] sm:$0xff]
    %v219 = vld [vmem:[#allocation2 + $0x5a8] sm:$0xff]
    %v220 = vld [vmem:[#allocation2 + $0x5b0] sm:$0xff]
    %v221 = vld [vmem:[#allocation2 + $0x5b8] sm:$0xff]
    %v222 = vld [vmem:[#allocation2 + $0x5c0] sm:$0xff]
    %v223 = vld [vmem:[#allocation2 + $0x5c8] sm:$0xff]
    %v224 = vld [vmem:[#allocation2 + $0x5d0] sm:$0xff]
    %v225 = vld [vmem:[#allocation2 + $0x5d8] sm:$0xff]
    %v226 = vld [vmem:[#allocation2 + $0x5e0] sm:$0xff]
    %v227 = vld [vmem:[#allocation2 + $0x5e8] sm:$0xff]
    %v228 = vld [vmem:[#allocation2 + $0x5f0] sm:$0xff]
    %v229 = vld [vmem:[#allocation2 + $0x5f8] sm:$0xff]
    %v230 = vld [vmem:[#allocation2 + $0x600] sm:$0xff]
    %v231 = vld [vmem:[#allocation2 + $0x608] sm:$0xff]
    %v232 = vld [vmem:[#allocation2 + $0x610] sm:$0xff]
    %v233 = vld [vmem:[#allocation2 + $0x618] sm:$0xff]
    %v234 = vld [vmem:[#allocation2 + $0x620] sm:$0xff]
    %v235 = vld [vmem:[#allocation2 + $0x628] sm:$0xff]
    %v236 = vld [vmem:[#allocation2 + $0x630] sm:$0xff]
    %v237 = vld [vmem:[#allocation2 + $0x638] sm:$0xff]
    %v238 = vld [vmem:[#allocation2 + $0x640] sm:$0xff]
    %v239 = vld [vmem:[#allocation2 + $0x648] sm:$0xff]
    %v240 = vld [vmem:[#allocation2 + $0x650] sm:$0xff]
    %v241 = vld [vmem:[#allocation2 + $0x658] sm:$0xff]
    %v242 = vld [vmem:[#allocation2 + $0x660] sm:$0xff]
    %v243 = vld [vmem:[#allocation2 + $0x668] sm:$0xff]
    %v244 = vld [vmem:[#allocation2 + $0x670] sm:$0xff]
    %v245 = vld [vmem:[#allocation2 + $0x678] sm:$0xff]
    %v246 = vld [vmem:[#allocation2 + $0x680] sm:$0xff]
    %v247 = vld [vmem:[#allocation2 + $0x688] sm:$0xff]
    %v248 = vld [vmem:[#allocation2 + $0x690] sm:$0xff]
    %v249 = vld [vmem:[#allocation2 + $0x698] sm:$0xff]
    %v250 = vld [vmem:[#allocation2 + $0x6a0] sm:$0xff]
    %v251 = vld [vmem:[#allocation2 + $0x6a8] sm:$0xff]
    %v252 = vld [vmem:[#allocation2 + $0x6b0] sm:$0xff]
    %v253 = vld [vmem:[#allocation2 + $0x6b8] sm:$0xff]
    %v254 = vld [vmem:[#allocation2 + $0x6c0] sm:$0xff]
    %v255 = vld [vmem:[#allocation2 + $0x6c8] sm:$0xff]
    %v256 = vld [vmem:[#allocation2 + $0x6d0] sm:$0xff]
    %v257 = vld [vmem:[#allocation2 + $0x6d8] sm:$0xff]
    %v258 = vld [vmem:[#allocation2 + $0x6e0] sm:$0xff]
    %v259 = vld [vmem:[#allocation2 + $0x6e8] sm:$0xff]
    %v260 = vld [vmem:[#allocation2 + $0x6f0] sm:$0xff]
    %v261 = vld [vmem:[#allocation2 + $0x6f8] sm:$0xff]
    %v262 = vld [vmem:[#allocation2 + $0x700] sm:$0xff]
    %v263 = vld [vmem:[#allocation2 + $0x708] sm:$0xff]
    %v264 = vld [vmem:[#allocation2 + $0x710] sm:$0xff]
    %v265 = vld [vmem:[#allocation2 + $0x718] sm:$0xff]
    %v266 = vld [vmem:[#allocation2 + $0x720] sm:$0xff]
    %v267 = vld [vmem:[#allocation2 + $0x728] sm:$0xff]
    %v268 = vld [vmem:[#allocation2 + $0x730] sm:$0xff]
    %v269 = vld [vmem:[#allocation2 + $0x738] sm:$0xff]
    %v270 = vld [vmem:[#allocation2 + $0x740] sm:$0xff]
    %v271 = vld [vmem:[#allocation2 + $0x748] sm:$0xff]
    %v272 = vld [vmem:[#allocation2 + $0x750] sm:$0xff]
    %v273 = vld [vmem:[#allocation2 + $0x758] sm:$0xff]
    %v274 = vld [vmem:[#allocation2 + $0x760] sm:$0xff]
    %v275 = vld [vmem:[#allocation2 + $0x768] sm:$0xff]
    %v276 = vld [vmem:[#allocation2 + $0x770] sm:$0xff]
    %v277 = vld [vmem:[#allocation2 + $0x778] sm:$0xff]
    %v278 = vld [vmem:[#allocation2 + $0x780] sm:$0xff]
    %v279 = vld [vmem:[#allocation2 + $0x788] sm:$0xff]
    %v280 = vld [vmem:[#allocation2 + $0x790] sm:$0xff]
    %v281 = vld [vmem:[#allocation2 + $0x798] sm:$0xff]
    %v282 = vld [vmem:[#allocation2 + $0x7a0] sm:$0xff]
    %v283 = vld [vmem:[#allocation2 + $0x7a8] sm:$0xff]
    %v284 = vld [vmem:[#allocation2 + $0x7b0] sm:$0xff]
    %v285 = vld [vmem:[#allocation2 + $0x7b8] sm:$0xff]
    %v286 = vld [vmem:[#allocation2 + $0x7c0] sm:$0xff]
    %v287 = vld [vmem:[#allocation2 + $0x7c8] sm:$0xff]
    %v288 = vld [vmem:[#allocation2 + $0x7d0] sm:$0xff]
    %v289 = vld [vmem:[#allocation2 + $0x7d8] sm:$0xff]
    %v290 = vld [vmem:[#allocation2 + $0x7e0] sm:$0xff]
    %v291 = vld [vmem:[#allocation2 + $0x7e8] sm:$0xff]
    %v292 = vld [vmem:[#allocation2 + $0x7f0] sm:$0xff]
    %v293 = vld [vmem:[#allocation2 + $0x7f8] sm:$0xff]
    %v294 = vld [vmem:[%s2] sm:$0xf]
    %v296 = vperm.slane %v294, 0
    %v297 = vperm.slane %v294, 1
    %v298 = vperm.slane %v294, 2
    %v299 = vperm.slane %v294, 3
    %v312 = vunpack.c.l.b16 %v30
    %v313 = vunpack.c.h.b16 %v30
    %v314 = vunpack.c.l.b16 %v31
    %v315 = vunpack.c.h.b16 %v31
    %v316 = vunpack.c.l.b16 %v32
    %v317 = vunpack.c.h.b16 %v32
    %v318 = vunpack.c.l.b16 %v33
    %v319 = vunpack.c.h.b16 %v33
    %v320 = vunpack.c.l.b16 %v34
    %v321 = vunpack.c.h.b16 %v34
    %v322 = vunpack.c.l.b16 %v35
    %v323 = vunpack.c.h.b16 %v35
    %v324 = vunpack.c.l.b16 %v36
    %v325 = vunpack.c.h.b16 %v36
    %v326 = vunpack.c.l.b16 %v37
    %v327 = vunpack.c.h.b16 %v37
    %v328 = vpack.c.b16 %v320, %v312
    %v329 = vpack.c.b16 %v321, %v313
    %v330 = vpack.c.b16 %v322, %v314
    %v331 = vpack.c.b16 %v323, %v315
    %v332 = vpack.c.b16 %v324, %v316
    %v333 = vpack.c.b16 %v325, %v317
    %v334 = vpack.c.b16 %v326, %v318
    %v335 = vpack.c.b16 %v327, %v319
    %v600 = vunpack.c.l.b16 %v38
    %v601 = vunpack.c.h.b16 %v38
    %v602 = vunpack.c.l.b16 %v39
    %v603 = vunpack.c.h.b16 %v39
    %v604 = vunpack.c.l.b16 %v40
    %v605 = vunpack.c.h.b16 %v40
    %v606 = vunpack.c.l.b16 %v41
    %v607 = vunpack.c.h.b16 %v41
    %v608 = vunpack.c.l.b16 %v42
    %v609 = vunpack.c.h.b16 %v42
    %v610 = vunpack.c.l.b16 %v43
    %v611 = vunpack.c.h.b16 %v43
    %v612 = vunpack.c.l.b16 %v44
    %v613 = vunpack.c.h.b16 %v44
    %v614 = vunpack.c.l.b16 %v45
    %v615 = vunpack.c.h.b16 %v45
    %v616 = vunpack.c.l.b16 %v46
    %v617 = vunpack.c.h.b16 %v46
    %v618 = vunpack.c.l.b16 %v47
    %v619 = vunpack.c.h.b16 %v47
    %v620 = vunpack.c.l.b16 %v48
    %v621 = vunpack.c.h.b16 %v48
    %v622 = vunpack.c.l.b16 %v49
    %v623 = vunpack.c.h.b16 %v49
    %v624 = vunpack.c.l.b16 %v50
    %v625 = vunpack.c.h.b16 %v50
    %v626 = vunpack.c.l.b16 %v51
    %v627 = vunpack.c.h.b16 %v51
    %v628 = vunpack.c.l.b16 %v52
    %v629 = vunpack.c.h.b16 %v52
    %v630 = vunpack.c.l.b16 %v53
    %v631 = vunpack.c.h.b16 %v53
    %v632 = vunpack.c.l.b16 %v54
    %v633 = vunpack.c.h.b16 %v54
    %v634 = vunpack.c.l.b16 %v55
    %v635 = vunpack.c.h.b16 %v55
    %v636 = vunpack.c.l.b16 %v56
    %v637 = vunpack.c.h.b16 %v56
    %v638 = vunpack.c.l.b16 %v57
    %v639 = vunpack.c.h.b16 %v57
    %v640 = vunpack.c.l.b16 %v58
    %v641 = vunpack.c.h.b16 %v58
    %v642 = vunpack.c.l.b16 %v59
    %v643 = vunpack.c.h.b16 %v59
    %v644 = vunpack.c.l.b16 %v60
    %v645 = vunpack.c.h.b16 %v60
    %v646 = vunpack.c.l.b16 %v61
    %v647 = vunpack.c.h.b16 %v61
    %v648 = vunpack.c.l.b16 %v62
    %v649 = vunpack.c.h.b16 %v62
    %v650 = vunpack.c.l.b16 %v63
    %v651 = vunpack.c.h.b16 %v63
    %v652 = vunpack.c.l.b16 %v64
    %v653 = vunpack.c.h.b16 %v64
    %v654 = vunpack.c.l.b16 %v65
    %v655 = vunpack.c.h.b16 %v65
    %v656 = vunpack.c.l.b16 %v66
    %v657 = vunpack.c.h.b16 %v66
    %v658 = vunpack.c.l.b16 %v67
    %v659 = vunpack.c.h.b16 %v67
    %v660 = vunpack.c.l.b16 %v68
    %v661 = vunpack.c.h.b16 %v68
    %v662 = vunpack.c.l.b16 %v69
    %v663 = vunpack.c.h.b16 %v69
    %v664 = vunpack.c.l.b16 %v70
    %v665 = vunpack.c.h.b16 %v70
    %v666 = vunpack.c.l.b16 %v71
    %v667 = vunpack.c.h.b16 %v71
    %v668 = vunpack.c.l.b16 %v72
    %v669 = vunpack.c.h.b16 %v72
    %v670 = vunpack.c.l.b16 %v73
    %v671 = vunpack.c.h.b16 %v73
    %v672 = vunpack.c.l.b16 %v74
    %v673 = vunpack.c.h.b16 %v74
    %v674 = vunpack.c.l.b16 %v75
    %v675 = vunpack.c.h.b16 %v75
    %v676 = vunpack.c.l.b16 %v76
    %v677 = vunpack.c.h.b16 %v76
    %v678 = vunpack.c.l.b16 %v77
    %v679 = vunpack.c.h.b16 %v77
    %v680 = vunpack.c.l.b16 %v78
    %v681 = vunpack.c.h.b16 %v78
    %v682 = vunpack.c.l.b16 %v79
    %v683 = vunpack.c.h.b16 %v79
    %v684 = vunpack.c.l.b16 %v80
    %v685 = vunpack.c.h.b16 %v80
    %v686 = vunpack.c.l.b16 %v81
    %v687 = vunpack.c.h.b16 %v81
    %v688 = vunpack.c.l.b16 %v82
    %v689 = vunpack.c.h.b16 %v82
    %v690 = vunpack.c.l.b16 %v83
    %v691 = vunpack.c.h.b16 %v83
    %v692 = vunpack.c.l.b16 %v84
    %v693 = vunpack.c.h.b16 %v84
    %v694 = vunpack.c.l.b16 %v85
    %v695 = vunpack.c.h.b16 %v85
    %v696 = vunpack.c.l.b16 %v86
    %v697 = vunpack.c.h.b16 %v86
    %v698 = vunpack.c.l.b16 %v87
    %v699 = vunpack.c.h.b16 %v87
    %v700 = vunpack.c.l.b16 %v88
    %v701 = vunpack.c.h.b16 %v88
    %v702 = vunpack.c.l.b16 %v89
    %v703 = vunpack.c.h.b16 %v89
    %v704 = vunpack.c.l.b16 %v90
    %v705 = vunpack.c.h.b16 %v90
    %v706 = vunpack.c.l.b16 %v91
    %v707 = vunpack.c.h.b16 %v91
    %v708 = vunpack.c.l.b16 %v92
    %v709 = vunpack.c.h.b16 %v92
    %v710 = vunpack.c.l.b16 %v93
    %v711 = vunpack.c.h.b16 %v93
    %v712 = vunpack.c.l.b16 %v94
    %v713 = vunpack.c.h.b16 %v94
    %v714 = vunpack.c.l.b16 %v95
    %v715 = vunpack.c.h.b16 %v95
    %v716 = vunpack.c.l.b16 %v96
    %v717 = vunpack.c.h.b16 %v96
    %v718 = vunpack.c.l.b16 %v97
    %v719 = vunpack.c.h.b16 %v97
    %v720 = vunpack.c.l.b16 %v98
    %v721 = vunpack.c.h.b16 %v98
    %v722 = vunpack.c.l.b16 %v99
    %v723 = vunpack.c.h.b16 %v99
    %v724 = vunpack.c.l.b16 %v100
    %v725 = vunpack.c.h.b16 %v100
    %v726 = vunpack.c.l.b16 %v101
    %v727 = vunpack.c.h.b16 %v101
    %v728 = vunpack.c.l.b16 %v102
    %v729 = vunpack.c.h.b16 %v102
    %v730 = vunpack.c.l.b16 %v103
    %v731 = vunpack.c.h.b16 %v103
    %v732 = vunpack.c.l.b16 %v104
    %v733 = vunpack.c.h.b16 %v104
    %v734 = vunpack.c.l.b16 %v105
    %v735 = vunpack.c.h.b16 %v105
    %v736 = vunpack.c.l.b16 %v106
    %v737 = vunpack.c.h.b16 %v106
    %v738 = vunpack.c.l.b16 %v107
    %v739 = vunpack.c.h.b16 %v107
    %v740 = vunpack.c.l.b16 %v108
    %v741 = vunpack.c.h.b16 %v108
    %v742 = vunpack.c.l.b16 %v109
    %v743 = vunpack.c.h.b16 %v109
    %v744 = vunpack.c.l.b16 %v110
    %v745 = vunpack.c.h.b16 %v110
    %v746 = vunpack.c.l.b16 %v111
    %v747 = vunpack.c.h.b16 %v111
    %v748 = vunpack.c.l.b16 %v112
    %v749 = vunpack.c.h.b16 %v112
    %v750 = vunpack.c.l.b16 %v113
    %v751 = vunpack.c.h.b16 %v113
    %v752 = vunpack.c.l.b16 %v114
    %v753 = vunpack.c.h.b16 %v114
    %v754 = vunpack.c.l.b16 %v115
    %v755 = vunpack.c.h.b16 %v115
    %v756 = vunpack.c.l.b16 %v116
    %v757 = vunpack.c.h.b16 %v116
    %v758 = vunpack.c.l.b16 %v117
    %v759 = vunpack.c.h.b16 %v117
    %v760 = vunpack.c.l.b16 %v118
    %v761 = vunpack.c.h.b16 %v118
    %v762 = vunpack.c.l.b16 %v119
    %v763 = vunpack.c.h.b16 %v119
    %v764 = vunpack.c.l.b16 %v120
    %v765 = vunpack.c.h.b16 %v120
    %v766 = vunpack.c.l.b16 %v121
    %v767 = vunpack.c.h.b16 %v121
    %v768 = vunpack.c.l.b16 %v122
    %v769 = vunpack.c.h.b16 %v122
    %v770 = vunpack.c.l.b16 %v123
    %v771 = vunpack.c.h.b16 %v123
    %v772 = vunpack.c.l.b16 %v124
    %v773 = vunpack.c.h.b16 %v124
    %v774 = vunpack.c.l.b16 %v125
    %v775 = vunpack.c.h.b16 %v125
    %v776 = vunpack.c.l.b16 %v126
    %v777 = vunpack.c.h.b16 %v126
    %v778 = vunpack.c.l.b16 %v127
    %v779 = vunpack.c.h.b16 %v127
    %v780 = vunpack.c.l.b16 %v128
    %v781 = vunpack.c.h.b16 %v128
    %v782 = vunpack.c.l.b16 %v129
    %v783 = vunpack.c.h.b16 %v129
    %v784 = vunpack.c.l.b16 %v130
    %v785 = vunpack.c.h.b16 %v130
    %v786 = vunpack.c.l.b16 %v131
    %v787 = vunpack.c.h.b16 %v131
    %v788 = vunpack.c.l.b16 %v132
    %v789 = vunpack.c.h.b16 %v132
    %v790 = vunpack.c.l.b16 %v133
    %v791 = vunpack.c.h.b16 %v133
    %v792 = vunpack.c.l.b16 %v134
    %v793 = vunpack.c.h.b16 %v134
    %v794 = vunpack.c.l.b16 %v135
    %v795 = vunpack.c.h.b16 %v135
    %v796 = vunpack.c.l.b16 %v136
    %v797 = vunpack.c.h.b16 %v136
    %v798 = vunpack.c.l.b16 %v137
    %v799 = vunpack.c.h.b16 %v137
    %v800 = vunpack.c.l.b16 %v138
    %v801 = vunpack.c.h.b16 %v138
    %v802 = vunpack.c.l.b16 %v139
    %v803 = vunpack.c.h.b16 %v139
    %v804 = vunpack.c.l.b16 %v140
    %v805 = vunpack.c.h.b16 %v140
    %v806 = vunpack.c.l.b16 %v141
    %v807 = vunpack.c.h.b16 %v141
    %v808 = vunpack.c.l.b16 %v142
    %v809 = vunpack.c.h.b16 %v142
    %v810 = vunpack.c.l.b16 %v143
    %v811 = vunpack.c.h.b16 %v143
    %v812 = vunpack.c.l.b16 %v144
    %v813 = vunpack.c.h.b16 %v144
    %v814 = vunpack.c.l.b16 %v145
    %v815 = vunpack.c.h.b16 %v145
    %v816 = vunpack.c.l.b16 %v146
    %v817 = vunpack.c.h.b16 %v146
    %v818 = vunpack.c.l.b16 %v147
    %v819 = vunpack.c.h.b16 %v147
    %v820 = vunpack.c.l.b16 %v148
    %v821 = vunpack.c.h.b16 %v148
    %v822 = vunpack.c.l.b16 %v149
    %v823 = vunpack.c.h.b16 %v149
    %v824 = vunpack.c.l.b16 %v150
    %v825 = vunpack.c.h.b16 %v150
    %v826 = vunpack.c.l.b16 %v151
    %v827 = vunpack.c.h.b16 %v151
    %v828 = vunpack.c.l.b16 %v152
    %v829 = vunpack.c.h.b16 %v152
    %v830 = vunpack.c.l.b16 %v153
    %v831 = vunpack.c.h.b16 %v153
    %v832 = vunpack.c.l.b16 %v154
    %v833 = vunpack.c.h.b16 %v154
    %v834 = vunpack.c.l.b16 %v155
    %v835 = vunpack.c.h.b16 %v155
    %v836 = vunpack.c.l.b16 %v156
    %v837 = vunpack.c.h.b16 %v156
    %v838 = vunpack.c.l.b16 %v157
    %v839 = vunpack.c.h.b16 %v157
    %v840 = vunpack.c.l.b16 %v158
    %v841 = vunpack.c.h.b16 %v158
    %v842 = vunpack.c.l.b16 %v159
    %v843 = vunpack.c.h.b16 %v159
    %v844 = vunpack.c.l.b16 %v160
    %v845 = vunpack.c.h.b16 %v160
    %v846 = vunpack.c.l.b16 %v161
    %v847 = vunpack.c.h.b16 %v161
    %v848 = vunpack.c.l.b16 %v162
    %v849 = vunpack.c.h.b16 %v162
    %v850 = vunpack.c.l.b16 %v163
    %v851 = vunpack.c.h.b16 %v163
    %v852 = vunpack.c.l.b16 %v164
    %v853 = vunpack.c.h.b16 %v164
    %v854 = vunpack.c.l.b16 %v165
    %v855 = vunpack.c.h.b16 %v165
    %v856 = vunpack.c.l.b16 %v166
    %v857 = vunpack.c.h.b16 %v166
    %v858 = vunpack.c.l.b16 %v167
    %v859 = vunpack.c.h.b16 %v167
    %v860 = vunpack.c.l.b16 %v168
    %v861 = vunpack.c.h.b16 %v168
    %v862 = vunpack.c.l.b16 %v169
    %v863 = vunpack.c.h.b16 %v169
    %v864 = vunpack.c.l.b16 %v170
    %v865 = vunpack.c.h.b16 %v170
    %v866 = vunpack.c.l.b16 %v171
    %v867 = vunpack.c.h.b16 %v171
    %v868 = vunpack.c.l.b16 %v172
    %v869 = vunpack.c.h.b16 %v172
    %v870 = vunpack.c.l.b16 %v173
    %v871 = vunpack.c.h.b16 %v173
    %v872 = vunpack.c.l.b16 %v174
    %v873 = vunpack.c.h.b16 %v174
    %v874 = vunpack.c.l.b16 %v175
    %v875 = vunpack.c.h.b16 %v175
    %v876 = vunpack.c.l.b16 %v176
    %v877 = vunpack.c.h.b16 %v176
    %v878 = vunpack.c.l.b16 %v177
    %v879 = vunpack.c.h.b16 %v177
    %v880 = vunpack.c.l.b16 %v178
    %v881 = vunpack.c.h.b16 %v178
    %v882 = vunpack.c.l.b16 %v179
    %v883 = vunpack.c.h.b16 %v179
    %v884 = vunpack.c.l.b16 %v180
    %v885 = vunpack.c.h.b16 %v180
    %v886 = vunpack.c.l.b16 %v181
    %v887 = vunpack.c.h.b16 %v181
    %v888 = vunpack.c.l.b16 %v182
    %v889 = vunpack.c.h.b16 %v182
    %v890 = vunpack.c.l.b16 %v183
    %v891 = vunpack.c.h.b16 %v183
    %v892 = vunpack.c.l.b16 %v184
    %v893 = vunpack.c.h.b16 %v184
    %v894 = vunpack.c.l.b16 %v185
    %v895 = vunpack.c.h.b16 %v185
    %v896 = vunpack.c.l.b16 %v186
    %v897 = vunpack.c.h.b16 %v186
    %v898 = vunpack.c.l.b16 %v187
    %v899 = vunpack.c.h.b16 %v187
    %v900 = vunpack.c.l.b16 %v188
    %v901 = vunpack.c.h.b16 %v188
    %v902 = vunpack.c.l.b16 %v189
    %v903 = vunpack.c.h.b16 %v189
    %v904 = vunpack.c.l.b16 %v190
    %v905 = vunpack.c.h.b16 %v190
    %v906 = vunpack.c.l.b16 %v191
    %v907 = vunpack.c.h.b16 %v191
    %v908 = vunpack.c.l.b16 %v192
    %v909 = vunpack.c.h.b16 %v192
    %v910 = vunpack.c.l.b16 %v193
    %v911 = vunpack.c.h.b16 %v193
    %v912 = vunpack.c.l.b16 %v194
    %v913 = vunpack.c.h.b16 %v194
    %v914 = vunpack.c.l.b16 %v195
    %v915 = vunpack.c.h.b16 %v195
    %v916 = vunpack.c.l.b16 %v196
    %v917 = vunpack.c.h.b16 %v196
    %v918 = vunpack.c.l.b16 %v197
    %v919 = vunpack.c.h.b16 %v197
    %v920 = vunpack.c.l.b16 %v198
    %v921 = vunpack.c.h.b16 %v198
    %v922 = vunpack.c.l.b16 %v199
    %v923 = vunpack.c.h.b16 %v199
    %v924 = vunpack.c.l.b16 %v200
    %v925 = vunpack.c.h.b16 %v200
    %v926 = vunpack.c.l.b16 %v201
    %v927 = vunpack.c.h.b16 %v201
    %v928 = vunpack.c.l.b16 %v202
    %v929 = vunpack.c.h.b16 %v202
    %v930 = vunpack.c.l.b16 %v203
    %v931 = vunpack.c.h.b16 %v203
    %v932 = vunpack.c.l.b16 %v204
    %v933 = vunpack.c.h.b16 %v204
    %v934 = vunpack.c.l.b16 %v205
    %v935 = vunpack.c.h.b16 %v205
    %v936 = vunpack.c.l.b16 %v206
    %v937 = vunpack.c.h.b16 %v206
    %v938 = vunpack.c.l.b16 %v207
    %v939 = vunpack.c.h.b16 %v207
    %v940 = vunpack.c.l.b16 %v208
    %v941 = vunpack.c.h.b16 %v208
    %v942 = vunpack.c.l.b16 %v209
    %v943 = vunpack.c.h.b16 %v209
    %v944 = vunpack.c.l.b16 %v210
    %v945 = vunpack.c.h.b16 %v210
    %v946 = vunpack.c.l.b16 %v211
    %v947 = vunpack.c.h.b16 %v211
    %v948 = vunpack.c.l.b16 %v212
    %v949 = vunpack.c.h.b16 %v212
    %v950 = vunpack.c.l.b16 %v213
    %v951 = vunpack.c.h.b16 %v213
    %v952 = vunpack.c.l.b16 %v214
    %v953 = vunpack.c.h.b16 %v214
    %v954 = vunpack.c.l.b16 %v215
    %v955 = vunpack.c.h.b16 %v215
    %v956 = vunpack.c.l.b16 %v216
    %v957 = vunpack.c.h.b16 %v216
    %v958 = vunpack.c.l.b16 %v217
    %v959 = vunpack.c.h.b16 %v217
    %v960 = vunpack.c.l.b16 %v218
    %v961 = vunpack.c.h.b16 %v218
    %v962 = vunpack.c.l.b16 %v219
    %v963 = vunpack.c.h.b16 %v219
    %v964 = vunpack.c.l.b16 %v220
    %v965 = vunpack.c.h.b16 %v220
    %v966 = vunpack.c.l.b16 %v221
    %v967 = vunpack.c.h.b16 %v221
    %v968 = vunpack.c.l.b16 %v222
    %v969 = vunpack.c.h.b16 %v222
    %v970 = vunpack.c.l.b16 %v223
    %v971 = vunpack.c.h.b16 %v223
    %v972 = vunpack.c.l.b16 %v224
    %v973 = vunpack.c.h.b16 %v224
    %v974 = vunpack.c.l.b16 %v225
    %v975 = vunpack.c.h.b16 %v225
    %v976 = vunpack.c.l.b16 %v226
    %v977 = vunpack.c.h.b16 %v226
    %v978 = vunpack.c.l.b16 %v227
    %v979 = vunpack.c.h.b16 %v227
    %v980 = vunpack.c.l.b16 %v228
    %v981 = vunpack.c.h.b16 %v228
    %v982 = vunpack.c.l.b16 %v229
    %v983 = vunpack.c.h.b16 %v229
    %v984 = vunpack.c.l.b16 %v230
    %v985 = vunpack.c.h.b16 %v230
    %v986 = vunpack.c.l.b16 %v231
    %v987 = vunpack.c.h.b16 %v231
    %v988 = vunpack.c.l.b16 %v232
    %v989 = vunpack.c.h.b16 %v232
    %v990 = vunpack.c.l.b16 %v233
    %v991 = vunpack.c.h.b16 %v233
    %v992 = vunpack.c.l.b16 %v234
    %v993 = vunpack.c.h.b16 %v234
    %v994 = vunpack.c.l.b16 %v235
    %v995 = vunpack.c.h.b16 %v235
    %v996 = vunpack.c.l.b16 %v236
    %v997 = vunpack.c.h.b16 %v236
    %v998 = vunpack.c.l.b16 %v237
    %v999 = vunpack.c.h.b16 %v237
    %v1000 = vunpack.c.l.b16 %v238
    %v1001 = vunpack.c.h.b16 %v238
    %v1002 = vunpack.c.l.b16 %v239
    %v1003 = vunpack.c.h.b16 %v239
    %v1004 = vunpack.c.l.b16 %v240
    %v1005 = vunpack.c.h.b16 %v240
    %v1006 = vunpack.c.l.b16 %v241
    %v1007 = vunpack.c.h.b16 %v241
    %v1008 = vunpack.c.l.b16 %v242
    %v1009 = vunpack.c.h.b16 %v242
    %v1010 = vunpack.c.l.b16 %v243
    %v1011 = vunpack.c.h.b16 %v243
    %v1012 = vunpack.c.l.b16 %v244
    %v1013 = vunpack.c.h.b16 %v244
    %v1014 = vunpack.c.l.b16 %v245
    %v1015 = vunpack.c.h.b16 %v245
    %v1016 = vunpack.c.l.b16 %v246
    %v1017 = vunpack.c.h.b16 %v246
    %v1018 = vunpack.c.l.b16 %v247
    %v1019 = vunpack.c.h.b16 %v247
    %v1020 = vunpack.c.l.b16 %v248
    %v1021 = vunpack.c.h.b16 %v248
    %v1022 = vunpack.c.l.b16 %v249
    %v1023 = vunpack.c.h.b16 %v249
    %v1024 = vunpack.c.l.b16 %v250
    %v1025 = vunpack.c.h.b16 %v250
    %v1026 = vunpack.c.l.b16 %v251
    %v1027 = vunpack.c.h.b16 %v251
    %v1028 = vunpack.c.l.b16 %v252
    %v1029 = vunpack.c.h.b16 %v252
    %v1030 = vunpack.c.l.b16 %v253
    %v1031 = vunpack.c.h.b16 %v253
    %v1032 = vunpack.c.l.b16 %v254
    %v1033 = vunpack.c.h.b16 %v254
    %v1034 = vunpack.c.l.b16 %v255
    %v1035 = vunpack.c.h.b16 %v255
    %v1036 = vunpack.c.l.b16 %v256
    %v1037 = vunpack.c.h.b16 %v256
    %v1038 = vunpack.c.l.b16 %v257
    %v1039 = vunpack.c.h.b16 %v257
    %v1040 = vunpack.c.l.b16 %v258
    %v1041 = vunpack.c.h.b16 %v258
    %v1042 = vunpack.c.l.b16 %v259
    %v1043 = vunpack.c.h.b16 %v259
    %v1044 = vunpack.c.l.b16 %v260
    %v1045 = vunpack.c.h.b16 %v260
    %v1046 = vunpack.c.l.b16 %v261
    %v1047 = vunpack.c.h.b16 %v261
    %v1048 = vunpack.c.l.b16 %v262
    %v1049 = vunpack.c.h.b16 %v262
    %v1050 = vunpack.c.l.b16 %v263
    %v1051 = vunpack.c.h.b16 %v263
    %v1052 = vunpack.c.l.b16 %v264
    %v1053 = vunpack.c.h.b16 %v264
    %v1054 = vunpack.c.l.b16 %v265
    %v1055 = vunpack.c.h.b16 %v265
    %v1056 = vunpack.c.l.b16 %v266
    %v1057 = vunpack.c.h.b16 %v266
    %v1058 = vunpack.c.l.b16 %v267
    %v1059 = vunpack.c.h.b16 %v267
    %v1060 = vunpack.c.l.b16 %v268
    %v1061 = vunpack.c.h.b16 %v268
    %v1062 = vunpack.c.l.b16 %v269
    %v1063 = vunpack.c.h.b16 %v269
    %v1064 = vunpack.c.l.b16 %v270
    %v1065 = vunpack.c.h.b16 %v270
    %v1066 = vunpack.c.l.b16 %v271
    %v1067 = vunpack.c.h.b16 %v271
    %v1068 = vunpack.c.l.b16 %v272
    %v1069 = vunpack.c.h.b16 %v272
    %v1070 = vunpack.c.l.b16 %v273
    %v1071 = vunpack.c.h.b16 %v273
    %v1072 = vunpack.c.l.b16 %v274
    %v1073 = vunpack.c.h.b16 %v274
    %v1074 = vunpack.c.l.b16 %v275
    %v1075 = vunpack.c.h.b16 %v275
    %v1076 = vunpack.c.l.b16 %v276
    %v1077 = vunpack.c.h.b16 %v276
    %v1078 = vunpack.c.l.b16 %v277
    %v1079 = vunpack.c.h.b16 %v277
    %v1080 = vunpack.c.l.b16 %v278
    %v1081 = vunpack.c.h.b16 %v278
    %v1082 = vunpack.c.l.b16 %v279
    %v1083 = vunpack.c.h.b16 %v279
    %v1084 = vunpack.c.l.b16 %v280
    %v1085 = vunpack.c.h.b16 %v280
    %v1086 = vunpack.c.l.b16 %v281
    %v1087 = vunpack.c.h.b16 %v281
    %v1088 = vunpack.c.l.b16 %v282
    %v1089 = vunpack.c.h.b16 %v282
    %v1090 = vunpack.c.l.b16 %v283
    %v1091 = vunpack.c.h.b16 %v283
    %v1092 = vunpack.c.l.b16 %v284
    %v1093 = vunpack.c.h.b16 %v284
    %v1094 = vunpack.c.l.b16 %v285
    %v1095 = vunpack.c.h.b16 %v285
    %v1096 = vunpack.c.l.b16 %v286
    %v1097 = vunpack.c.h.b16 %v286
    %v1098 = vunpack.c.l.b16 %v287
    %v1099 = vunpack.c.h.b16 %v287
    %v1100 = vunpack.c.l.b16 %v288
    %v1101 = vunpack.c.h.b16 %v288
    %v1102 = vunpack.c.l.b16 %v289
    %v1103 = vunpack.c.h.b16 %v289
    %v1104 = vunpack.c.l.b16 %v290
    %v1105 = vunpack.c.h.b16 %v290
    %v1106 = vunpack.c.l.b16 %v291
    %v1107 = vunpack.c.h.b16 %v291
    %v1108 = vunpack.c.l.b16 %v292
    %v1109 = vunpack.c.h.b16 %v292
    %v1110 = vunpack.c.l.b16 %v293
    %v1111 = vunpack.c.h.b16 %v293
    %v1112 = vpack.c.b16 %v604, %v600
    %v1113 = vpack.c.b16 %v605, %v601
    %v1114 = vpack.c.b16 %v606, %v602
    %v1115 = vpack.c.b16 %v607, %v603
    %v1116 = vpack.c.b16 %v612, %v608
    %v1117 = vpack.c.b16 %v613, %v609
    %v1118 = vpack.c.b16 %v614, %v610
    %v1119 = vpack.c.b16 %v615, %v611
    %v1120 = vpack.c.b16 %v620, %v616
    %v1121 = vpack.c.b16 %v621, %v617
    %v1122 = vpack.c.b16 %v622, %v618
    %v1123 = vpack.c.b16 %v623, %v619
    %v1124 = vpack.c.b16 %v628, %v624
    %v1125 = vpack.c.b16 %v629, %v625
    %v1126 = vpack.c.b16 %v630, %v626
    %v1127 = vpack.c.b16 %v631, %v627
    %v1128 = vpack.c.b16 %v636, %v632
    %v1129 = vpack.c.b16 %v637, %v633
    %v1130 = vpack.c.b16 %v638, %v634
    %v1131 = vpack.c.b16 %v639, %v635
    %v1132 = vpack.c.b16 %v644, %v640
    %v1133 = vpack.c.b16 %v645, %v641
    %v1134 = vpack.c.b16 %v646, %v642
    %v1135 = vpack.c.b16 %v647, %v643
    %v1136 = vpack.c.b16 %v652, %v648
    %v1137 = vpack.c.b16 %v653, %v649
    %v1138 = vpack.c.b16 %v654, %v650
    %v1139 = vpack.c.b16 %v655, %v651
    %v1140 = vpack.c.b16 %v660, %v656
    %v1141 = vpack.c.b16 %v661, %v657
    %v1142 = vpack.c.b16 %v662, %v658
    %v1143 = vpack.c.b16 %v663, %v659
    %v1144 = vpack.c.b16 %v668, %v664
    %v1145 = vpack.c.b16 %v669, %v665
    %v1146 = vpack.c.b16 %v670, %v666
    %v1147 = vpack.c.b16 %v671, %v667
    %v1148 = vpack.c.b16 %v676, %v672
    %v1149 = vpack.c.b16 %v677, %v673
    %v1150 = vpack.c.b16 %v678, %v674
    %v1151 = vpack.c.b16 %v679, %v675
    %v1152 = vpack.c.b16 %v684, %v680
    %v1153 = vpack.c.b16 %v685, %v681
    %v1154 = vpack.c.b16 %v686, %v682
    %v1155 = vpack.c.b16 %v687, %v683
    %v1156 = vpack.c.b16 %v692, %v688
    %v1157 = vpack.c.b16 %v693, %v689
    %v1158 = vpack.c.b16 %v694, %v690
    %v1159 = vpack.c.b16 %v695, %v691
    %v1160 = vpack.c.b16 %v700, %v696
    %v1161 = vpack.c.b16 %v701, %v697
    %v1162 = vpack.c.b16 %v702, %v698
    %v1163 = vpack.c.b16 %v703, %v699
    %v1164 = vpack.c.b16 %v708, %v704
    %v1165 = vpack.c.b16 %v709, %v705
    %v1166 = vpack.c.b16 %v710, %v706
    %v1167 = vpack.c.b16 %v711, %v707
    %v1168 = vpack.c.b16 %v716, %v712
    %v1169 = vpack.c.b16 %v717, %v713
    %v1170 = vpack.c.b16 %v718, %v714
    %v1171 = vpack.c.b16 %v719, %v715
    %v1172 = vpack.c.b16 %v724, %v720
    %v1173 = vpack.c.b16 %v725, %v721
    %v1174 = vpack.c.b16 %v726, %v722
    %v1175 = vpack.c.b16 %v727, %v723
    %v1176 = vpack.c.b16 %v732, %v728
    %v1177 = vpack.c.b16 %v733, %v729
    %v1178 = vpack.c.b16 %v734, %v730
    %v1179 = vpack.c.b16 %v735, %v731
    %v1180 = vpack.c.b16 %v740, %v736
    %v1181 = vpack.c.b16 %v741, %v737
    %v1182 = vpack.c.b16 %v742, %v738
    %v1183 = vpack.c.b16 %v743, %v739
    %v1184 = vpack.c.b16 %v748, %v744
    %v1185 = vpack.c.b16 %v749, %v745
    %v1186 = vpack.c.b16 %v750, %v746
    %v1187 = vpack.c.b16 %v751, %v747
    %v1188 = vpack.c.b16 %v756, %v752
    %v1189 = vpack.c.b16 %v757, %v753
    %v1190 = vpack.c.b16 %v758, %v754
    %v1191 = vpack.c.b16 %v759, %v755
    %v1192 = vpack.c.b16 %v764, %v760
    %v1193 = vpack.c.b16 %v765, %v761
    %v1194 = vpack.c.b16 %v766, %v762
    %v1195 = vpack.c.b16 %v767, %v763
    %v1196 = vpack.c.b16 %v772, %v768
    %v1197 = vpack.c.b16 %v773, %v769
    %v1198 = vpack.c.b16 %v774, %v770
    %v1199 = vpack.c.b16 %v775, %v771
    %v1200 = vpack.c.b16 %v780, %v776
    %v1201 = vpack.c.b16 %v781, %v777
    %v1202 = vpack.c.b16 %v782, %v778
    %v1203 = vpack.c.b16 %v783, %v779
    %v1204 = vpack.c.b16 %v788, %v784
    %v1205 = vpack.c.b16 %v789, %v785
    %v1206 = vpack.c.b16 %v790, %v786
    %v1207 = vpack.c.b16 %v791, %v787
    %v1208 = vpack.c.b16 %v796, %v792
    %v1209 = vpack.c.b16 %v797, %v793
    %v1210 = vpack.c.b16 %v798, %v794
    %v1211 = vpack.c.b16 %v799, %v795
    %v1212 = vpack.c.b16 %v804, %v800
    %v1213 = vpack.c.b16 %v805, %v801
    %v1214 = vpack.c.b16 %v806, %v802
    %v1215 = vpack.c.b16 %v807, %v803
    %v1216 = vpack.c.b16 %v812, %v808
    %v1217 = vpack.c.b16 %v813, %v809
    %v1218 = vpack.c.b16 %v814, %v810
    %v1219 = vpack.c.b16 %v815, %v811
    %v1220 = vpack.c.b16 %v820, %v816
    %v1221 = vpack.c.b16 %v821, %v817
    %v1222 = vpack.c.b16 %v822, %v818
    %v1223 = vpack.c.b16 %v823, %v819
    %v1224 = vpack.c.b16 %v828, %v824
    %v1225 = vpack.c.b16 %v829, %v825
    %v1226 = vpack.c.b16 %v830, %v826
    %v1227 = vpack.c.b16 %v831, %v827
    %v1228 = vpack.c.b16 %v836, %v832
    %v1229 = vpack.c.b16 %v837, %v833
    %v1230 = vpack.c.b16 %v838, %v834
    %v1231 = vpack.c.b16 %v839, %v835
    %v1232 = vpack.c.b16 %v844, %v840
    %v1233 = vpack.c.b16 %v845, %v841
    %v1234 = vpack.c.b16 %v846, %v842
    %v1235 = vpack.c.b16 %v847, %v843
    %v1236 = vpack.c.b16 %v852, %v848
    %v1237 = vpack.c.b16 %v853, %v849
    %v1238 = vpack.c.b16 %v854, %v850
    %v1239 = vpack.c.b16 %v855, %v851
    %v1240 = vpack.c.b16 %v860, %v856
    %v1241 = vpack.c.b16 %v861, %v857
    %v1242 = vpack.c.b16 %v862, %v858
    %v1243 = vpack.c.b16 %v863, %v859
    %v1244 = vpack.c.b16 %v868, %v864
    %v1245 = vpack.c.b16 %v869, %v865
    %v1246 = vpack.c.b16 %v870, %v866
    %v1247 = vpack.c.b16 %v871, %v867
    %v1248 = vpack.c.b16 %v876, %v872
    %v1249 = vpack.c.b16 %v877, %v873
    %v1250 = vpack.c.b16 %v878, %v874
    %v1251 = vpack.c.b16 %v879, %v875
    %v1252 = vpack.c.b16 %v884, %v880
    %v1253 = vpack.c.b16 %v885, %v881
    %v1254 = vpack.c.b16 %v886, %v882
    %v1255 = vpack.c.b16 %v887, %v883
    %v1256 = vpack.c.b16 %v892, %v888
    %v1257 = vpack.c.b16 %v893, %v889
    %v1258 = vpack.c.b16 %v894, %v890
    %v1259 = vpack.c.b16 %v895, %v891
    %v1260 = vpack.c.b16 %v900, %v896
    %v1261 = vpack.c.b16 %v901, %v897
    %v1262 = vpack.c.b16 %v902, %v898
    %v1263 = vpack.c.b16 %v903, %v899
    %v1264 = vpack.c.b16 %v908, %v904
    %v1265 = vpack.c.b16 %v909, %v905
    %v1266 = vpack.c.b16 %v910, %v906
    %v1267 = vpack.c.b16 %v911, %v907
    %v1268 = vpack.c.b16 %v916, %v912
    %v1269 = vpack.c.b16 %v917, %v913
    %v1270 = vpack.c.b16 %v918, %v914
    %v1271 = vpack.c.b16 %v919, %v915
    %v1272 = vpack.c.b16 %v924, %v920
    %v1273 = vpack.c.b16 %v925, %v921
    %v1274 = vpack.c.b16 %v926, %v922
    %v1275 = vpack.c.b16 %v927, %v923
    %v1276 = vpack.c.b16 %v932, %v928
    %v1277 = vpack.c.b16 %v933, %v929
    %v1278 = vpack.c.b16 %v934, %v930
    %v1279 = vpack.c.b16 %v935, %v931
    %v1280 = vpack.c.b16 %v940, %v936
    %v1281 = vpack.c.b16 %v941, %v937
    %v1282 = vpack.c.b16 %v942, %v938
    %v1283 = vpack.c.b16 %v943, %v939
    %v1284 = vpack.c.b16 %v948, %v944
    %v1285 = vpack.c.b16 %v949, %v945
    %v1286 = vpack.c.b16 %v950, %v946
    %v1287 = vpack.c.b16 %v951, %v947
    %v1288 = vpack.c.b16 %v956, %v952
    %v1289 = vpack.c.b16 %v957, %v953
    %v1290 = vpack.c.b16 %v958, %v954
    %v1291 = vpack.c.b16 %v959, %v955
    %v1292 = vpack.c.b16 %v964, %v960
    %v1293 = vpack.c.b16 %v965, %v961
    %v1294 = vpack.c.b16 %v966, %v962
    %v1295 = vpack.c.b16 %v967, %v963
    %v1296 = vpack.c.b16 %v972, %v968
    %v1297 = vpack.c.b16 %v973, %v969
    %v1298 = vpack.c.b16 %v974, %v970
    %v1299 = vpack.c.b16 %v975, %v971
    %v1300 = vpack.c.b16 %v980, %v976
    %v1301 = vpack.c.b16 %v981, %v977
    %v1302 = vpack.c.b16 %v982, %v978
    %v1303 = vpack.c.b16 %v983, %v979
    %v1304 = vpack.c.b16 %v988, %v984
    %v1305 = vpack.c.b16 %v989, %v985
    %v1306 = vpack.c.b16 %v990, %v986
    %v1307 = vpack.c.b16 %v991, %v987
    %v1308 = vpack.c.b16 %v996, %v992
    %v1309 = vpack.c.b16 %v997, %v993
    %v1310 = vpack.c.b16 %v998, %v994
    %v1311 = vpack.c.b16 %v999, %v995
    %v1312 = vpack.c.b16 %v1004, %v1000
    %v1313 = vpack.c.b16 %v1005, %v1001
    %v1314 = vpack.c.b16 %v1006, %v1002
    %v1315 = vpack.c.b16 %v1007, %v1003
    %v1316 = vpack.c.b16 %v1012, %v1008
    %v1317 = vpack.c.b16 %v1013, %v1009
    %v1318 = vpack.c.b16 %v1014, %v1010
    %v1319 = vpack.c.b16 %v1015, %v1011
    %v1320 = vpack.c.b16 %v1020, %v1016
    %v1321 = vpack.c.b16 %v1021, %v1017
    %v1322 = vpack.c.b16 %v1022, %v1018
    %v1323 = vpack.c.b16 %v1023, %v1019
    %v1324 = vpack.c.b16 %v1028, %v1024
    %v1325 = vpack.c.b16 %v1029, %v1025
    %v1326 = vpack.c.b16 %v1030, %v1026
    %v1327 = vpack.c.b16 %v1031, %v1027
    %v1328 = vpack.c.b16 %v1036, %v1032
    %v1329 = vpack.c.b16 %v1037, %v1033
    %v1330 = vpack.c.b16 %v1038, %v1034
    %v1331 = vpack.c.b16 %v1039, %v1035
    %v1332 = vpack.c.b16 %v1044, %v1040
    %v1333 = vpack.c.b16 %v1045, %v1041
    %v1334 = vpack.c.b16 %v1046, %v1042
    %v1335 = vpack.c.b16 %v1047, %v1043
    %v1336 = vpack.c.b16 %v1052, %v1048
    %v1337 = vpack.c.b16 %v1053, %v1049
    %v1338 = vpack.c.b16 %v1054, %v1050
    %v1339 = vpack.c.b16 %v1055, %v1051
    %v1340 = vpack.c.b16 %v1060, %v1056
    %v1341 = vpack.c.b16 %v1061, %v1057
    %v1342 = vpack.c.b16 %v1062, %v1058
    %v1343 = vpack.c.b16 %v1063, %v1059
    %v1344 = vpack.c.b16 %v1068, %v1064
    %v1345 = vpack.c.b16 %v1069, %v1065
    %v1346 = vpack.c.b16 %v1070, %v1066
    %v1347 = vpack.c.b16 %v1071, %v1067
    %v1348 = vpack.c.b16 %v1076, %v1072
    %v1349 = vpack.c.b16 %v1077, %v1073
    %v1350 = vpack.c.b16 %v1078, %v1074
    %v1351 = vpack.c.b16 %v1079, %v1075
    %v1352 = vpack.c.b16 %v1084, %v1080
    %v1353 = vpack.c.b16 %v1085, %v1081
    %v1354 = vpack.c.b16 %v1086, %v1082
    %v1355 = vpack.c.b16 %v1087, %v1083
    %v1356 = vpack.c.b16 %v1092, %v1088
    %v1357 = vpack.c.b16 %v1093, %v1089
    %v1358 = vpack.c.b16 %v1094, %v1090
    %v1359 = vpack.c.b16 %v1095, %v1091
    %v1360 = vpack.c.b16 %v1100, %v1096
    %v1361 = vpack.c.b16 %v1101, %v1097
    %v1362 = vpack.c.b16 %v1102, %v1098
    %v1363 = vpack.c.b16 %v1103, %v1099
    %v1364 = vpack.c.b16 %v1108, %v1104
    %v1365 = vpack.c.b16 %v1109, %v1105
    %v1366 = vpack.c.b16 %v1110, %v1106
    %v1367 = vpack.c.b16 %v1111, %v1107
    %1624 = vmatpush.bf16.msra.mxu0 %v1140
    %1625 = vmatpush.bf16.msra.mxu0 %v1136
    %1626 = vmatpush.bf16.msra.mxu0 %v1132
    %1627 = vmatpush.bf16.msra.mxu0 %v1128
    %1628 = vmatpush.bf16.msra.mxu0 %v1124
    %1629 = vmatpush.bf16.msra.mxu0 %v1120
    %1630 = vmatpush.bf16.msra.mxu0 %v1116
    %1631 = vmatpush.bf16.msra.mxu0 %v1112
    %1632 = vmatmul.bf16.gmra.mxu0 %v328
    %v1633 = vpop.f32.mrf.mxu0
    %v1634 = vadd.f32 %v296, %v1633
    %v1635 = vpop.f32.mrf.mxu0
    %v1636 = vadd.f32 %v296, %v1635
    %1637 = vdwg.mxu0
    %1638 = vmatpush.bf16.msra.mxu0 %v1172
    %1639 = vmatpush.bf16.msra.mxu0 %v1168
    %1640 = vmatpush.bf16.msra.mxu0 %v1164
    %1641 = vmatpush.bf16.msra.mxu0 %v1160
    %1642 = vmatpush.bf16.msra.mxu0 %v1156
    %1643 = vmatpush.bf16.msra.mxu0 %v1152
    %1644 = vmatpush.bf16.msra.mxu0 %v1148
    %1645 = vmatpush.bf16.msra.mxu0 %v1144
    %1646 = vmatmul.bf16.gmra.mxu0 %v329
    %v1647 = vpop.f32.mrf.mxu0
    %v1648 = vadd.f32 %v1634, %v1647
    %v1649 = vpop.f32.mrf.mxu0
    %v1650 = vadd.f32 %v1636, %v1649
    %1651 = vdwg.mxu0
    %1652 = vmatpush.bf16.msra.mxu0 %v1204
    %1653 = vmatpush.bf16.msra.mxu0 %v1200
    %1654 = vmatpush.bf16.msra.mxu0 %v1196
    %1655 = vmatpush.bf16.msra.mxu0 %v1192
    %1656 = vmatpush.bf16.msra.mxu0 %v1188
    %1657 = vmatpush.bf16.msra.mxu0 %v1184
    %1658 = vmatpush.bf16.msra.mxu0 %v1180
    %1659 = vmatpush.bf16.msra.mxu0 %v1176
    %1660 = vmatmul.bf16.gmra.mxu0 %v330
    %v1661 = vpop.f32.mrf.mxu0
    %v1662 = vadd.f32 %v1648, %v1661
    %v1663 = vpop.f32.mrf.mxu0
    %v1664 = vadd.f32 %v1650, %v1663
    %1665 = vdwg.mxu0
    %1666 = vmatpush.bf16.msra.mxu0 %v1236
    %1667 = vmatpush.bf16.msra.mxu0 %v1232
    %1668 = vmatpush.bf16.msra.mxu0 %v1228
    %1669 = vmatpush.bf16.msra.mxu0 %v1224
    %1670 = vmatpush.bf16.msra.mxu0 %v1220
    %1671 = vmatpush.bf16.msra.mxu0 %v1216
    %1672 = vmatpush.bf16.msra.mxu0 %v1212
    %1673 = vmatpush.bf16.msra.mxu0 %v1208
    %1674 = vmatmul.bf16.gmra.mxu0 %v331
    %v1675 = vpop.f32.mrf.mxu0
    %v1676 = vadd.f32 %v1662, %v1675
    %v1677 = vpop.f32.mrf.mxu0
    %v1678 = vadd.f32 %v1664, %v1677
    %1679 = vdwg.mxu0
    %1680 = vmatpush.bf16.msra.mxu0 %v1268
    %1681 = vmatpush.bf16.msra.mxu0 %v1264
    %1682 = vmatpush.bf16.msra.mxu0 %v1260
    %1683 = vmatpush.bf16.msra.mxu0 %v1256
    %1684 = vmatpush.bf16.msra.mxu0 %v1252
    %1685 = vmatpush.bf16.msra.mxu0 %v1248
    %1686 = vmatpush.bf16.msra.mxu0 %v1244
    %1687 = vmatpush.bf16.msra.mxu0 %v1240
    %1688 = vmatmul.bf16.gmra.mxu0 %v332
    %v1689 = vpop.f32.mrf.mxu0
    %v1690 = vadd.f32 %v1676, %v1689
    %v1691 = vpop.f32.mrf.mxu0
    %v1692 = vadd.f32 %v1678, %v1691
    %1693 = vdwg.mxu0
    %1694 = vmatpush.bf16.msra.mxu0 %v1300
    %1695 = vmatpush.bf16.msra.mxu0 %v1296
    %1696 = vmatpush.bf16.msra.mxu0 %v1292
    %1697 = vmatpush.bf16.msra.mxu0 %v1288
    %1698 = vmatpush.bf16.msra.mxu0 %v1284
    %1699 = vmatpush.bf16.msra.mxu0 %v1280
    %1700 = vmatpush.bf16.msra.mxu0 %v1276
    %1701 = vmatpush.bf16.msra.mxu0 %v1272
    %1702 = vmatmul.bf16.gmra.mxu0 %v333
    %v1703 = vpop.f32.mrf.mxu0
    %v1704 = vadd.f32 %v1690, %v1703
    %v1705 = vpop.f32.mrf.mxu0
    %v1706 = vadd.f32 %v1692, %v1705
    %1707 = vdwg.mxu0
    %1708 = vmatpush.bf16.msra.mxu0 %v1332
    %1709 = vmatpush.bf16.msra.mxu0 %v1328
    %1710 = vmatpush.bf16.msra.mxu0 %v1324
    %1711 = vmatpush.bf16.msra.mxu0 %v1320
    %1712 = vmatpush.bf16.msra.mxu0 %v1316
    %1713 = vmatpush.bf16.msra.mxu0 %v1312
    %1714 = vmatpush.bf16.msra.mxu0 %v1308
    %1715 = vmatpush.bf16.msra.mxu0 %v1304
    %1716 = vmatmul.bf16.gmra.mxu0 %v334
    %v1717 = vpop.f32.mrf.mxu0
    %v1718 = vadd.f32 %v1704, %v1717
    %v1719 = vpop.f32.mrf.mxu0
    %v1720 = vadd.f32 %v1706, %v1719
    %1721 = vdwg.mxu0
    %1722 = vmatpush.bf16.msra.mxu0 %v1364
    %1723 = vmatpush.bf16.msra.mxu0 %v1360
    %1724 = vmatpush.bf16.msra.mxu0 %v1356
    %1725 = vmatpush.bf16.msra.mxu0 %v1352
    %1726 = vmatpush.bf16.msra.mxu0 %v1348
    %1727 = vmatpush.bf16.msra.mxu0 %v1344
    %1728 = vmatpush.bf16.msra.mxu0 %v1340
    %1729 = vmatpush.bf16.msra.mxu0 %v1336
    %1730 = vmatmul.bf16.gmra.mxu0 %v335
    %v1731 = vpop.f32.mrf.mxu0
    %v1732 = vadd.f32 %v1718, %v1731
    %v1733 = vpop.f32.mrf.mxu0
    %v1734 = vadd.f32 %v1720, %v1733
    %1735 = vdwg.mxu0
    %1736 = vmatpush.bf16.msra.mxu0 %v1141
    %1737 = vmatpush.bf16.msra.mxu0 %v1137
    %1738 = vmatpush.bf16.msra.mxu0 %v1133
    %1739 = vmatpush.bf16.msra.mxu0 %v1129
    %1740 = vmatpush.bf16.msra.mxu0 %v1125
    %1741 = vmatpush.bf16.msra.mxu0 %v1121
    %1742 = vmatpush.bf16.msra.mxu0 %v1117
    %1743 = vmatpush.bf16.msra.mxu0 %v1113
    %1744 = vmatmul.bf16.gmra.mxu0 %v328
    %v1745 = vpop.f32.mrf.mxu0
    %v1746 = vadd.f32 %v297, %v1745
    %v1747 = vpop.f32.mrf.mxu0
    %v1748 = vadd.f32 %v297, %v1747
    %1749 = vdwg.mxu0
    %1750 = vmatpush.bf16.msra.mxu0 %v1173
    %1751 = vmatpush.bf16.msra.mxu0 %v1169
    %1752 = vmatpush.bf16.msra.mxu0 %v1165
    %1753 = vmatpush.bf16.msra.mxu0 %v1161
    %1754 = vmatpush.bf16.msra.mxu0 %v1157
    %1755 = vmatpush.bf16.msra.mxu0 %v1153
    %1756 = vmatpush.bf16.msra.mxu0 %v1149
    %1757 = vmatpush.bf16.msra.mxu0 %v1145
    %1758 = vmatmul.bf16.gmra.mxu0 %v329
    %v1759 = vpop.f32.mrf.mxu0
    %v1760 = vadd.f32 %v1746, %v1759
    %v1761 = vpop.f32.mrf.mxu0
    %v1762 = vadd.f32 %v1748, %v1761
    %1763 = vdwg.mxu0
    %1764 = vmatpush.bf16.msra.mxu0 %v1205
    %1765 = vmatpush.bf16.msra.mxu0 %v1201
    %1766 = vmatpush.bf16.msra.mxu0 %v1197
    %1767 = vmatpush.bf16.msra.mxu0 %v1193
    %1768 = vmatpush.bf16.msra.mxu0 %v1189
    %1769 = vmatpush.bf16.msra.mxu0 %v1185
    %1770 = vmatpush.bf16.msra.mxu0 %v1181
    %1771 = vmatpush.bf16.msra.mxu0 %v1177
    %1772 = vmatmul.bf16.gmra.mxu0 %v330
    %v1773 = vpop.f32.mrf.mxu0
    %v1774 = vadd.f32 %v1760, %v1773
    %v1775 = vpop.f32.mrf.mxu0
    %v1776 = vadd.f32 %v1762, %v1775
    %1777 = vdwg.mxu0
    %1778 = vmatpush.bf16.msra.mxu0 %v1237
    %1779 = vmatpush.bf16.msra.mxu0 %v1233
    %1780 = vmatpush.bf16.msra.mxu0 %v1229
    %1781 = vmatpush.bf16.msra.mxu0 %v1225
    %1782 = vmatpush.bf16.msra.mxu0 %v1221
    %1783 = vmatpush.bf16.msra.mxu0 %v1217
    %1784 = vmatpush.bf16.msra.mxu0 %v1213
    %1785 = vmatpush.bf16.msra.mxu0 %v1209
    %1786 = vmatmul.bf16.gmra.mxu0 %v331
    %v1787 = vpop.f32.mrf.mxu0
    %v1788 = vadd.f32 %v1774, %v1787
    %v1789 = vpop.f32.mrf.mxu0
    %v1790 = vadd.f32 %v1776, %v1789
    %1791 = vdwg.mxu0
    %1792 = vmatpush.bf16.msra.mxu0 %v1269
    %1793 = vmatpush.bf16.msra.mxu0 %v1265
    %1794 = vmatpush.bf16.msra.mxu0 %v1261
    %1795 = vmatpush.bf16.msra.mxu0 %v1257
    %1796 = vmatpush.bf16.msra.mxu0 %v1253
    %1797 = vmatpush.bf16.msra.mxu0 %v1249
    %1798 = vmatpush.bf16.msra.mxu0 %v1245
    %1799 = vmatpush.bf16.msra.mxu0 %v1241
    %1800 = vmatmul.bf16.gmra.mxu0 %v332
    %v1801 = vpop.f32.mrf.mxu0
    %v1802 = vadd.f32 %v1788, %v1801
    %v1803 = vpop.f32.mrf.mxu0
    %v1804 = vadd.f32 %v1790, %v1803
    %1805 = vdwg.mxu0
    %1806 = vmatpush.bf16.msra.mxu0 %v1301
    %1807 = vmatpush.bf16.msra.mxu0 %v1297
    %1808 = vmatpush.bf16.msra.mxu0 %v1293
    %1809 = vmatpush.bf16.msra.mxu0 %v1289
    %1810 = vmatpush.bf16.msra.mxu0 %v1285
    %1811 = vmatpush.bf16.msra.mxu0 %v1281
    %1812 = vmatpush.bf16.msra.mxu0 %v1277
    %1813 = vmatpush.bf16.msra.mxu0 %v1273
    %1814 = vmatmul.bf16.gmra.mxu0 %v333
    %v1815 = vpop.f32.mrf.mxu0
    %v1816 = vadd.f32 %v1802, %v1815
    %v1817 = vpop.f32.mrf.mxu0
    %v1818 = vadd.f32 %v1804, %v1817
    %1819 = vdwg.mxu0
    %1820 = vmatpush.bf16.msra.mxu0 %v1333
    %1821 = vmatpush.bf16.msra.mxu0 %v1329
    %1822 = vmatpush.bf16.msra.mxu0 %v1325
    %1823 = vmatpush.bf16.msra.mxu0 %v1321
    %1824 = vmatpush.bf16.msra.mxu0 %v1317
    %1825 = vmatpush.bf16.msra.mxu0 %v1313
    %1826 = vmatpush.bf16.msra.mxu0 %v1309
    %1827 = vmatpush.bf16.msra.mxu0 %v1305
    %1828 = vmatmul.bf16.gmra.mxu0 %v334
    %v1829 = vpop.f32.mrf.mxu0
    %v1830 = vadd.f32 %v1816, %v1829
    %v1831 = vpop.f32.mrf.mxu0
    %v1832 = vadd.f32 %v1818, %v1831
    %1833 = vdwg.mxu0
    %1834 = vmatpush.bf16.msra.mxu0 %v1365
    %1835 = vmatpush.bf16.msra.mxu0 %v1361
    %1836 = vmatpush.bf16.msra.mxu0 %v1357
    %1837 = vmatpush.bf16.msra.mxu0 %v1353
    %1838 = vmatpush.bf16.msra.mxu0 %v1349
    %1839 = vmatpush.bf16.msra.mxu0 %v1345
    %1840 = vmatpush.bf16.msra.mxu0 %v1341
    %1841 = vmatpush.bf16.msra.mxu0 %v1337
    %1842 = vmatmul.bf16.gmra.mxu0 %v335
    %v1843 = vpop.f32.mrf.mxu0
    %v1844 = vadd.f32 %v1830, %v1843
    %v1845 = vpop.f32.mrf.mxu0
    %v1846 = vadd.f32 %v1832, %v1845
    %1847 = vdwg.mxu0
    %1848 = vmatpush.bf16.msra.mxu0 %v1142
    %1849 = vmatpush.bf16.msra.mxu0 %v1138
    %1850 = vmatpush.bf16.msra.mxu0 %v1134
    %1851 = vmatpush.bf16.msra.mxu0 %v1130
    %1852 = vmatpush.bf16.msra.mxu0 %v1126
    %1853 = vmatpush.bf16.msra.mxu0 %v1122
    %1854 = vmatpush.bf16.msra.mxu0 %v1118
    %1855 = vmatpush.bf16.msra.mxu0 %v1114
    %1856 = vmatmul.bf16.gmra.mxu0 %v328
    %v1857 = vpop.f32.mrf.mxu0
    %v1858 = vadd.f32 %v298, %v1857
    %v1859 = vpop.f32.mrf.mxu0
    %v1860 = vadd.f32 %v298, %v1859
    %1861 = vdwg.mxu0
    %1862 = vmatpush.bf16.msra.mxu0 %v1174
    %1863 = vmatpush.bf16.msra.mxu0 %v1170
    %1864 = vmatpush.bf16.msra.mxu0 %v1166
    %1865 = vmatpush.bf16.msra.mxu0 %v1162
    %1866 = vmatpush.bf16.msra.mxu0 %v1158
    %1867 = vmatpush.bf16.msra.mxu0 %v1154
    %1868 = vmatpush.bf16.msra.mxu0 %v1150
    %1869 = vmatpush.bf16.msra.mxu0 %v1146
    %1870 = vmatmul.bf16.gmra.mxu0 %v329
    %v1871 = vpop.f32.mrf.mxu0
    %v1872 = vadd.f32 %v1858, %v1871
    %v1873 = vpop.f32.mrf.mxu0
    %v1874 = vadd.f32 %v1860, %v1873
    %1875 = vdwg.mxu0
    %1876 = vmatpush.bf16.msra.mxu0 %v1206
    %1877 = vmatpush.bf16.msra.mxu0 %v1202
    %1878 = vmatpush.bf16.msra.mxu0 %v1198
    %1879 = vmatpush.bf16.msra.mxu0 %v1194
    %1880 = vmatpush.bf16.msra.mxu0 %v1190
    %1881 = vmatpush.bf16.msra.mxu0 %v1186
    %1882 = vmatpush.bf16.msra.mxu0 %v1182
    %1883 = vmatpush.bf16.msra.mxu0 %v1178
    %1884 = vmatmul.bf16.gmra.mxu0 %v330
    %v1885 = vpop.f32.mrf.mxu0
    %v1886 = vadd.f32 %v1872, %v1885
    %v1887 = vpop.f32.mrf.mxu0
    %v1888 = vadd.f32 %v1874, %v1887
    %1889 = vdwg.mxu0
    %1890 = vmatpush.bf16.msra.mxu0 %v1238
    %1891 = vmatpush.bf16.msra.mxu0 %v1234
    %1892 = vmatpush.bf16.msra.mxu0 %v1230
    %1893 = vmatpush.bf16.msra.mxu0 %v1226
    %1894 = vmatpush.bf16.msra.mxu0 %v1222
    %1895 = vmatpush.bf16.msra.mxu0 %v1218
    %1896 = vmatpush.bf16.msra.mxu0 %v1214
    %1897 = vmatpush.bf16.msra.mxu0 %v1210
    %1898 = vmatmul.bf16.gmra.mxu0 %v331
    %v1899 = vpop.f32.mrf.mxu0
    %v1900 = vadd.f32 %v1886, %v1899
    %v1901 = vpop.f32.mrf.mxu0
    %v1902 = vadd.f32 %v1888, %v1901
    %1903 = vdwg.mxu0
    %1904 = vmatpush.bf16.msra.mxu0 %v1270
    %1905 = vmatpush.bf16.msra.mxu0 %v1266
    %1906 = vmatpush.bf16.msra.mxu0 %v1262
    %1907 = vmatpush.bf16.msra.mxu0 %v1258
    %1908 = vmatpush.bf16.msra.mxu0 %v1254
    %1909 = vmatpush.bf16.msra.mxu0 %v1250
    %1910 = vmatpush.bf16.msra.mxu0 %v1246
    %1911 = vmatpush.bf16.msra.mxu0 %v1242
    %1912 = vmatmul.bf16.gmra.mxu0 %v332
    %v1913 = vpop.f32.mrf.mxu0
    %v1914 = vadd.f32 %v1900, %v1913
    %v1915 = vpop.f32.mrf.mxu0
    %v1916 = vadd.f32 %v1902, %v1915
    %1917 = vdwg.mxu0
    %1918 = vmatpush.bf16.msra.mxu0 %v1302
    %1919 = vmatpush.bf16.msra.mxu0 %v1298
    %1920 = vmatpush.bf16.msra.mxu0 %v1294
    %1921 = vmatpush.bf16.msra.mxu0 %v1290
    %1922 = vmatpush.bf16.msra.mxu0 %v1286
    %1923 = vmatpush.bf16.msra.mxu0 %v1282
    %1924 = vmatpush.bf16.msra.mxu0 %v1278
    %1925 = vmatpush.bf16.msra.mxu0 %v1274
    %1926 = vmatmul.bf16.gmra.mxu0 %v333
    %v1927 = vpop.f32.mrf.mxu0
    %v1928 = vadd.f32 %v1914, %v1927
    %v1929 = vpop.f32.mrf.mxu0
    %v1930 = vadd.f32 %v1916, %v1929
    %1931 = vdwg.mxu0
    %1932 = vmatpush.bf16.msra.mxu0 %v1334
    %1933 = vmatpush.bf16.msra.mxu0 %v1330
    %1934 = vmatpush.bf16.msra.mxu0 %v1326
    %1935 = vmatpush.bf16.msra.mxu0 %v1322
    %1936 = vmatpush.bf16.msra.mxu0 %v1318
    %1937 = vmatpush.bf16.msra.mxu0 %v1314
    %1938 = vmatpush.bf16.msra.mxu0 %v1310
    %1939 = vmatpush.bf16.msra.mxu0 %v1306
    %1940 = vmatmul.bf16.gmra.mxu0 %v334
    %v1941 = vpop.f32.mrf.mxu0
    %v1942 = vadd.f32 %v1928, %v1941
    %v1943 = vpop.f32.mrf.mxu0
    %v1944 = vadd.f32 %v1930, %v1943
    %1945 = vdwg.mxu0
    %1946 = vmatpush.bf16.msra.mxu0 %v1366
    %1947 = vmatpush.bf16.msra.mxu0 %v1362
    %1948 = vmatpush.bf16.msra.mxu0 %v1358
    %1949 = vmatpush.bf16.msra.mxu0 %v1354
    %1950 = vmatpush.bf16.msra.mxu0 %v1350
    %1951 = vmatpush.bf16.msra.mxu0 %v1346
    %1952 = vmatpush.bf16.msra.mxu0 %v1342
    %1953 = vmatpush.bf16.msra.mxu0 %v1338
    %1954 = vmatmul.bf16.gmra.mxu0 %v335
    %v1955 = vpop.f32.mrf.mxu0
    %v1956 = vadd.f32 %v1942, %v1955
    %v1957 = vpop.f32.mrf.mxu0
    %v1958 = vadd.f32 %v1944, %v1957
    %1959 = vdwg.mxu0
    %1960 = vmatpush.bf16.msra.mxu0 %v1143
    %1961 = vmatpush.bf16.msra.mxu0 %v1139
    %1962 = vmatpush.bf16.msra.mxu0 %v1135
    %1963 = vmatpush.bf16.msra.mxu0 %v1131
    %1964 = vmatpush.bf16.msra.mxu0 %v1127
    %1965 = vmatpush.bf16.msra.mxu0 %v1123
    %1966 = vmatpush.bf16.msra.mxu0 %v1119
    %1967 = vmatpush.bf16.msra.mxu0 %v1115
    %1968 = vmatmul.bf16.gmra.mxu0 %v328
    %v1969 = vpop.f32.mrf.mxu0
    %v1970 = vadd.f32 %v299, %v1969
    %v1971 = vpop.f32.mrf.mxu0
    %v1972 = vadd.f32 %v299, %v1971
    %1973 = vdwg.mxu0
    %1974 = vmatpush.bf16.msra.mxu0 %v1175
    %1975 = vmatpush.bf16.msra.mxu0 %v1171
    %1976 = vmatpush.bf16.msra.mxu0 %v1167
    %1977 = vmatpush.bf16.msra.mxu0 %v1163
    %1978 = vmatpush.bf16.msra.mxu0 %v1159
    %1979 = vmatpush.bf16.msra.mxu0 %v1155
    %1980 = vmatpush.bf16.msra.mxu0 %v1151
    %1981 = vmatpush.bf16.msra.mxu0 %v1147
    %1982 = vmatmul.bf16.gmra.mxu0 %v329
    %v1983 = vpop.f32.mrf.mxu0
    %v1984 = vadd.f32 %v1970, %v1983
    %v1985 = vpop.f32.mrf.mxu0
    %v1986 = vadd.f32 %v1972, %v1985
    %1987 = vdwg.mxu0
    %1988 = vmatpush.bf16.msra.mxu0 %v1207
    %1989 = vmatpush.bf16.msra.mxu0 %v1203
    %1990 = vmatpush.bf16.msra.mxu0 %v1199
    %1991 = vmatpush.bf16.msra.mxu0 %v1195
    %1992 = vmatpush.bf16.msra.mxu0 %v1191
    %1993 = vmatpush.bf16.msra.mxu0 %v1187
    %1994 = vmatpush.bf16.msra.mxu0 %v1183
    %1995 = vmatpush.bf16.msra.mxu0 %v1179
    %1996 = vmatmul.bf16.gmra.mxu0 %v330
    %v1997 = vpop.f32.mrf.mxu0
    %v1998 = vadd.f32 %v1984, %v1997
    %v1999 = vpop.f32.mrf.mxu0
    %v2000 = vadd.f32 %v1986, %v1999
    %2001 = vdwg.mxu0
    %2002 = vmatpush.bf16.msra.mxu0 %v1239
    %2003 = vmatpush.bf16.msra.mxu0 %v1235
    %2004 = vmatpush.bf16.msra.mxu0 %v1231
    %2005 = vmatpush.bf16.msra.mxu0 %v1227
    %2006 = vmatpush.bf16.msra.mxu0 %v1223
    %2007 = vmatpush.bf16.msra.mxu0 %v1219
    %2008 = vmatpush.bf16.msra.mxu0 %v1215
    %2009 = vmatpush.bf16.msra.mxu0 %v1211
    %2010 = vmatmul.bf16.gmra.mxu0 %v331
    %v2011 = vpop.f32.mrf.mxu0
    %v2012 = vadd.f32 %v1998, %v2011
    %v2013 = vpop.f32.mrf.mxu0
    %v2014 = vadd.f32 %v2000, %v2013
    %2015 = vdwg.mxu0
    %2016 = vmatpush.bf16.msra.mxu0 %v1271
    %2017 = vmatpush.bf16.msra.mxu0 %v1267
    %2018 = vmatpush.bf16.msra.mxu0 %v1263
    %2019 = vmatpush.bf16.msra.mxu0 %v1259
    %2020 = vmatpush.bf16.msra.mxu0 %v1255
    %2021 = vmatpush.bf16.msra.mxu0 %v1251
    %2022 = vmatpush.bf16.msra.mxu0 %v1247
    %2023 = vmatpush.bf16.msra.mxu0 %v1243
    %2024 = vmatmul.bf16.gmra.mxu0 %v332
    %v2025 = vpop.f32.mrf.mxu0
    %v2026 = vadd.f32 %v2012, %v2025
    %v2027 = vpop.f32.mrf.mxu0
    %v2028 = vadd.f32 %v2014, %v2027
    %2029 = vdwg.mxu0
    %2030 = vmatpush.bf16.msra.mxu0 %v1303
    %2031 = vmatpush.bf16.msra.mxu0 %v1299
    %2032 = vmatpush.bf16.msra.mxu0 %v1295
    %2033 = vmatpush.bf16.msra.mxu0 %v1291
    %2034 = vmatpush.bf16.msra.mxu0 %v1287
    %2035 = vmatpush.bf16.msra.mxu0 %v1283
    %2036 = vmatpush.bf16.msra.mxu0 %v1279
    %2037 = vmatpush.bf16.msra.mxu0 %v1275
    %2038 = vmatmul.bf16.gmra.mxu0 %v333
    %v2039 = vpop.f32.mrf.mxu0
    %v2040 = vadd.f32 %v2026, %v2039
    %v2041 = vpop.f32.mrf.mxu0
    %v2042 = vadd.f32 %v2028, %v2041
    %2043 = vdwg.mxu0
    %2044 = vmatpush.bf16.msra.mxu0 %v1335
    %2045 = vmatpush.bf16.msra.mxu0 %v1331
    %2046 = vmatpush.bf16.msra.mxu0 %v1327
    %2047 = vmatpush.bf16.msra.mxu0 %v1323
    %2048 = vmatpush.bf16.msra.mxu0 %v1319
    %2049 = vmatpush.bf16.msra.mxu0 %v1315
    %2050 = vmatpush.bf16.msra.mxu0 %v1311
    %2051 = vmatpush.bf16.msra.mxu0 %v1307
    %2052 = vmatmul.bf16.gmra.mxu0 %v334
    %v2053 = vpop.f32.mrf.mxu0
    %v2054 = vadd.f32 %v2040, %v2053
    %v2055 = vpop.f32.mrf.mxu0
    %v2056 = vadd.f32 %v2042, %v2055
    %2057 = vdwg.mxu0
    %2058 = vmatpush.bf16.msra.mxu0 %v1367
    %2059 = vmatpush.bf16.msra.mxu0 %v1363
    %2060 = vmatpush.bf16.msra.mxu0 %v1359
    %2061 = vmatpush.bf16.msra.mxu0 %v1355
    %2062 = vmatpush.bf16.msra.mxu0 %v1351
    %2063 = vmatpush.bf16.msra.mxu0 %v1347
    %2064 = vmatpush.bf16.msra.mxu0 %v1343
    %2065 = vmatpush.bf16.msra.mxu0 %v1339
    %2066 = vmatmul.bf16.gmra.mxu0 %v335
    %v2067 = vpop.f32.mrf.mxu0
    %v2068 = vadd.f32 %v2054, %v2067
    %v2069 = vpop.f32.mrf.mxu0
    %v2070 = vadd.f32 %v2056, %v2069
    %2071 = vdwg.mxu0
    %v2072 = vpack.c.bf16 %v1844, %v1732
    %v2073 = vpack.c.bf16 %v2068, %v1956
    %v2074 = vpack.c.bf16 %v1846, %v1734
    %v2075 = vpack.c.bf16 %v2070, %v1958
    %2076 = vst [vmem:[%s3] sm:$0xff] %v2072
    %2077 = vst [vmem:[%s3 + $0x8] sm:$0xff] %v2073
    %2078 = vst [vmem:[%s3 + $0x10] sm:$0xff] %v2074
    %2079 = vst [vmem:[%s3 + $0x18] sm:$0xff] %v2075
    // Predicated region
    $region18: #{custom_fine_tune_forward.2} parent=1 // pred_check
      _
    $region19: #{custom_fine_tune_forward.2} parent=1 // pred_check_branch
      %2081 = sbr.rel (0) target = $region21
    $region20: #{custom_fine_tune_forward.2} parent=1 // pred_region
      _
    $region21: #{custom_fine_tune_forward.2} parent=1 // pred_fallthru
      _
    // Predicated region
    $region22: #{custom_fine_tune_forward.2} parent=1 // pred_check
      _
    $region23: #{custom_fine_tune_forward.2} parent=1 // pred_check_branch
      %2083 = sbr.rel (0) target = $region25
    $region24: #{custom_fine_tune_forward.2} parent=1 // pred_region
      _
    $region25: #{custom_fine_tune_forward.2} parent=1 // pred_fallthru
      _
    %2084 = vsyncpa [#allocation3], 1

// kernel: custom_fine_tune_forward.3
$region0: #{custom_fine_tune_forward.3}
  #allocation0 [shape = 'u32[]', space=smem, size = 0x4, offset = 0x4, fixed_abs, tag = 'smem constant byte address 0x4 - core index']
  #allocation1 [shape = 'u32[72,128]{1,0:T(1,128)}', space=vmem, size = 0x9000, scoped, tag = 'internal scratch']
  #allocation2 [shape = 'f32[8,128]{1,0:T(8,128)}', space=vmem, size = 0x1000, scoped, tag = 'scratch operand']
  #allocation3 [shape = 'f32[8,128]{1,0:T(8,128)}', space=vmem, size = 0x1000, scoped, tag = 'scratch operand']
  #allocation4 [shape = 'f32[8,8,512]{2,1,0:T(8,128)}', space=vmem, size = 0x20000, scoped, tag = 'scratch operand']
  #allocation5 [shape = 'f32[1,1]{1,0:T(1,128)S(1)}', space=vmem, size = 0x200, scoped, tag = 'scoped memory for custom_fine_tune_forward.3']
  %s0 = inlined_call_operand.vmem [shape: bf16[8,8,512], index: 0, kind: input, shape index: {}]
  %s1 = inlined_call_operand.vmem [shape: bf16[128,512], index: 1, kind: input, shape index: {}]
  %s2 = inlined_call_operand.vmem [shape: f32[1,128], index: 2, kind: input, shape index: {}]
  %s3 = inlined_call_operand.<no memory space> [shape: f32[1,1], index: 3, kind: input, shape index: {}]
  %s4 = inlined_call_operand.vmem [shape: f32[8,1], index: 4, kind: output, shape index: {}]
  %s5 = sld [smem:[#allocation0]]
  $region34: #{custom_fine_tune_forward.3} parent=0
    _
  %s7 = ssub.s32 1, %s5
  %s8 = scalar_select 0, %s7, %s5
  %v9 = vstv %s3
  %10 = vst [vmem:[#allocation5] sm:$0x1] %v9
  // Predicated region
  $region2: #{custom_fine_tune_forward.3} parent=0 // pred_check
    _
  $region3: #{custom_fine_tune_forward.3} parent=0 // pred_check_branch
    %12 = sbr.rel (0) target = $region5
  $region4: #{custom_fine_tune_forward.3} parent=0 // pred_region
    _
  $region5: #{custom_fine_tune_forward.3} parent=0 // pred_fallthru
    _
  // Predicated region
  $region6: #{custom_fine_tune_forward.3} parent=0 // pred_check
    _
  $region7: #{custom_fine_tune_forward.3} parent=0 // pred_check_branch
    %14 = sbr.rel (0) target = $region9
  $region8: #{custom_fine_tune_forward.3} parent=0 // pred_region
    _
  $region9: #{custom_fine_tune_forward.3} parent=0 // pred_fallthru
    _
  // Predicated region
  $region10: #{custom_fine_tune_forward.3} parent=0 // pred_check
    _
  $region11: #{custom_fine_tune_forward.3} parent=0 // pred_check_branch
    %16 = sbr.rel (0) target = $region13
  $region12: #{custom_fine_tune_forward.3} parent=0 // pred_region
    _
  $region13: #{custom_fine_tune_forward.3} parent=0 // pred_fallthru
    _
  // Predicated region
  $region14: #{custom_fine_tune_forward.3} parent=0 // pred_check
    _
  $region15: #{custom_fine_tune_forward.3} parent=0 // pred_check_branch
    %18 = sbr.rel (0) target = $region17
  $region16: #{custom_fine_tune_forward.3} parent=0 // pred_region
    _
  $region17: #{custom_fine_tune_forward.3} parent=0 // pred_fallthru
    _
  %p19 = scmp.eq.s32.totalorder 0, 0
  // Predicated region
  $region18: #{custom_fine_tune_forward.3} parent=0 // pred_check
    %p20 = pneg %p19
  $region19: #{custom_fine_tune_forward.3} parent=0 // pred_check_branch
    %22 = sbr.rel (%p20) target = $region21
  $region20: #{custom_fine_tune_forward.3} parent=0 // pred_region
    %23 = vst [vmem:[#allocation2] sm:$0xff] 0.0
    %24 = vst [vmem:[#allocation3] sm:$0xff] 0.0
  $region21: #{custom_fine_tune_forward.3} parent=0 // pred_fallthru
    _
  %v25 = vld [vmem:[%s0] sm:$0x11]
  %v26 = vld [vmem:[%s0 + $0x8] sm:$0x11]
  %v27 = vld [vmem:[%s0 + $0x10] sm:$0x11]
  %v28 = vld [vmem:[%s0 + $0x18] sm:$0x11]
  %v29 = vld [vmem:[%s0 + $0x20] sm:$0x11]
  %v30 = vld [vmem:[%s0 + $0x28] sm:$0x11]
  %v31 = vld [vmem:[%s0 + $0x30] sm:$0x11]
  %v32 = vld [vmem:[%s0 + $0x38] sm:$0x11]
  %v33 = vld [vmem:[%s0 + $0x40] sm:$0x11]
  %v34 = vld [vmem:[%s0 + $0x48] sm:$0x11]
  %v35 = vld [vmem:[%s0 + $0x50] sm:$0x11]
  %v36 = vld [vmem:[%s0 + $0x58] sm:$0x11]
  %v37 = vld [vmem:[%s0 + $0x60] sm:$0x11]
  %v38 = vld [vmem:[%s0 + $0x68] sm:$0x11]
  %v39 = vld [vmem:[%s0 + $0x70] sm:$0x11]
  %v40 = vld [vmem:[%s0 + $0x78] sm:$0x11]
  %v41 = vunpack.c.l.bf16 %v25
  %v42 = vunpack.c.h.bf16 %v25
  %v43 = vunpack.c.l.bf16 %v26
  %v44 = vunpack.c.h.bf16 %v26
  %v45 = vunpack.c.l.bf16 %v27
  %v46 = vunpack.c.h.bf16 %v27
  %v47 = vunpack.c.l.bf16 %v28
  %v48 = vunpack.c.h.bf16 %v28
  %v49 = vunpack.c.l.bf16 %v29
  %v50 = vunpack.c.h.bf16 %v29
  %v51 = vunpack.c.l.bf16 %v30
  %v52 = vunpack.c.h.bf16 %v30
  %v53 = vunpack.c.l.bf16 %v31
  %v54 = vunpack.c.h.bf16 %v31
  %v55 = vunpack.c.l.bf16 %v32
  %v56 = vunpack.c.h.bf16 %v32
  %v57 = vunpack.c.l.bf16 %v33
  %v58 = vunpack.c.h.bf16 %v33
  %v59 = vunpack.c.l.bf16 %v34
  %v60 = vunpack.c.h.bf16 %v34
  %v61 = vunpack.c.l.bf16 %v35
  %v62 = vunpack.c.h.bf16 %v35
  %v63 = vunpack.c.l.bf16 %v36
  %v64 = vunpack.c.h.bf16 %v36
  %v65 = vunpack.c.l.bf16 %v37
  %v66 = vunpack.c.h.bf16 %v37
  %v67 = vunpack.c.l.bf16 %v38
  %v68 = vunpack.c.h.bf16 %v38
  %v69 = vunpack.c.l.bf16 %v39
  %v70 = vunpack.c.h.bf16 %v39
  %v71 = vunpack.c.l.bf16 %v40
  %v72 = vunpack.c.h.bf16 %v40
  %v105 = vrot.slane %v45, 7
  %vm106 = vcmask 1041409
  %v107 = vsel %vm106, %v105, %v41
  %v108 = vrot.slane %v49, 6
  %vm109 = vcmask 1042434
  %v110 = vsel %vm109, %v108, %v107
  %v111 = vrot.slane %v53, 5
  %vm112 = vcmask 1043459
  %v113 = vsel %vm112, %v111, %v110
  %v114 = vrot.slane %v57, 4
  %vm115 = vcmask 1044484
  %v116 = vsel %vm115, %v114, %v113
  %v117 = vrot.slane %v61, 3
  %vm118 = vcmask 1045509
  %v119 = vsel %vm118, %v117, %v116
  %v120 = vrot.slane %v65, 2
  %vm121 = vcmask 1046534
  %v122 = vsel %vm121, %v120, %v119
  %v123 = vrot.slane %v69, 1
  %vm124 = vcmask 1047559
  %v125 = vsel %vm124, %v123, %v122
  %v126 = vrot.slane %v46, 7
  %v127 = vsel %vm106, %v126, %v42
  %v128 = vrot.slane %v50, 6
  %v129 = vsel %vm109, %v128, %v127
  %v130 = vrot.slane %v54, 5
  %v131 = vsel %vm112, %v130, %v129
  %v132 = vrot.slane %v58, 4
  %v133 = vsel %vm115, %v132, %v131
  %v134 = vrot.slane %v62, 3
  %v135 = vsel %vm118, %v134, %v133
  %v136 = vrot.slane %v66, 2
  %v137 = vsel %vm121, %v136, %v135
  %v138 = vrot.slane %v70, 1
  %v139 = vsel %vm124, %v138, %v137
  %v140 = vrot.slane %v47, 7
  %v141 = vsel %vm106, %v140, %v43
  %v142 = vrot.slane %v51, 6
  %v143 = vsel %vm109, %v142, %v141
  %v144 = vrot.slane %v55, 5
  %v145 = vsel %vm112, %v144, %v143
  %v146 = vrot.slane %v59, 4
  %v147 = vsel %vm115, %v146, %v145
  %v148 = vrot.slane %v63, 3
  %v149 = vsel %vm118, %v148, %v147
  %v150 = vrot.slane %v67, 2
  %v151 = vsel %vm121, %v150, %v149
  %v152 = vrot.slane %v71, 1
  %v153 = vsel %vm124, %v152, %v151
  %v154 = vrot.slane %v48, 7
  %v155 = vsel %vm106, %v154, %v44
  %v156 = vrot.slane %v52, 6
  %v157 = vsel %vm109, %v156, %v155
  %v158 = vrot.slane %v56, 5
  %v159 = vsel %vm112, %v158, %v157
  %v160 = vrot.slane %v60, 4
  %v161 = vsel %vm115, %v160, %v159
  %v162 = vrot.slane %v64, 3
  %v163 = vsel %vm118, %v162, %v161
  %v164 = vrot.slane %v68, 2
  %v165 = vsel %vm121, %v164, %v163
  %v166 = vrot.slane %v72, 1
  %v167 = vsel %vm124, %v166, %v165
  %172 = vst [vmem:[#allocation4] sm:$0xff] %v125
  %173 = vst [vmem:[#allocation4 + $0x8] sm:$0xff] %v139
  %174 = vst [vmem:[#allocation4 + $0x10] sm:$0xff] %v153
  %175 = vst [vmem:[#allocation4 + $0x18] sm:$0xff] %v167
  %v176 = vld [vmem:[%s0] sm:$0x11]
  %v177 = vld [vmem:[%s0 + $0x8] sm:$0x11]
  %v178 = vld [vmem:[%s0 + $0x10] sm:$0x11]
  %v179 = vld [vmem:[%s0 + $0x18] sm:$0x11]
  %v180 = vld [vmem:[%s0 + $0x20] sm:$0x11]
  %v181 = vld [vmem:[%s0 + $0x28] sm:$0x11]
  %v182 = vld [vmem:[%s0 + $0x30] sm:$0x11]
  %v183 = vld [vmem:[%s0 + $0x38] sm:$0x11]
  %v184 = vld [vmem:[%s0 + $0x40] sm:$0x11]
  %v185 = vld [vmem:[%s0 + $0x48] sm:$0x11]
  %v186 = vld [vmem:[%s0 + $0x50] sm:$0x11]
  %v187 = vld [vmem:[%s0 + $0x58] sm:$0x11]
  %v188 = vld [vmem:[%s0 + $0x60] sm:$0x11]
  %v189 = vld [vmem:[%s0 + $0x68] sm:$0x11]
  %v190 = vld [vmem:[%s0 + $0x70] sm:$0x11]
  %v191 = vld [vmem:[%s0 + $0x78] sm:$0x11]
  %v192 = vunpack.c.l.bf16 %v176
  %v193 = vunpack.c.h.bf16 %v176
  %v194 = vunpack.c.l.bf16 %v177
  %v195 = vunpack.c.h.bf16 %v177
  %v196 = vunpack.c.l.bf16 %v178
  %v197 = vunpack.c.h.bf16 %v178
  %v198 = vunpack.c.l.bf16 %v179
  %v199 = vunpack.c.h.bf16 %v179
  %v200 = vunpack.c.l.bf16 %v180
  %v201 = vunpack.c.h.bf16 %v180
  %v202 = vunpack.c.l.bf16 %v181
  %v203 = vunpack.c.h.bf16 %v181
  %v204 = vunpack.c.l.bf16 %v182
  %v205 = vunpack.c.h.bf16 %v182
  %v206 = vunpack.c.l.bf16 %v183
  %v207 = vunpack.c.h.bf16 %v183
  %v208 = vunpack.c.l.bf16 %v184
  %v209 = vunpack.c.h.bf16 %v184
  %v210 = vunpack.c.l.bf16 %v185
  %v211 = vunpack.c.h.bf16 %v185
  %v212 = vunpack.c.l.bf16 %v186
  %v213 = vunpack.c.h.bf16 %v186
  %v214 = vunpack.c.l.bf16 %v187
  %v215 = vunpack.c.h.bf16 %v187
  %v216 = vunpack.c.l.bf16 %v188
  %v217 = vunpack.c.h.bf16 %v188
  %v218 = vunpack.c.l.bf16 %v189
  %v219 = vunpack.c.h.bf16 %v189
  %v220 = vunpack.c.l.bf16 %v190
  %v221 = vunpack.c.h.bf16 %v190
  %v222 = vunpack.c.l.bf16 %v191
  %v223 = vunpack.c.h.bf16 %v191
  %v256 = vrot.slane %v192, 1
  %v257 = vsel %vm106, %v196, %v256
  %v258 = vrot.slane %v200, 7
  %v259 = vsel %vm109, %v258, %v257
  %v260 = vrot.slane %v204, 6
  %v261 = vsel %vm112, %v260, %v259
  %v262 = vrot.slane %v208, 5
  %v263 = vsel %vm115, %v262, %v261
  %v264 = vrot.slane %v212, 4
  %v265 = vsel %vm118, %v264, %v263
  %v266 = vrot.slane %v216, 3
  %v267 = vsel %vm121, %v266, %v265
  %v268 = vrot.slane %v220, 2
  %v269 = vsel %vm124, %v268, %v267
  %v270 = vrot.slane %v193, 1
  %v271 = vsel %vm106, %v197, %v270
  %v272 = vrot.slane %v201, 7
  %v273 = vsel %vm109, %v272, %v271
  %v274 = vrot.slane %v205, 6
  %v275 = vsel %vm112, %v274, %v273
  %v276 = vrot.slane %v209, 5
  %v277 = vsel %vm115, %v276, %v275
  %v278 = vrot.slane %v213, 4
  %v279 = vsel %vm118, %v278, %v277
  %v280 = vrot.slane %v217, 3
  %v281 = vsel %vm121, %v280, %v279
  %v282 = vrot.slane %v221, 2
  %v283 = vsel %vm124, %v282, %v281
  %v284 = vrot.slane %v194, 1
  %v285 = vsel %vm106, %v198, %v284
  %v286 = vrot.slane %v202, 7
  %v287 = vsel %vm109, %v286, %v285
  %v288 = vrot.slane %v206, 6
  %v289 = vsel %vm112, %v288, %v287
  %v290 = vrot.slane %v210, 5
  %v291 = vsel %vm115, %v290, %v289
  %v292 = vrot.slane %v214, 4
  %v293 = vsel %vm118, %v292, %v291
  %v294 = vrot.slane %v218, 3
  %v295 = vsel %vm121, %v294, %v293
  %v296 = vrot.slane %v222, 2
  %v297 = vsel %vm124, %v296, %v295
  %v298 = vrot.slane %v195, 1
  %v299 = vsel %vm106, %v199, %v298
  %v300 = vrot.slane %v203, 7
  %v301 = vsel %vm109, %v300, %v299
  %v302 = vrot.slane %v207, 6
  %v303 = vsel %vm112, %v302, %v301
  %v304 = vrot.slane %v211, 5
  %v305 = vsel %vm115, %v304, %v303
  %v306 = vrot.slane %v215, 4
  %v307 = vsel %vm118, %v306, %v305
  %v308 = vrot.slane %v219, 3
  %v309 = vsel %vm121, %v308, %v307
  %v310 = vrot.slane %v223, 2
  %v311 = vsel %vm124, %v310, %v309
  %s316 = scalar_lea.vmem [#allocation4], 32
  %317 = vst [vmem:[%s316] sm:$0xff] %v269
  %318 = vst [vmem:[%s316 + $0x8] sm:$0xff] %v283
  %319 = vst [vmem:[%s316 + $0x10] sm:$0xff] %v297
  %320 = vst [vmem:[%s316 + $0x18] sm:$0xff] %v311
  %v321 = vld [vmem:[%s0] sm:$0x22]
  %v322 = vld [vmem:[%s0 + $0x8] sm:$0x22]
  %v323 = vld [vmem:[%s0 + $0x10] sm:$0x22]
  %v324 = vld [vmem:[%s0 + $0x18] sm:$0x22]
  %v325 = vld [vmem:[%s0 + $0x20] sm:$0x22]
  %v326 = vld [vmem:[%s0 + $0x28] sm:$0x22]
  %v327 = vld [vmem:[%s0 + $0x30] sm:$0x22]
  %v328 = vld [vmem:[%s0 + $0x38] sm:$0x22]
  %v329 = vld [vmem:[%s0 + $0x40] sm:$0x22]
  %v330 = vld [vmem:[%s0 + $0x48] sm:$0x22]
  %v331 = vld [vmem:[%s0 + $0x50] sm:$0x22]
  %v332 = vld [vmem:[%s0 + $0x58] sm:$0x22]
  %v333 = vld [vmem:[%s0 + $0x60] sm:$0x22]
  %v334 = vld [vmem:[%s0 + $0x68] sm:$0x22]
  %v335 = vld [vmem:[%s0 + $0x70] sm:$0x22]
  %v336 = vld [vmem:[%s0 + $0x78] sm:$0x22]
  %v337 = vunpack.c.l.bf16 %v321
  %v338 = vunpack.c.h.bf16 %v321
  %v339 = vunpack.c.l.bf16 %v322
  %v340 = vunpack.c.h.bf16 %v322
  %v341 = vunpack.c.l.bf16 %v323
  %v342 = vunpack.c.h.bf16 %v323
  %v343 = vunpack.c.l.bf16 %v324
  %v344 = vunpack.c.h.bf16 %v324
  %v345 = vunpack.c.l.bf16 %v325
  %v346 = vunpack.c.h.bf16 %v325
  %v347 = vunpack.c.l.bf16 %v326
  %v348 = vunpack.c.h.bf16 %v326
  %v349 = vunpack.c.l.bf16 %v327
  %v350 = vunpack.c.h.bf16 %v327
  %v351 = vunpack.c.l.bf16 %v328
  %v352 = vunpack.c.h.bf16 %v328
  %v353 = vunpack.c.l.bf16 %v329
  %v354 = vunpack.c.h.bf16 %v329
  %v355 = vunpack.c.l.bf16 %v330
  %v356 = vunpack.c.h.bf16 %v330
  %v357 = vunpack.c.l.bf16 %v331
  %v358 = vunpack.c.h.bf16 %v331
  %v359 = vunpack.c.l.bf16 %v332
  %v360 = vunpack.c.h.bf16 %v332
  %v361 = vunpack.c.l.bf16 %v333
  %v362 = vunpack.c.h.bf16 %v333
  %v363 = vunpack.c.l.bf16 %v334
  %v364 = vunpack.c.h.bf16 %v334
  %v365 = vunpack.c.l.bf16 %v335
  %v366 = vunpack.c.h.bf16 %v335
  %v367 = vunpack.c.l.bf16 %v336
  %v368 = vunpack.c.h.bf16 %v336
  %v401 = vrot.slane %v337, 2
  %v402 = vrot.slane %v341, 1
  %v403 = vsel %vm106, %v402, %v401
  %v404 = vsel %vm109, %v345, %v403
  %v405 = vrot.slane %v349, 7
  %v406 = vsel %vm112, %v405, %v404
  %v407 = vrot.slane %v353, 6
  %v408 = vsel %vm115, %v407, %v406
  %v409 = vrot.slane %v357, 5
  %v410 = vsel %vm118, %v409, %v408
  %v411 = vrot.slane %v361, 4
  %v412 = vsel %vm121, %v411, %v410
  %v413 = vrot.slane %v365, 3
  %v414 = vsel %vm124, %v413, %v412
  %v415 = vrot.slane %v338, 2
  %v416 = vrot.slane %v342, 1
  %v417 = vsel %vm106, %v416, %v415
  %v418 = vsel %vm109, %v346, %v417
  %v419 = vrot.slane %v350, 7
  %v420 = vsel %vm112, %v419, %v418
  %v421 = vrot.slane %v354, 6
  %v422 = vsel %vm115, %v421, %v420
  %v423 = vrot.slane %v358, 5
  %v424 = vsel %vm118, %v423, %v422
  %v425 = vrot.slane %v362, 4
  %v426 = vsel %vm121, %v425, %v424
  %v427 = vrot.slane %v366, 3
  %v428 = vsel %vm124, %v427, %v426
  %v429 = vrot.slane %v339, 2
  %v430 = vrot.slane %v343, 1
  %v431 = vsel %vm106, %v430, %v429
  %v432 = vsel %vm109, %v347, %v431
  %v433 = vrot.slane %v351, 7
  %v434 = vsel %vm112, %v433, %v432
  %v435 = vrot.slane %v355, 6
  %v436 = vsel %vm115, %v435, %v434
  %v437 = vrot.slane %v359, 5
  %v438 = vsel %vm118, %v437, %v436
  %v439 = vrot.slane %v363, 4
  %v440 = vsel %vm121, %v439, %v438
  %v441 = vrot.slane %v367, 3
  %v442 = vsel %vm124, %v441, %v440
  %v443 = vrot.slane %v340, 2
  %v444 = vrot.slane %v344, 1
  %v445 = vsel %vm106, %v444, %v443
  %v446 = vsel %vm109, %v348, %v445
  %v447 = vrot.slane %v352, 7
  %v448 = vsel %vm112, %v447, %v446
  %v449 = vrot.slane %v356, 6
  %v450 = vsel %vm115, %v449, %v448
  %v451 = vrot.slane %v360, 5
  %v452 = vsel %vm118, %v451, %v450
  %v453 = vrot.slane %v364, 4
  %v454 = vsel %vm121, %v453, %v452
  %v455 = vrot.slane %v368, 3
  %v456 = vsel %vm124, %v455, %v454
  %s461 = scalar_lea.vmem [#allocation4], 64
  %462 = vst [vmem:[%s461] sm:$0xff] %v414
  %463 = vst [vmem:[%s461 + $0x8] sm:$0xff] %v428
  %464 = vst [vmem:[%s461 + $0x10] sm:$0xff] %v442
  %465 = vst [vmem:[%s461 + $0x18] sm:$0xff] %v456
  %v466 = vld [vmem:[%s0] sm:$0x22]
  %v467 = vld [vmem:[%s0 + $0x8] sm:$0x22]
  %v468 = vld [vmem:[%s0 + $0x10] sm:$0x22]
  %v469 = vld [vmem:[%s0 + $0x18] sm:$0x22]
  %v470 = vld [vmem:[%s0 + $0x20] sm:$0x22]
  %v471 = vld [vmem:[%s0 + $0x28] sm:$0x22]
  %v472 = vld [vmem:[%s0 + $0x30] sm:$0x22]
  %v473 = vld [vmem:[%s0 + $0x38] sm:$0x22]
  %v474 = vld [vmem:[%s0 + $0x40] sm:$0x22]
  %v475 = vld [vmem:[%s0 + $0x48] sm:$0x22]
  %v476 = vld [vmem:[%s0 + $0x50] sm:$0x22]
  %v477 = vld [vmem:[%s0 + $0x58] sm:$0x22]
  %v478 = vld [vmem:[%s0 + $0x60] sm:$0x22]
  %v479 = vld [vmem:[%s0 + $0x68] sm:$0x22]
  %v480 = vld [vmem:[%s0 + $0x70] sm:$0x22]
  %v481 = vld [vmem:[%s0 + $0x78] sm:$0x22]
  %v482 = vunpack.c.l.bf16 %v466
  %v483 = vunpack.c.h.bf16 %v466
  %v484 = vunpack.c.l.bf16 %v467
  %v485 = vunpack.c.h.bf16 %v467
  %v486 = vunpack.c.l.bf16 %v468
  %v487 = vunpack.c.h.bf16 %v468
  %v488 = vunpack.c.l.bf16 %v469
  %v489 = vunpack.c.h.bf16 %v469
  %v490 = vunpack.c.l.bf16 %v470
  %v491 = vunpack.c.h.bf16 %v470
  %v492 = vunpack.c.l.bf16 %v471
  %v493 = vunpack.c.h.bf16 %v471
  %v494 = vunpack.c.l.bf16 %v472
  %v495 = vunpack.c.h.bf16 %v472
  %v496 = vunpack.c.l.bf16 %v473
  %v497 = vunpack.c.h.bf16 %v473
  %v498 = vunpack.c.l.bf16 %v474
  %v499 = vunpack.c.h.bf16 %v474
  %v500 = vunpack.c.l.bf16 %v475
  %v501 = vunpack.c.h.bf16 %v475
  %v502 = vunpack.c.l.bf16 %v476
  %v503 = vunpack.c.h.bf16 %v476
  %v504 = vunpack.c.l.bf16 %v477
  %v505 = vunpack.c.h.bf16 %v477
  %v506 = vunpack.c.l.bf16 %v478
  %v507 = vunpack.c.h.bf16 %v478
  %v508 = vunpack.c.l.bf16 %v479
  %v509 = vunpack.c.h.bf16 %v479
  %v510 = vunpack.c.l.bf16 %v480
  %v511 = vunpack.c.h.bf16 %v480
  %v512 = vunpack.c.l.bf16 %v481
  %v513 = vunpack.c.h.bf16 %v481
  %v546 = vrot.slane %v482, 3
  %v547 = vrot.slane %v486, 2
  %v548 = vsel %vm106, %v547, %v546
  %v549 = vrot.slane %v490, 1
  %v550 = vsel %vm109, %v549, %v548
  %v551 = vsel %vm112, %v494, %v550
  %v552 = vrot.slane %v498, 7
  %v553 = vsel %vm115, %v552, %v551
  %v554 = vrot.slane %v502, 6
  %v555 = vsel %vm118, %v554, %v553
  %v556 = vrot.slane %v506, 5
  %v557 = vsel %vm121, %v556, %v555
  %v558 = vrot.slane %v510, 4
  %v559 = vsel %vm124, %v558, %v557
  %v560 = vrot.slane %v483, 3
  %v561 = vrot.slane %v487, 2
  %v562 = vsel %vm106, %v561, %v560
  %v563 = vrot.slane %v491, 1
  %v564 = vsel %vm109, %v563, %v562
  %v565 = vsel %vm112, %v495, %v564
  %v566 = vrot.slane %v499, 7
  %v567 = vsel %vm115, %v566, %v565
  %v568 = vrot.slane %v503, 6
  %v569 = vsel %vm118, %v568, %v567
  %v570 = vrot.slane %v507, 5
  %v571 = vsel %vm121, %v570, %v569
  %v572 = vrot.slane %v511, 4
  %v573 = vsel %vm124, %v572, %v571
  %v574 = vrot.slane %v484, 3
  %v575 = vrot.slane %v488, 2
  %v576 = vsel %vm106, %v575, %v574
  %v577 = vrot.slane %v492, 1
  %v578 = vsel %vm109, %v577, %v576
  %v579 = vsel %vm112, %v496, %v578
  %v580 = vrot.slane %v500, 7
  %v581 = vsel %vm115, %v580, %v579
  %v582 = vrot.slane %v504, 6
  %v583 = vsel %vm118, %v582, %v581
  %v584 = vrot.slane %v508, 5
  %v585 = vsel %vm121, %v584, %v583
  %v586 = vrot.slane %v512, 4
  %v587 = vsel %vm124, %v586, %v585
  %v588 = vrot.slane %v485, 3
  %v589 = vrot.slane %v489, 2
  %v590 = vsel %vm106, %v589, %v588
  %v591 = vrot.slane %v493, 1
  %v592 = vsel %vm109, %v591, %v590
  %v593 = vsel %vm112, %v497, %v592
  %v594 = vrot.slane %v501, 7
  %v595 = vsel %vm115, %v594, %v593
  %v596 = vrot.slane %v505, 6
  %v597 = vsel %vm118, %v596, %v595
  %v598 = vrot.slane %v509, 5
  %v599 = vsel %vm121, %v598, %v597
  %v600 = vrot.slane %v513, 4
  %v601 = vsel %vm124, %v600, %v599
  %s606 = scalar_lea.vmem [#allocation4], 96
  %607 = vst [vmem:[%s606] sm:$0xff] %v559
  %608 = vst [vmem:[%s606 + $0x8] sm:$0xff] %v573
  %609 = vst [vmem:[%s606 + $0x10] sm:$0xff] %v587
  %610 = vst [vmem:[%s606 + $0x18] sm:$0xff] %v601
  %v611 = vld [vmem:[%s0] sm:$0x44]
  %v612 = vld [vmem:[%s0 + $0x8] sm:$0x44]
  %v613 = vld [vmem:[%s0 + $0x10] sm:$0x44]
  %v614 = vld [vmem:[%s0 + $0x18] sm:$0x44]
  %v615 = vld [vmem:[%s0 + $0x20] sm:$0x44]
  %v616 = vld [vmem:[%s0 + $0x28] sm:$0x44]
  %v617 = vld [vmem:[%s0 + $0x30] sm:$0x44]
  %v618 = vld [vmem:[%s0 + $0x38] sm:$0x44]
  %v619 = vld [vmem:[%s0 + $0x40] sm:$0x44]
  %v620 = vld [vmem:[%s0 + $0x48] sm:$0x44]
  %v621 = vld [vmem:[%s0 + $0x50] sm:$0x44]
  %v622 = vld [vmem:[%s0 + $0x58] sm:$0x44]
  %v623 = vld [vmem:[%s0 + $0x60] sm:$0x44]
  %v624 = vld [vmem:[%s0 + $0x68] sm:$0x44]
  %v625 = vld [vmem:[%s0 + $0x70] sm:$0x44]
  %v626 = vld [vmem:[%s0 + $0x78] sm:$0x44]
  %v627 = vunpack.c.l.bf16 %v611
  %v628 = vunpack.c.h.bf16 %v611
  %v629 = vunpack.c.l.bf16 %v612
  %v630 = vunpack.c.h.bf16 %v612
  %v631 = vunpack.c.l.bf16 %v613
  %v632 = vunpack.c.h.bf16 %v613
  %v633 = vunpack.c.l.bf16 %v614
  %v634 = vunpack.c.h.bf16 %v614
  %v635 = vunpack.c.l.bf16 %v615
  %v636 = vunpack.c.h.bf16 %v615
  %v637 = vunpack.c.l.bf16 %v616
  %v638 = vunpack.c.h.bf16 %v616
  %v639 = vunpack.c.l.bf16 %v617
  %v640 = vunpack.c.h.bf16 %v617
  %v641 = vunpack.c.l.bf16 %v618
  %v642 = vunpack.c.h.bf16 %v618
  %v643 = vunpack.c.l.bf16 %v619
  %v644 = vunpack.c.h.bf16 %v619
  %v645 = vunpack.c.l.bf16 %v620
  %v646 = vunpack.c.h.bf16 %v620
  %v647 = vunpack.c.l.bf16 %v621
  %v648 = vunpack.c.h.bf16 %v621
  %v649 = vunpack.c.l.bf16 %v622
  %v650 = vunpack.c.h.bf16 %v622
  %v651 = vunpack.c.l.bf16 %v623
  %v652 = vunpack.c.h.bf16 %v623
  %v653 = vunpack.c.l.bf16 %v624
  %v654 = vunpack.c.h.bf16 %v624
  %v655 = vunpack.c.l.bf16 %v625
  %v656 = vunpack.c.h.bf16 %v625
  %v657 = vunpack.c.l.bf16 %v626
  %v658 = vunpack.c.h.bf16 %v626
  %v691 = vrot.slane %v627, 4
  %v692 = vrot.slane %v631, 3
  %v693 = vsel %vm106, %v692, %v691
  %v694 = vrot.slane %v635, 2
  %v695 = vsel %vm109, %v694, %v693
  %v696 = vrot.slane %v639, 1
  %v697 = vsel %vm112, %v696, %v695
  %v698 = vsel %vm115, %v643, %v697
  %v699 = vrot.slane %v647, 7
  %v700 = vsel %vm118, %v699, %v698
  %v701 = vrot.slane %v651, 6
  %v702 = vsel %vm121, %v701, %v700
  %v703 = vrot.slane %v655, 5
  %v704 = vsel %vm124, %v703, %v702
  %v705 = vrot.slane %v628, 4
  %v706 = vrot.slane %v632, 3
  %v707 = vsel %vm106, %v706, %v705
  %v708 = vrot.slane %v636, 2
  %v709 = vsel %vm109, %v708, %v707
  %v710 = vrot.slane %v640, 1
  %v711 = vsel %vm112, %v710, %v709
  %v712 = vsel %vm115, %v644, %v711
  %v713 = vrot.slane %v648, 7
  %v714 = vsel %vm118, %v713, %v712
  %v715 = vrot.slane %v652, 6
  %v716 = vsel %vm121, %v715, %v714
  %v717 = vrot.slane %v656, 5
  %v718 = vsel %vm124, %v717, %v716
  %v719 = vrot.slane %v629, 4
  %v720 = vrot.slane %v633, 3
  %v721 = vsel %vm106, %v720, %v719
  %v722 = vrot.slane %v637, 2
  %v723 = vsel %vm109, %v722, %v721
  %v724 = vrot.slane %v641, 1
  %v725 = vsel %vm112, %v724, %v723
  %v726 = vsel %vm115, %v645, %v725
  %v727 = vrot.slane %v649, 7
  %v728 = vsel %vm118, %v727, %v726
  %v729 = vrot.slane %v653, 6
  %v730 = vsel %vm121, %v729, %v728
  %v731 = vrot.slane %v657, 5
  %v732 = vsel %vm124, %v731, %v730
  %v733 = vrot.slane %v630, 4
  %v734 = vrot.slane %v634, 3
  %v735 = vsel %vm106, %v734, %v733
  %v736 = vrot.slane %v638, 2
  %v737 = vsel %vm109, %v736, %v735
  %v738 = vrot.slane %v642, 1
  %v739 = vsel %vm112, %v738, %v737
  %v740 = vsel %vm115, %v646, %v739
  %v741 = vrot.slane %v650, 7
  %v742 = vsel %vm118, %v741, %v740
  %v743 = vrot.slane %v654, 6
  %v744 = vsel %vm121, %v743, %v742
  %v745 = vrot.slane %v658, 5
  %v746 = vsel %vm124, %v745, %v744
  %s751 = scalar_lea.vmem [#allocation4], 128
  %752 = vst [vmem:[%s751] sm:$0xff] %v704
  %753 = vst [vmem:[%s751 + $0x8] sm:$0xff] %v718
  %754 = vst [vmem:[%s751 + $0x10] sm:$0xff] %v732
  %755 = vst [vmem:[%s751 + $0x18] sm:$0xff] %v746
  %v756 = vld [vmem:[%s0] sm:$0x44]
  %v757 = vld [vmem:[%s0 + $0x8] sm:$0x44]
  %v758 = vld [vmem:[%s0 + $0x10] sm:$0x44]
  %v759 = vld [vmem:[%s0 + $0x18] sm:$0x44]
  %v760 = vld [vmem:[%s0 + $0x20] sm:$0x44]
  %v761 = vld [vmem:[%s0 + $0x28] sm:$0x44]
  %v762 = vld [vmem:[%s0 + $0x30] sm:$0x44]
  %v763 = vld [vmem:[%s0 + $0x38] sm:$0x44]
  %v764 = vld [vmem:[%s0 + $0x40] sm:$0x44]
  %v765 = vld [vmem:[%s0 + $0x48] sm:$0x44]
  %v766 = vld [vmem:[%s0 + $0x50] sm:$0x44]
  %v767 = vld [vmem:[%s0 + $0x58] sm:$0x44]
  %v768 = vld [vmem:[%s0 + $0x60] sm:$0x44]
  %v769 = vld [vmem:[%s0 + $0x68] sm:$0x44]
  %v770 = vld [vmem:[%s0 + $0x70] sm:$0x44]
  %v771 = vld [vmem:[%s0 + $0x78] sm:$0x44]
  %v772 = vunpack.c.l.bf16 %v756
  %v773 = vunpack.c.h.bf16 %v756
  %v774 = vunpack.c.l.bf16 %v757
  %v775 = vunpack.c.h.bf16 %v757
  %v776 = vunpack.c.l.bf16 %v758
  %v777 = vunpack.c.h.bf16 %v758
  %v778 = vunpack.c.l.bf16 %v759
  %v779 = vunpack.c.h.bf16 %v759
  %v780 = vunpack.c.l.bf16 %v760
  %v781 = vunpack.c.h.bf16 %v760
  %v782 = vunpack.c.l.bf16 %v761
  %v783 = vunpack.c.h.bf16 %v761
  %v784 = vunpack.c.l.bf16 %v762
  %v785 = vunpack.c.h.bf16 %v762
  %v786 = vunpack.c.l.bf16 %v763
  %v787 = vunpack.c.h.bf16 %v763
  %v788 = vunpack.c.l.bf16 %v764
  %v789 = vunpack.c.h.bf16 %v764
  %v790 = vunpack.c.l.bf16 %v765
  %v791 = vunpack.c.h.bf16 %v765
  %v792 = vunpack.c.l.bf16 %v766
  %v793 = vunpack.c.h.bf16 %v766
  %v794 = vunpack.c.l.bf16 %v767
  %v795 = vunpack.c.h.bf16 %v767
  %v796 = vunpack.c.l.bf16 %v768
  %v797 = vunpack.c.h.bf16 %v768
  %v798 = vunpack.c.l.bf16 %v769
  %v799 = vunpack.c.h.bf16 %v769
  %v800 = vunpack.c.l.bf16 %v770
  %v801 = vunpack.c.h.bf16 %v770
  %v802 = vunpack.c.l.bf16 %v771
  %v803 = vunpack.c.h.bf16 %v771
  %v836 = vrot.slane %v772, 5
  %v837 = vrot.slane %v776, 4
  %v838 = vsel %vm106, %v837, %v836
  %v839 = vrot.slane %v780, 3
  %v840 = vsel %vm109, %v839, %v838
  %v841 = vrot.slane %v784, 2
  %v842 = vsel %vm112, %v841, %v840
  %v843 = vrot.slane %v788, 1
  %v844 = vsel %vm115, %v843, %v842
  %v845 = vsel %vm118, %v792, %v844
  %v846 = vrot.slane %v796, 7
  %v847 = vsel %vm121, %v846, %v845
  %v848 = vrot.slane %v800, 6
  %v849 = vsel %vm124, %v848, %v847
  %v850 = vrot.slane %v773, 5
  %v851 = vrot.slane %v777, 4
  %v852 = vsel %vm106, %v851, %v850
  %v853 = vrot.slane %v781, 3
  %v854 = vsel %vm109, %v853, %v852
  %v855 = vrot.slane %v785, 2
  %v856 = vsel %vm112, %v855, %v854
  %v857 = vrot.slane %v789, 1
  %v858 = vsel %vm115, %v857, %v856
  %v859 = vsel %vm118, %v793, %v858
  %v860 = vrot.slane %v797, 7
  %v861 = vsel %vm121, %v860, %v859
  %v862 = vrot.slane %v801, 6
  %v863 = vsel %vm124, %v862, %v861
  %v864 = vrot.slane %v774, 5
  %v865 = vrot.slane %v778, 4
  %v866 = vsel %vm106, %v865, %v864
  %v867 = vrot.slane %v782, 3
  %v868 = vsel %vm109, %v867, %v866
  %v869 = vrot.slane %v786, 2
  %v870 = vsel %vm112, %v869, %v868
  %v871 = vrot.slane %v790, 1
  %v872 = vsel %vm115, %v871, %v870
  %v873 = vsel %vm118, %v794, %v872
  %v874 = vrot.slane %v798, 7
  %v875 = vsel %vm121, %v874, %v873
  %v876 = vrot.slane %v802, 6
  %v877 = vsel %vm124, %v876, %v875
  %v878 = vrot.slane %v775, 5
  %v879 = vrot.slane %v779, 4
  %v880 = vsel %vm106, %v879, %v878
  %v881 = vrot.slane %v783, 3
  %v882 = vsel %vm109, %v881, %v880
  %v883 = vrot.slane %v787, 2
  %v884 = vsel %vm112, %v883, %v882
  %v885 = vrot.slane %v791, 1
  %v886 = vsel %vm115, %v885, %v884
  %v887 = vsel %vm118, %v795, %v886
  %v888 = vrot.slane %v799, 7
  %v889 = vsel %vm121, %v888, %v887
  %v890 = vrot.slane %v803, 6
  %v891 = vsel %vm124, %v890, %v889
  %s896 = scalar_lea.vmem [#allocation4], 160
  %897 = vst [vmem:[%s896] sm:$0xff] %v849
  %898 = vst [vmem:[%s896 + $0x8] sm:$0xff] %v863
  %899 = vst [vmem:[%s896 + $0x10] sm:$0xff] %v877
  %900 = vst [vmem:[%s896 + $0x18] sm:$0xff] %v891
  %v901 = vld [vmem:[%s0] sm:$0x88]
  %v902 = vld [vmem:[%s0 + $0x8] sm:$0x88]
  %v903 = vld [vmem:[%s0 + $0x10] sm:$0x88]
  %v904 = vld [vmem:[%s0 + $0x18] sm:$0x88]
  %v905 = vld [vmem:[%s0 + $0x20] sm:$0x88]
  %v906 = vld [vmem:[%s0 + $0x28] sm:$0x88]
  %v907 = vld [vmem:[%s0 + $0x30] sm:$0x88]
  %v908 = vld [vmem:[%s0 + $0x38] sm:$0x88]
  %v909 = vld [vmem:[%s0 + $0x40] sm:$0x88]
  %v910 = vld [vmem:[%s0 + $0x48] sm:$0x88]
  %v911 = vld [vmem:[%s0 + $0x50] sm:$0x88]
  %v912 = vld [vmem:[%s0 + $0x58] sm:$0x88]
  %v913 = vld [vmem:[%s0 + $0x60] sm:$0x88]
  %v914 = vld [vmem:[%s0 + $0x68] sm:$0x88]
  %v915 = vld [vmem:[%s0 + $0x70] sm:$0x88]
  %v916 = vld [vmem:[%s0 + $0x78] sm:$0x88]
  %v917 = vunpack.c.l.bf16 %v901
  %v918 = vunpack.c.h.bf16 %v901
  %v919 = vunpack.c.l.bf16 %v902
  %v920 = vunpack.c.h.bf16 %v902
  %v921 = vunpack.c.l.bf16 %v903
  %v922 = vunpack.c.h.bf16 %v903
  %v923 = vunpack.c.l.bf16 %v904
  %v924 = vunpack.c.h.bf16 %v904
  %v925 = vunpack.c.l.bf16 %v905
  %v926 = vunpack.c.h.bf16 %v905
  %v927 = vunpack.c.l.bf16 %v906
  %v928 = vunpack.c.h.bf16 %v906
  %v929 = vunpack.c.l.bf16 %v907
  %v930 = vunpack.c.h.bf16 %v907
  %v931 = vunpack.c.l.bf16 %v908
  %v932 = vunpack.c.h.bf16 %v908
  %v933 = vunpack.c.l.bf16 %v909
  %v934 = vunpack.c.h.bf16 %v909
  %v935 = vunpack.c.l.bf16 %v910
  %v936 = vunpack.c.h.bf16 %v910
  %v937 = vunpack.c.l.bf16 %v911
  %v938 = vunpack.c.h.bf16 %v911
  %v939 = vunpack.c.l.bf16 %v912
  %v940 = vunpack.c.h.bf16 %v912
  %v941 = vunpack.c.l.bf16 %v913
  %v942 = vunpack.c.h.bf16 %v913
  %v943 = vunpack.c.l.bf16 %v914
  %v944 = vunpack.c.h.bf16 %v914
  %v945 = vunpack.c.l.bf16 %v915
  %v946 = vunpack.c.h.bf16 %v915
  %v947 = vunpack.c.l.bf16 %v916
  %v948 = vunpack.c.h.bf16 %v916
  %v981 = vrot.slane %v917, 6
  %v982 = vrot.slane %v921, 5
  %v983 = vsel %vm106, %v982, %v981
  %v984 = vrot.slane %v925, 4
  %v985 = vsel %vm109, %v984, %v983
  %v986 = vrot.slane %v929, 3
  %v987 = vsel %vm112, %v986, %v985
  %v988 = vrot.slane %v933, 2
  %v989 = vsel %vm115, %v988, %v987
  %v990 = vrot.slane %v937, 1
  %v991 = vsel %vm118, %v990, %v989
  %v992 = vsel %vm121, %v941, %v991
  %v993 = vrot.slane %v945, 7
  %v994 = vsel %vm124, %v993, %v992
  %v995 = vrot.slane %v918, 6
  %v996 = vrot.slane %v922, 5
  %v997 = vsel %vm106, %v996, %v995
  %v998 = vrot.slane %v926, 4
  %v999 = vsel %vm109, %v998, %v997
  %v1000 = vrot.slane %v930, 3
  %v1001 = vsel %vm112, %v1000, %v999
  %v1002 = vrot.slane %v934, 2
  %v1003 = vsel %vm115, %v1002, %v1001
  %v1004 = vrot.slane %v938, 1
  %v1005 = vsel %vm118, %v1004, %v1003
  %v1006 = vsel %vm121, %v942, %v1005
  %v1007 = vrot.slane %v946, 7
  %v1008 = vsel %vm124, %v1007, %v1006
  %v1009 = vrot.slane %v919, 6
  %v1010 = vrot.slane %v923, 5
  %v1011 = vsel %vm106, %v1010, %v1009
  %v1012 = vrot.slane %v927, 4
  %v1013 = vsel %vm109, %v1012, %v1011
  %v1014 = vrot.slane %v931, 3
  %v1015 = vsel %vm112, %v1014, %v1013
  %v1016 = vrot.slane %v935, 2
  %v1017 = vsel %vm115, %v1016, %v1015
  %v1018 = vrot.slane %v939, 1
  %v1019 = vsel %vm118, %v1018, %v1017
  %v1020 = vsel %vm121, %v943, %v1019
  %v1021 = vrot.slane %v947, 7
  %v1022 = vsel %vm124, %v1021, %v1020
  %v1023 = vrot.slane %v920, 6
  %v1024 = vrot.slane %v924, 5
  %v1025 = vsel %vm106, %v1024, %v1023
  %v1026 = vrot.slane %v928, 4
  %v1027 = vsel %vm109, %v1026, %v1025
  %v1028 = vrot.slane %v932, 3
  %v1029 = vsel %vm112, %v1028, %v1027
  %v1030 = vrot.slane %v936, 2
  %v1031 = vsel %vm115, %v1030, %v1029
  %v1032 = vrot.slane %v940, 1
  %v1033 = vsel %vm118, %v1032, %v1031
  %v1034 = vsel %vm121, %v944, %v1033
  %v1035 = vrot.slane %v948, 7
  %v1036 = vsel %vm124, %v1035, %v1034
  %s1041 = scalar_lea.vmem [#allocation4], 192
  %1042 = vst [vmem:[%s1041] sm:$0xff] %v994
  %1043 = vst [vmem:[%s1041 + $0x8] sm:$0xff] %v1008
  %1044 = vst [vmem:[%s1041 + $0x10] sm:$0xff] %v1022
  %1045 = vst [vmem:[%s1041 + $0x18] sm:$0xff] %v1036
  %v1046 = vld [vmem:[%s0] sm:$0x88]
  %v1047 = vld [vmem:[%s0 + $0x8] sm:$0x88]
  %v1048 = vld [vmem:[%s0 + $0x10] sm:$0x88]
  %v1049 = vld [vmem:[%s0 + $0x18] sm:$0x88]
  %v1050 = vld [vmem:[%s0 + $0x20] sm:$0x88]
  %v1051 = vld [vmem:[%s0 + $0x28] sm:$0x88]
  %v1052 = vld [vmem:[%s0 + $0x30] sm:$0x88]
  %v1053 = vld [vmem:[%s0 + $0x38] sm:$0x88]
  %v1054 = vld [vmem:[%s0 + $0x40] sm:$0x88]
  %v1055 = vld [vmem:[%s0 + $0x48] sm:$0x88]
  %v1056 = vld [vmem:[%s0 + $0x50] sm:$0x88]
  %v1057 = vld [vmem:[%s0 + $0x58] sm:$0x88]
  %v1058 = vld [vmem:[%s0 + $0x60] sm:$0x88]
  %v1059 = vld [vmem:[%s0 + $0x68] sm:$0x88]
  %v1060 = vld [vmem:[%s0 + $0x70] sm:$0x88]
  %v1061 = vld [vmem:[%s0 + $0x78] sm:$0x88]
  %v1062 = vunpack.c.l.bf16 %v1046
  %v1063 = vunpack.c.h.bf16 %v1046
  %v1064 = vunpack.c.l.bf16 %v1047
  %v1065 = vunpack.c.h.bf16 %v1047
  %v1066 = vunpack.c.l.bf16 %v1048
  %v1067 = vunpack.c.h.bf16 %v1048
  %v1068 = vunpack.c.l.bf16 %v1049
  %v1069 = vunpack.c.h.bf16 %v1049
  %v1070 = vunpack.c.l.bf16 %v1050
  %v1071 = vunpack.c.h.bf16 %v1050
  %v1072 = vunpack.c.l.bf16 %v1051
  %v1073 = vunpack.c.h.bf16 %v1051
  %v1074 = vunpack.c.l.bf16 %v1052
  %v1075 = vunpack.c.h.bf16 %v1052
  %v1076 = vunpack.c.l.bf16 %v1053
  %v1077 = vunpack.c.h.bf16 %v1053
  %v1078 = vunpack.c.l.bf16 %v1054
  %v1079 = vunpack.c.h.bf16 %v1054
  %v1080 = vunpack.c.l.bf16 %v1055
  %v1081 = vunpack.c.h.bf16 %v1055
  %v1082 = vunpack.c.l.bf16 %v1056
  %v1083 = vunpack.c.h.bf16 %v1056
  %v1084 = vunpack.c.l.bf16 %v1057
  %v1085 = vunpack.c.h.bf16 %v1057
  %v1086 = vunpack.c.l.bf16 %v1058
  %v1087 = vunpack.c.h.bf16 %v1058
  %v1088 = vunpack.c.l.bf16 %v1059
  %v1089 = vunpack.c.h.bf16 %v1059
  %v1090 = vunpack.c.l.bf16 %v1060
  %v1091 = vunpack.c.h.bf16 %v1060
  %v1092 = vunpack.c.l.bf16 %v1061
  %v1093 = vunpack.c.h.bf16 %v1061
  %v1126 = vrot.slane %v1062, 7
  %v1127 = vrot.slane %v1066, 6
  %v1128 = vsel %vm106, %v1127, %v1126
  %v1129 = vrot.slane %v1070, 5
  %v1130 = vsel %vm109, %v1129, %v1128
  %v1131 = vrot.slane %v1074, 4
  %v1132 = vsel %vm112, %v1131, %v1130
  %v1133 = vrot.slane %v1078, 3
  %v1134 = vsel %vm115, %v1133, %v1132
  %v1135 = vrot.slane %v1082, 2
  %v1136 = vsel %vm118, %v1135, %v1134
  %v1137 = vrot.slane %v1086, 1
  %v1138 = vsel %vm121, %v1137, %v1136
  %v1139 = vsel %vm124, %v1090, %v1138
  %v1140 = vrot.slane %v1063, 7
  %v1141 = vrot.slane %v1067, 6
  %v1142 = vsel %vm106, %v1141, %v1140
  %v1143 = vrot.slane %v1071, 5
  %v1144 = vsel %vm109, %v1143, %v1142
  %v1145 = vrot.slane %v1075, 4
  %v1146 = vsel %vm112, %v1145, %v1144
  %v1147 = vrot.slane %v1079, 3
  %v1148 = vsel %vm115, %v1147, %v1146
  %v1149 = vrot.slane %v1083, 2
  %v1150 = vsel %vm118, %v1149, %v1148
  %v1151 = vrot.slane %v1087, 1
  %v1152 = vsel %vm121, %v1151, %v1150
  %v1153 = vsel %vm124, %v1091, %v1152
  %v1154 = vrot.slane %v1064, 7
  %v1155 = vrot.slane %v1068, 6
  %v1156 = vsel %vm106, %v1155, %v1154
  %v1157 = vrot.slane %v1072, 5
  %v1158 = vsel %vm109, %v1157, %v1156
  %v1159 = vrot.slane %v1076, 4
  %v1160 = vsel %vm112, %v1159, %v1158
  %v1161 = vrot.slane %v1080, 3
  %v1162 = vsel %vm115, %v1161, %v1160
  %v1163 = vrot.slane %v1084, 2
  %v1164 = vsel %vm118, %v1163, %v1162
  %v1165 = vrot.slane %v1088, 1
  %v1166 = vsel %vm121, %v1165, %v1164
  %v1167 = vsel %vm124, %v1092, %v1166
  %v1168 = vrot.slane %v1065, 7
  %v1169 = vrot.slane %v1069, 6
  %v1170 = vsel %vm106, %v1169, %v1168
  %v1171 = vrot.slane %v1073, 5
  %v1172 = vsel %vm109, %v1171, %v1170
  %v1173 = vrot.slane %v1077, 4
  %v1174 = vsel %vm112, %v1173, %v1172
  %v1175 = vrot.slane %v1081, 3
  %v1176 = vsel %vm115, %v1175, %v1174
  %v1177 = vrot.slane %v1085, 2
  %v1178 = vsel %vm118, %v1177, %v1176
  %v1179 = vrot.slane %v1089, 1
  %v1180 = vsel %vm121, %v1179, %v1178
  %v1181 = vsel %vm124, %v1093, %v1180
  %s1186 = scalar_lea.vmem [#allocation4], 224
  %1187 = vst [vmem:[%s1186] sm:$0xff] %v1139
  %1188 = vst [vmem:[%s1186 + $0x8] sm:$0xff] %v1153
  %1189 = vst [vmem:[%s1186 + $0x10] sm:$0xff] %v1167
  %1190 = vst [vmem:[%s1186 + $0x18] sm:$0xff] %v1181
  %v1191 = vld [vmem:[%s1] sm:$0xff]
  %v1192 = vld [vmem:[%s1 + $0x8] sm:$0xff]
  %v1193 = vld [vmem:[%s1 + $0x10] sm:$0xff]
  %v1194 = vld [vmem:[%s1 + $0x18] sm:$0xff]
  %v1195 = vld [vmem:[%s1 + $0x20] sm:$0xff]
  %v1196 = vld [vmem:[%s1 + $0x28] sm:$0xff]
  %v1197 = vld [vmem:[%s1 + $0x30] sm:$0xff]
  %v1198 = vld [vmem:[%s1 + $0x38] sm:$0xff]
  %v1199 = vld [vmem:[%s1 + $0x40] sm:$0xff]
  %v1200 = vld [vmem:[%s1 + $0x48] sm:$0xff]
  %v1201 = vld [vmem:[%s1 + $0x50] sm:$0xff]
  %v1202 = vld [vmem:[%s1 + $0x58] sm:$0xff]
  %v1203 = vld [vmem:[%s1 + $0x60] sm:$0xff]
  %v1204 = vld [vmem:[%s1 + $0x68] sm:$0xff]
  %v1205 = vld [vmem:[%s1 + $0x70] sm:$0xff]
  %v1206 = vld [vmem:[%s1 + $0x78] sm:$0xff]
  %v1207 = vld [vmem:[%s1 + $0x80] sm:$0xff]
  %v1208 = vld [vmem:[%s1 + $0x88] sm:$0xff]
  %v1209 = vld [vmem:[%s1 + $0x90] sm:$0xff]
  %v1210 = vld [vmem:[%s1 + $0x98] sm:$0xff]
  %v1211 = vld [vmem:[%s1 + $0xa0] sm:$0xff]
  %v1212 = vld [vmem:[%s1 + $0xa8] sm:$0xff]
  %v1213 = vld [vmem:[%s1 + $0xb0] sm:$0xff]
  %v1214 = vld [vmem:[%s1 + $0xb8] sm:$0xff]
  %v1215 = vld [vmem:[%s1 + $0xc0] sm:$0xff]
  %v1216 = vld [vmem:[%s1 + $0xc8] sm:$0xff]
  %v1217 = vld [vmem:[%s1 + $0xd0] sm:$0xff]
  %v1218 = vld [vmem:[%s1 + $0xd8] sm:$0xff]
  %v1219 = vld [vmem:[%s1 + $0xe0] sm:$0xff]
  %v1220 = vld [vmem:[%s1 + $0xe8] sm:$0xff]
  %v1221 = vld [vmem:[%s1 + $0xf0] sm:$0xff]
  %v1222 = vld [vmem:[%s1 + $0xf8] sm:$0xff]
  %v1223 = vld [vmem:[#allocation2] sm:$0xff]
  %v1224 = vld [vmem:[#allocation3] sm:$0xff]
  %v1225 = vld [vmem:[#allocation4] sm:$0xff]
  %v1226 = vld [vmem:[#allocation4 + $0x8] sm:$0xff]
  %v1227 = vld [vmem:[#allocation4 + $0x10] sm:$0xff]
  %v1228 = vld [vmem:[#allocation4 + $0x18] sm:$0xff]
  %v1229 = vpack.c.bf16 %v1223, %v1223
  %v1262 = vunpack.c.l.b16 %v1191
  %v1263 = vunpack.c.h.b16 %v1191
  %v1264 = vunpack.c.l.b16 %v1192
  %v1265 = vunpack.c.h.b16 %v1192
  %v1266 = vunpack.c.l.b16 %v1193
  %v1267 = vunpack.c.h.b16 %v1193
  %v1268 = vunpack.c.l.b16 %v1194
  %v1269 = vunpack.c.h.b16 %v1194
  %v1270 = vunpack.c.l.b16 %v1195
  %v1271 = vunpack.c.h.b16 %v1195
  %v1272 = vunpack.c.l.b16 %v1196
  %v1273 = vunpack.c.h.b16 %v1196
  %v1274 = vunpack.c.l.b16 %v1197
  %v1275 = vunpack.c.h.b16 %v1197
  %v1276 = vunpack.c.l.b16 %v1198
  %v1277 = vunpack.c.h.b16 %v1198
  %v1278 = vunpack.c.l.b16 %v1199
  %v1279 = vunpack.c.h.b16 %v1199
  %v1280 = vunpack.c.l.b16 %v1200
  %v1281 = vunpack.c.h.b16 %v1200
  %v1282 = vunpack.c.l.b16 %v1201
  %v1283 = vunpack.c.h.b16 %v1201
  %v1284 = vunpack.c.l.b16 %v1202
  %v1285 = vunpack.c.h.b16 %v1202
  %v1286 = vunpack.c.l.b16 %v1203
  %v1287 = vunpack.c.h.b16 %v1203
  %v1288 = vunpack.c.l.b16 %v1204
  %v1289 = vunpack.c.h.b16 %v1204
  %v1290 = vunpack.c.l.b16 %v1205
  %v1291 = vunpack.c.h.b16 %v1205
  %v1292 = vunpack.c.l.b16 %v1206
  %v1293 = vunpack.c.h.b16 %v1206
  %v1294 = vunpack.c.l.b16 %v1207
  %v1295 = vunpack.c.h.b16 %v1207
  %v1296 = vunpack.c.l.b16 %v1208
  %v1297 = vunpack.c.h.b16 %v1208
  %v1298 = vunpack.c.l.b16 %v1209
  %v1299 = vunpack.c.h.b16 %v1209
  %v1300 = vunpack.c.l.b16 %v1210
  %v1301 = vunpack.c.h.b16 %v1210
  %v1302 = vunpack.c.l.b16 %v1211
  %v1303 = vunpack.c.h.b16 %v1211
  %v1304 = vunpack.c.l.b16 %v1212
  %v1305 = vunpack.c.h.b16 %v1212
  %v1306 = vunpack.c.l.b16 %v1213
  %v1307 = vunpack.c.h.b16 %v1213
  %v1308 = vunpack.c.l.b16 %v1214
  %v1309 = vunpack.c.h.b16 %v1214
  %v1310 = vunpack.c.l.b16 %v1215
  %v1311 = vunpack.c.h.b16 %v1215
  %v1312 = vunpack.c.l.b16 %v1216
  %v1313 = vunpack.c.h.b16 %v1216
  %v1314 = vunpack.c.l.b16 %v1217
  %v1315 = vunpack.c.h.b16 %v1217
  %v1316 = vunpack.c.l.b16 %v1218
  %v1317 = vunpack.c.h.b16 %v1218
  %v1318 = vunpack.c.l.b16 %v1219
  %v1319 = vunpack.c.h.b16 %v1219
  %v1320 = vunpack.c.l.b16 %v1220
  %v1321 = vunpack.c.h.b16 %v1220
  %v1322 = vunpack.c.l.b16 %v1221
  %v1323 = vunpack.c.h.b16 %v1221
  %v1324 = vunpack.c.l.b16 %v1222
  %v1325 = vunpack.c.h.b16 %v1222
  %v1326 = vpack.c.b16 %v1266, %v1262
  %v1327 = vpack.c.b16 %v1267, %v1263
  %v1328 = vpack.c.b16 %v1268, %v1264
  %v1329 = vpack.c.b16 %v1269, %v1265
  %v1330 = vpack.c.b16 %v1274, %v1270
  %v1331 = vpack.c.b16 %v1275, %v1271
  %v1332 = vpack.c.b16 %v1276, %v1272
  %v1333 = vpack.c.b16 %v1277, %v1273
  %v1334 = vpack.c.b16 %v1282, %v1278
  %v1335 = vpack.c.b16 %v1283, %v1279
  %v1336 = vpack.c.b16 %v1284, %v1280
  %v1337 = vpack.c.b16 %v1285, %v1281
  %v1338 = vpack.c.b16 %v1290, %v1286
  %v1339 = vpack.c.b16 %v1291, %v1287
  %v1340 = vpack.c.b16 %v1292, %v1288
  %v1341 = vpack.c.b16 %v1293, %v1289
  %v1342 = vpack.c.b16 %v1298, %v1294
  %v1343 = vpack.c.b16 %v1299, %v1295
  %v1344 = vpack.c.b16 %v1300, %v1296
  %v1345 = vpack.c.b16 %v1301, %v1297
  %v1346 = vpack.c.b16 %v1306, %v1302
  %v1347 = vpack.c.b16 %v1307, %v1303
  %v1348 = vpack.c.b16 %v1308, %v1304
  %v1349 = vpack.c.b16 %v1309, %v1305
  %v1350 = vpack.c.b16 %v1314, %v1310
  %v1351 = vpack.c.b16 %v1315, %v1311
  %v1352 = vpack.c.b16 %v1316, %v1312
  %v1353 = vpack.c.b16 %v1317, %v1313
  %v1354 = vpack.c.b16 %v1322, %v1318
  %v1355 = vpack.c.b16 %v1323, %v1319
  %v1356 = vpack.c.b16 %v1324, %v1320
  %v1357 = vpack.c.b16 %v1325, %v1321
  %1390 = vmatpush.bf16.msra.mxu0 %v1354
  %1391 = vmatpush.bf16.msra.mxu0 %v1350
  %1392 = vmatpush.bf16.msra.mxu0 %v1346
  %1393 = vmatpush.bf16.msra.mxu0 %v1342
  %1394 = vmatpush.bf16.msra.mxu0 %v1338
  %1395 = vmatpush.bf16.msra.mxu0 %v1334
  %1396 = vmatpush.bf16.msra.mxu0 %v1330
  %1397 = vmatpush.bf16.msra.mxu0 %v1326
  %1398 = vmatmul.bf16.gmra.mxu0 %v1229
  %v1399 = vpop.f32.mrf.mxu0
  %v1400 = vadd.f32 0.0, %v1399
  %v1401 = vpop.f32.mrf.mxu0
  %1402 = vdwg.mxu0
  %1403 = vmatpush.bf16.msra.mxu0 %v1355
  %1404 = vmatpush.bf16.msra.mxu0 %v1351
  %1405 = vmatpush.bf16.msra.mxu0 %v1347
  %1406 = vmatpush.bf16.msra.mxu0 %v1343
  %1407 = vmatpush.bf16.msra.mxu0 %v1339
  %1408 = vmatpush.bf16.msra.mxu0 %v1335
  %1409 = vmatpush.bf16.msra.mxu0 %v1331
  %1410 = vmatpush.bf16.msra.mxu0 %v1327
  %1411 = vmatmul.bf16.gmra.mxu0 %v1229
  %v1412 = vpop.f32.mrf.mxu0
  %v1413 = vadd.f32 0.0, %v1412
  %v1414 = vpop.f32.mrf.mxu0
  %1415 = vdwg.mxu0
  %1416 = vmatpush.bf16.msra.mxu0 %v1356
  %1417 = vmatpush.bf16.msra.mxu0 %v1352
  %1418 = vmatpush.bf16.msra.mxu0 %v1348
  %1419 = vmatpush.bf16.msra.mxu0 %v1344
  %1420 = vmatpush.bf16.msra.mxu0 %v1340
  %1421 = vmatpush.bf16.msra.mxu0 %v1336
  %1422 = vmatpush.bf16.msra.mxu0 %v1332
  %1423 = vmatpush.bf16.msra.mxu0 %v1328
  %1424 = vmatmul.bf16.gmra.mxu0 %v1229
  %v1425 = vpop.f32.mrf.mxu0
  %v1426 = vadd.f32 0.0, %v1425
  %v1427 = vpop.f32.mrf.mxu0
  %1428 = vdwg.mxu0
  %1429 = vmatpush.bf16.msra.mxu0 %v1357
  %1430 = vmatpush.bf16.msra.mxu0 %v1353
  %1431 = vmatpush.bf16.msra.mxu0 %v1349
  %1432 = vmatpush.bf16.msra.mxu0 %v1345
  %1433 = vmatpush.bf16.msra.mxu0 %v1341
  %1434 = vmatpush.bf16.msra.mxu0 %v1337
  %1435 = vmatpush.bf16.msra.mxu0 %v1333
  %1436 = vmatpush.bf16.msra.mxu0 %v1329
  %1437 = vmatmul.bf16.gmra.mxu0 %v1229
  %v1438 = vpop.f32.mrf.mxu0
  %v1439 = vadd.f32 0.0, %v1438
  %v1440 = vpop.f32.mrf.mxu0
  %1441 = vdwg.mxu0
  %v1442 = vadd.f32 %v1225, %v1400
  %v1443 = vadd.f32 %v1226, %v1413
  %v1444 = vadd.f32 %v1227, %v1426
  %v1445 = vadd.f32 %v1228, %v1439
  %v1446 = vxor.u32 %v1442, 2147483648
  %v1447 = vmul.f32 %v1446, 1.442695
  %v1448 = vpow.pop %v1447
  %v1449 = vadd.f32 %v1448, 1.0
  %v1450 = vrcp.pop %v1449
  %v1451 = vmul.f32 %v1449, %v1450
  %v1452 = vsub.f32 1.0, %v1451
  %v1453 = vmul.f32 %v1450, %v1452
  %v1454 = vadd.f32 %v1450, %v1453
  %vm1455 = vweird.f32 %v1449
  %vm1456 = vweird.f32 %v1450
  %vm1457 = vmor %vm1455, %vm1456
  %v1458 = vsel %vm1457, %v1450, %v1454
  %v1459 = vand.u32 2147483647, %v1449
  %vm1460 = vcmp.eq.f32.partialorder %v1459, 8.507059e+37
  %v1461 = vand.u32 %v1449, 2147483648
  %v1462 = vor.u32 1.1754944e-38, %v1461
  %v1463 = vsel %vm1460, %v1462, %v1458
  %v1464 = vmul.f32 1.0, %v1463
  %v1465 = vxor.u32 %v1443, 2147483648
  %v1466 = vmul.f32 %v1465, 1.442695
  %v1467 = vpow.pop %v1466
  %v1468 = vadd.f32 %v1467, 1.0
  %v1469 = vrcp.pop %v1468
  %v1470 = vmul.f32 %v1468, %v1469
  %v1471 = vsub.f32 1.0, %v1470
  %v1472 = vmul.f32 %v1469, %v1471
  %v1473 = vadd.f32 %v1469, %v1472
  %vm1474 = vweird.f32 %v1468
  %vm1475 = vweird.f32 %v1469
  %vm1476 = vmor %vm1474, %vm1475
  %v1477 = vsel %vm1476, %v1469, %v1473
  %v1478 = vand.u32 2147483647, %v1468
  %vm1479 = vcmp.eq.f32.partialorder %v1478, 8.507059e+37
  %v1480 = vand.u32 %v1468, 2147483648
  %v1481 = vor.u32 1.1754944e-38, %v1480
  %v1482 = vsel %vm1479, %v1481, %v1477
  %v1483 = vmul.f32 1.0, %v1482
  %v1484 = vtanh.pop %v1444
  %v1485 = vxor.u32 %v1445, 2147483648
  %v1486 = vmul.f32 %v1485, 1.442695
  %v1487 = vpow.pop %v1486
  %v1488 = vadd.f32 %v1487, 1.0
  %v1489 = vrcp.pop %v1488
  %v1490 = vmul.f32 %v1488, %v1489
  %v1491 = vsub.f32 1.0, %v1490
  %v1492 = vmul.f32 %v1489, %v1491
  %v1493 = vadd.f32 %v1489, %v1492
  %vm1494 = vweird.f32 %v1488
  %vm1495 = vweird.f32 %v1489
  %vm1496 = vmor %vm1494, %vm1495
  %v1497 = vsel %vm1496, %v1489, %v1493
  %v1498 = vand.u32 2147483647, %v1488
  %vm1499 = vcmp.eq.f32.partialorder %v1498, 8.507059e+37
  %v1500 = vand.u32 %v1488, 2147483648
  %v1501 = vor.u32 1.1754944e-38, %v1500
  %v1502 = vsel %vm1499, %v1501, %v1497
  %v1503 = vmul.f32 1.0, %v1502
  %v1504 = vmul.f32 %v1483, %v1224
  %v1505 = vmul.f32 %v1464, %v1484
  %v1506 = vadd.f32 %v1504, %v1505
  %v1507 = vtanh.pop %v1506
  %v1508 = vmul.f32 %v1503, %v1507
  %v1509 = vld [vmem:[%s316] sm:$0xff]
  %v1510 = vld [vmem:[%s316 + $0x8] sm:$0xff]
  %v1511 = vld [vmem:[%s316 + $0x10] sm:$0xff]
  %v1512 = vld [vmem:[%s316 + $0x18] sm:$0xff]
  %v1513 = vpack.c.bf16 %v1508, %v1508
  %1514 = vmatpush.bf16.msra.mxu0 %v1354
  %1515 = vmatpush.bf16.msra.mxu0 %v1350
  %1516 = vmatpush.bf16.msra.mxu0 %v1346
  %1517 = vmatpush.bf16.msra.mxu0 %v1342
  %1518 = vmatpush.bf16.msra.mxu0 %v1338
  %1519 = vmatpush.bf16.msra.mxu0 %v1334
  %1520 = vmatpush.bf16.msra.mxu0 %v1330
  %1521 = vmatpush.bf16.msra.mxu0 %v1326
  %1522 = vmatmul.bf16.gmra.mxu0 %v1513
  %v1523 = vpop.f32.mrf.mxu0
  %v1524 = vadd.f32 0.0, %v1523
  %v1525 = vpop.f32.mrf.mxu0
  %1526 = vdwg.mxu0
  %1527 = vmatpush.bf16.msra.mxu0 %v1355
  %1528 = vmatpush.bf16.msra.mxu0 %v1351
  %1529 = vmatpush.bf16.msra.mxu0 %v1347
  %1530 = vmatpush.bf16.msra.mxu0 %v1343
  %1531 = vmatpush.bf16.msra.mxu0 %v1339
  %1532 = vmatpush.bf16.msra.mxu0 %v1335
  %1533 = vmatpush.bf16.msra.mxu0 %v1331
  %1534 = vmatpush.bf16.msra.mxu0 %v1327
  %1535 = vmatmul.bf16.gmra.mxu0 %v1513
  %v1536 = vpop.f32.mrf.mxu0
  %v1537 = vadd.f32 0.0, %v1536
  %v1538 = vpop.f32.mrf.mxu0
  %1539 = vdwg.mxu0
  %1540 = vmatpush.bf16.msra.mxu0 %v1356
  %1541 = vmatpush.bf16.msra.mxu0 %v1352
  %1542 = vmatpush.bf16.msra.mxu0 %v1348
  %1543 = vmatpush.bf16.msra.mxu0 %v1344
  %1544 = vmatpush.bf16.msra.mxu0 %v1340
  %1545 = vmatpush.bf16.msra.mxu0 %v1336
  %1546 = vmatpush.bf16.msra.mxu0 %v1332
  %1547 = vmatpush.bf16.msra.mxu0 %v1328
  %1548 = vmatmul.bf16.gmra.mxu0 %v1513
  %v1549 = vpop.f32.mrf.mxu0
  %v1550 = vadd.f32 0.0, %v1549
  %v1551 = vpop.f32.mrf.mxu0
  %1552 = vdwg.mxu0
  %1553 = vmatpush.bf16.msra.mxu0 %v1357
  %1554 = vmatpush.bf16.msra.mxu0 %v1353
  %1555 = vmatpush.bf16.msra.mxu0 %v1349
  %1556 = vmatpush.bf16.msra.mxu0 %v1345
  %1557 = vmatpush.bf16.msra.mxu0 %v1341
  %1558 = vmatpush.bf16.msra.mxu0 %v1337
  %1559 = vmatpush.bf16.msra.mxu0 %v1333
  %1560 = vmatpush.bf16.msra.mxu0 %v1329
  %1561 = vmatmul.bf16.gmra.mxu0 %v1513
  %v1562 = vpop.f32.mrf.mxu0
  %v1563 = vadd.f32 0.0, %v1562
  %v1564 = vpop.f32.mrf.mxu0
  %1565 = vdwg.mxu0
  %v1566 = vadd.f32 %v1509, %v1524
  %v1567 = vadd.f32 %v1510, %v1537
  %v1568 = vadd.f32 %v1511, %v1550
  %v1569 = vadd.f32 %v1512, %v1563
  %v1570 = vxor.u32 %v1566, 2147483648
  %v1571 = vmul.f32 %v1570, 1.442695
  %v1572 = vpow.pop %v1571
  %v1573 = vadd.f32 %v1572, 1.0
  %v1574 = vrcp.pop %v1573
  %v1575 = vmul.f32 %v1573, %v1574
  %v1576 = vsub.f32 1.0, %v1575
  %v1577 = vmul.f32 %v1574, %v1576
  %v1578 = vadd.f32 %v1574, %v1577
  %vm1579 = vweird.f32 %v1573
  %vm1580 = vweird.f32 %v1574
  %vm1581 = vmor %vm1579, %vm1580
  %v1582 = vsel %vm1581, %v1574, %v1578
  %v1583 = vand.u32 2147483647, %v1573
  %vm1584 = vcmp.eq.f32.partialorder %v1583, 8.507059e+37
  %v1585 = vand.u32 %v1573, 2147483648
  %v1586 = vor.u32 1.1754944e-38, %v1585
  %v1587 = vsel %vm1584, %v1586, %v1582
  %v1588 = vmul.f32 1.0, %v1587
  %v1589 = vxor.u32 %v1567, 2147483648
  %v1590 = vmul.f32 %v1589, 1.442695
  %v1591 = vpow.pop %v1590
  %v1592 = vadd.f32 %v1591, 1.0
  %v1593 = vrcp.pop %v1592
  %v1594 = vmul.f32 %v1592, %v1593
  %v1595 = vsub.f32 1.0, %v1594
  %v1596 = vmul.f32 %v1593, %v1595
  %v1597 = vadd.f32 %v1593, %v1596
  %vm1598 = vweird.f32 %v1592
  %vm1599 = vweird.f32 %v1593
  %vm1600 = vmor %vm1598, %vm1599
  %v1601 = vsel %vm1600, %v1593, %v1597
  %v1602 = vand.u32 2147483647, %v1592
  %vm1603 = vcmp.eq.f32.partialorder %v1602, 8.507059e+37
  %v1604 = vand.u32 %v1592, 2147483648
  %v1605 = vor.u32 1.1754944e-38, %v1604
  %v1606 = vsel %vm1603, %v1605, %v1601
  %v1607 = vmul.f32 1.0, %v1606
  %v1608 = vtanh.pop %v1568
  %v1609 = vxor.u32 %v1569, 2147483648
  %v1610 = vmul.f32 %v1609, 1.442695
  %v1611 = vpow.pop %v1610
  %v1612 = vadd.f32 %v1611, 1.0
  %v1613 = vrcp.pop %v1612
  %v1614 = vmul.f32 %v1612, %v1613
  %v1615 = vsub.f32 1.0, %v1614
  %v1616 = vmul.f32 %v1613, %v1615
  %v1617 = vadd.f32 %v1613, %v1616
  %vm1618 = vweird.f32 %v1612
  %vm1619 = vweird.f32 %v1613
  %vm1620 = vmor %vm1618, %vm1619
  %v1621 = vsel %vm1620, %v1613, %v1617
  %v1622 = vand.u32 2147483647, %v1612
  %vm1623 = vcmp.eq.f32.partialorder %v1622, 8.507059e+37
  %v1624 = vand.u32 %v1612, 2147483648
  %v1625 = vor.u32 1.1754944e-38, %v1624
  %v1626 = vsel %vm1623, %v1625, %v1621
  %v1627 = vmul.f32 1.0, %v1626
  %v1628 = vmul.f32 %v1607, %v1506
  %v1629 = vmul.f32 %v1588, %v1608
  %v1630 = vadd.f32 %v1628, %v1629
  %v1631 = vtanh.pop %v1630
  %v1632 = vmul.f32 %v1627, %v1631
  %v1633 = vld [vmem:[%s461] sm:$0xff]
  %v1634 = vld [vmem:[%s461 + $0x8] sm:$0xff]
  %v1635 = vld [vmem:[%s461 + $0x10] sm:$0xff]
  %v1636 = vld [vmem:[%s461 + $0x18] sm:$0xff]
  %v1637 = vpack.c.bf16 %v1632, %v1632
  %1638 = vmatpush.bf16.msra.mxu0 %v1354
  %1639 = vmatpush.bf16.msra.mxu0 %v1350
  %1640 = vmatpush.bf16.msra.mxu0 %v1346
  %1641 = vmatpush.bf16.msra.mxu0 %v1342
  %1642 = vmatpush.bf16.msra.mxu0 %v1338
  %1643 = vmatpush.bf16.msra.mxu0 %v1334
  %1644 = vmatpush.bf16.msra.mxu0 %v1330
  %1645 = vmatpush.bf16.msra.mxu0 %v1326
  %1646 = vmatmul.bf16.gmra.mxu0 %v1637
  %v1647 = vpop.f32.mrf.mxu0
  %v1648 = vadd.f32 0.0, %v1647
  %v1649 = vpop.f32.mrf.mxu0
  %1650 = vdwg.mxu0
  %1651 = vmatpush.bf16.msra.mxu0 %v1355
  %1652 = vmatpush.bf16.msra.mxu0 %v1351
  %1653 = vmatpush.bf16.msra.mxu0 %v1347
  %1654 = vmatpush.bf16.msra.mxu0 %v1343
  %1655 = vmatpush.bf16.msra.mxu0 %v1339
  %1656 = vmatpush.bf16.msra.mxu0 %v1335
  %1657 = vmatpush.bf16.msra.mxu0 %v1331
  %1658 = vmatpush.bf16.msra.mxu0 %v1327
  %1659 = vmatmul.bf16.gmra.mxu0 %v1637
  %v1660 = vpop.f32.mrf.mxu0
  %v1661 = vadd.f32 0.0, %v1660
  %v1662 = vpop.f32.mrf.mxu0
  %1663 = vdwg.mxu0
  %1664 = vmatpush.bf16.msra.mxu0 %v1356
  %1665 = vmatpush.bf16.msra.mxu0 %v1352
  %1666 = vmatpush.bf16.msra.mxu0 %v1348
  %1667 = vmatpush.bf16.msra.mxu0 %v1344
  %1668 = vmatpush.bf16.msra.mxu0 %v1340
  %1669 = vmatpush.bf16.msra.mxu0 %v1336
  %1670 = vmatpush.bf16.msra.mxu0 %v1332
  %1671 = vmatpush.bf16.msra.mxu0 %v1328
  %1672 = vmatmul.bf16.gmra.mxu0 %v1637
  %v1673 = vpop.f32.mrf.mxu0
  %v1674 = vadd.f32 0.0, %v1673
  %v1675 = vpop.f32.mrf.mxu0
  %1676 = vdwg.mxu0
  %1677 = vmatpush.bf16.msra.mxu0 %v1357
  %1678 = vmatpush.bf16.msra.mxu0 %v1353
  %1679 = vmatpush.bf16.msra.mxu0 %v1349
  %1680 = vmatpush.bf16.msra.mxu0 %v1345
  %1681 = vmatpush.bf16.msra.mxu0 %v1341
  %1682 = vmatpush.bf16.msra.mxu0 %v1337
  %1683 = vmatpush.bf16.msra.mxu0 %v1333
  %1684 = vmatpush.bf16.msra.mxu0 %v1329
  %1685 = vmatmul.bf16.gmra.mxu0 %v1637
  %v1686 = vpop.f32.mrf.mxu0
  %v1687 = vadd.f32 0.0, %v1686
  %v1688 = vpop.f32.mrf.mxu0
  %1689 = vdwg.mxu0
  %v1690 = vadd.f32 %v1633, %v1648
  %v1691 = vadd.f32 %v1634, %v1661
  %v1692 = vadd.f32 %v1635, %v1674
  %v1693 = vadd.f32 %v1636, %v1687
  %v1694 = vxor.u32 %v1690, 2147483648
  %v1695 = vmul.f32 %v1694, 1.442695
  %v1696 = vpow.pop %v1695
  %v1697 = vadd.f32 %v1696, 1.0
  %v1698 = vrcp.pop %v1697
  %v1699 = vmul.f32 %v1697, %v1698
  %v1700 = vsub.f32 1.0, %v1699
  %v1701 = vmul.f32 %v1698, %v1700
  %v1702 = vadd.f32 %v1698, %v1701
  %vm1703 = vweird.f32 %v1697
  %vm1704 = vweird.f32 %v1698
  %vm1705 = vmor %vm1703, %vm1704
  %v1706 = vsel %vm1705, %v1698, %v1702
  %v1707 = vand.u32 2147483647, %v1697
  %vm1708 = vcmp.eq.f32.partialorder %v1707, 8.507059e+37
  %v1709 = vand.u32 %v1697, 2147483648
  %v1710 = vor.u32 1.1754944e-38, %v1709
  %v1711 = vsel %vm1708, %v1710, %v1706
  %v1712 = vmul.f32 1.0, %v1711
  %v1713 = vxor.u32 %v1691, 2147483648
  %v1714 = vmul.f32 %v1713, 1.442695
  %v1715 = vpow.pop %v1714
  %v1716 = vadd.f32 %v1715, 1.0
  %v1717 = vrcp.pop %v1716
  %v1718 = vmul.f32 %v1716, %v1717
  %v1719 = vsub.f32 1.0, %v1718
  %v1720 = vmul.f32 %v1717, %v1719
  %v1721 = vadd.f32 %v1717, %v1720
  %vm1722 = vweird.f32 %v1716
  %vm1723 = vweird.f32 %v1717
  %vm1724 = vmor %vm1722, %vm1723
  %v1725 = vsel %vm1724, %v1717, %v1721
  %v1726 = vand.u32 2147483647, %v1716
  %vm1727 = vcmp.eq.f32.partialorder %v1726, 8.507059e+37
  %v1728 = vand.u32 %v1716, 2147483648
  %v1729 = vor.u32 1.1754944e-38, %v1728
  %v1730 = vsel %vm1727, %v1729, %v1725
  %v1731 = vmul.f32 1.0, %v1730
  %v1732 = vtanh.pop %v1692
  %v1733 = vxor.u32 %v1693, 2147483648
  %v1734 = vmul.f32 %v1733, 1.442695
  %v1735 = vpow.pop %v1734
  %v1736 = vadd.f32 %v1735, 1.0
  %v1737 = vrcp.pop %v1736
  %v1738 = vmul.f32 %v1736, %v1737
  %v1739 = vsub.f32 1.0, %v1738
  %v1740 = vmul.f32 %v1737, %v1739
  %v1741 = vadd.f32 %v1737, %v1740
  %vm1742 = vweird.f32 %v1736
  %vm1743 = vweird.f32 %v1737
  %vm1744 = vmor %vm1742, %vm1743
  %v1745 = vsel %vm1744, %v1737, %v1741
  %v1746 = vand.u32 2147483647, %v1736
  %vm1747 = vcmp.eq.f32.partialorder %v1746, 8.507059e+37
  %v1748 = vand.u32 %v1736, 2147483648
  %v1749 = vor.u32 1.1754944e-38, %v1748
  %v1750 = vsel %vm1747, %v1749, %v1745
  %v1751 = vmul.f32 1.0, %v1750
  %v1752 = vmul.f32 %v1731, %v1630
  %v1753 = vmul.f32 %v1712, %v1732
  %v1754 = vadd.f32 %v1752, %v1753
  %v1755 = vtanh.pop %v1754
  %v1756 = vmul.f32 %v1751, %v1755
  %v1757 = vld [vmem:[%s606] sm:$0xff]
  %v1758 = vld [vmem:[%s606 + $0x8] sm:$0xff]
  %v1759 = vld [vmem:[%s606 + $0x10] sm:$0xff]
  %v1760 = vld [vmem:[%s606 + $0x18] sm:$0xff]
  %v1761 = vpack.c.bf16 %v1756, %v1756
  %1762 = vmatpush.bf16.msra.mxu0 %v1354
  %1763 = vmatpush.bf16.msra.mxu0 %v1350
  %1764 = vmatpush.bf16.msra.mxu0 %v1346
  %1765 = vmatpush.bf16.msra.mxu0 %v1342
  %1766 = vmatpush.bf16.msra.mxu0 %v1338
  %1767 = vmatpush.bf16.msra.mxu0 %v1334
  %1768 = vmatpush.bf16.msra.mxu0 %v1330
  %1769 = vmatpush.bf16.msra.mxu0 %v1326
  %1770 = vmatmul.bf16.gmra.mxu0 %v1761
  %v1771 = vpop.f32.mrf.mxu0
  %v1772 = vadd.f32 0.0, %v1771
  %v1773 = vpop.f32.mrf.mxu0
  %1774 = vdwg.mxu0
  %1775 = vmatpush.bf16.msra.mxu0 %v1355
  %1776 = vmatpush.bf16.msra.mxu0 %v1351
  %1777 = vmatpush.bf16.msra.mxu0 %v1347
  %1778 = vmatpush.bf16.msra.mxu0 %v1343
  %1779 = vmatpush.bf16.msra.mxu0 %v1339
  %1780 = vmatpush.bf16.msra.mxu0 %v1335
  %1781 = vmatpush.bf16.msra.mxu0 %v1331
  %1782 = vmatpush.bf16.msra.mxu0 %v1327
  %1783 = vmatmul.bf16.gmra.mxu0 %v1761
  %v1784 = vpop.f32.mrf.mxu0
  %v1785 = vadd.f32 0.0, %v1784
  %v1786 = vpop.f32.mrf.mxu0
  %1787 = vdwg.mxu0
  %1788 = vmatpush.bf16.msra.mxu0 %v1356
  %1789 = vmatpush.bf16.msra.mxu0 %v1352
  %1790 = vmatpush.bf16.msra.mxu0 %v1348
  %1791 = vmatpush.bf16.msra.mxu0 %v1344
  %1792 = vmatpush.bf16.msra.mxu0 %v1340
  %1793 = vmatpush.bf16.msra.mxu0 %v1336
  %1794 = vmatpush.bf16.msra.mxu0 %v1332
  %1795 = vmatpush.bf16.msra.mxu0 %v1328
  %1796 = vmatmul.bf16.gmra.mxu0 %v1761
  %v1797 = vpop.f32.mrf.mxu0
  %v1798 = vadd.f32 0.0, %v1797
  %v1799 = vpop.f32.mrf.mxu0
  %1800 = vdwg.mxu0
  %1801 = vmatpush.bf16.msra.mxu0 %v1357
  %1802 = vmatpush.bf16.msra.mxu0 %v1353
  %1803 = vmatpush.bf16.msra.mxu0 %v1349
  %1804 = vmatpush.bf16.msra.mxu0 %v1345
  %1805 = vmatpush.bf16.msra.mxu0 %v1341
  %1806 = vmatpush.bf16.msra.mxu0 %v1337
  %1807 = vmatpush.bf16.msra.mxu0 %v1333
  %1808 = vmatpush.bf16.msra.mxu0 %v1329
  %1809 = vmatmul.bf16.gmra.mxu0 %v1761
  %v1810 = vpop.f32.mrf.mxu0
  %v1811 = vadd.f32 0.0, %v1810
  %v1812 = vpop.f32.mrf.mxu0
  %1813 = vdwg.mxu0
  %v1814 = vadd.f32 %v1757, %v1772
  %v1815 = vadd.f32 %v1758, %v1785
  %v1816 = vadd.f32 %v1759, %v1798
  %v1817 = vadd.f32 %v1760, %v1811
  %v1818 = vxor.u32 %v1814, 2147483648
  %v1819 = vmul.f32 %v1818, 1.442695
  %v1820 = vpow.pop %v1819
  %v1821 = vadd.f32 %v1820, 1.0
  %v1822 = vrcp.pop %v1821
  %v1823 = vmul.f32 %v1821, %v1822
  %v1824 = vsub.f32 1.0, %v1823
  %v1825 = vmul.f32 %v1822, %v1824
  %v1826 = vadd.f32 %v1822, %v1825
  %vm1827 = vweird.f32 %v1821
  %vm1828 = vweird.f32 %v1822
  %vm1829 = vmor %vm1827, %vm1828
  %v1830 = vsel %vm1829, %v1822, %v1826
  %v1831 = vand.u32 2147483647, %v1821
  %vm1832 = vcmp.eq.f32.partialorder %v1831, 8.507059e+37
  %v1833 = vand.u32 %v1821, 2147483648
  %v1834 = vor.u32 1.1754944e-38, %v1833
  %v1835 = vsel %vm1832, %v1834, %v1830
  %v1836 = vmul.f32 1.0, %v1835
  %v1837 = vxor.u32 %v1815, 2147483648
  %v1838 = vmul.f32 %v1837, 1.442695
  %v1839 = vpow.pop %v1838
  %v1840 = vadd.f32 %v1839, 1.0
  %v1841 = vrcp.pop %v1840
  %v1842 = vmul.f32 %v1840, %v1841
  %v1843 = vsub.f32 1.0, %v1842
  %v1844 = vmul.f32 %v1841, %v1843
  %v1845 = vadd.f32 %v1841, %v1844
  %vm1846 = vweird.f32 %v1840
  %vm1847 = vweird.f32 %v1841
  %vm1848 = vmor %vm1846, %vm1847
  %v1849 = vsel %vm1848, %v1841, %v1845
  %v1850 = vand.u32 2147483647, %v1840
  %vm1851 = vcmp.eq.f32.partialorder %v1850, 8.507059e+37
  %v1852 = vand.u32 %v1840, 2147483648
  %v1853 = vor.u32 1.1754944e-38, %v1852
  %v1854 = vsel %vm1851, %v1853, %v1849
  %v1855 = vmul.f32 1.0, %v1854
  %v1856 = vtanh.pop %v1816
  %v1857 = vxor.u32 %v1817, 2147483648
  %v1858 = vmul.f32 %v1857, 1.442695
  %v1859 = vpow.pop %v1858
  %v1860 = vadd.f32 %v1859, 1.0
  %v1861 = vrcp.pop %v1860
  %v1862 = vmul.f32 %v1860, %v1861
  %v1863 = vsub.f32 1.0, %v1862
  %v1864 = vmul.f32 %v1861, %v1863
  %v1865 = vadd.f32 %v1861, %v1864
  %vm1866 = vweird.f32 %v1860
  %vm1867 = vweird.f32 %v1861
  %vm1868 = vmor %vm1866, %vm1867
  %v1869 = vsel %vm1868, %v1861, %v1865
  %v1870 = vand.u32 2147483647, %v1860
  %vm1871 = vcmp.eq.f32.partialorder %v1870, 8.507059e+37
  %v1872 = vand.u32 %v1860, 2147483648
  %v1873 = vor.u32 1.1754944e-38, %v1872
  %v1874 = vsel %vm1871, %v1873, %v1869
  %v1875 = vmul.f32 1.0, %v1874
  %v1876 = vmul.f32 %v1855, %v1754
  %v1877 = vmul.f32 %v1836, %v1856
  %v1878 = vadd.f32 %v1876, %v1877
  %v1879 = vtanh.pop %v1878
  %v1880 = vmul.f32 %v1875, %v1879
  %v1881 = vld [vmem:[%s751] sm:$0xff]
  %v1882 = vld [vmem:[%s751 + $0x8] sm:$0xff]
  %v1883 = vld [vmem:[%s751 + $0x10] sm:$0xff]
  %v1884 = vld [vmem:[%s751 + $0x18] sm:$0xff]
  %v1885 = vpack.c.bf16 %v1880, %v1880
  %1886 = vmatpush.bf16.msra.mxu0 %v1354
  %1887 = vmatpush.bf16.msra.mxu0 %v1350
  %1888 = vmatpush.bf16.msra.mxu0 %v1346
  %1889 = vmatpush.bf16.msra.mxu0 %v1342
  %1890 = vmatpush.bf16.msra.mxu0 %v1338
  %1891 = vmatpush.bf16.msra.mxu0 %v1334
  %1892 = vmatpush.bf16.msra.mxu0 %v1330
  %1893 = vmatpush.bf16.msra.mxu0 %v1326
  %1894 = vmatmul.bf16.gmra.mxu0 %v1885
  %v1895 = vpop.f32.mrf.mxu0
  %v1896 = vadd.f32 0.0, %v1895
  %v1897 = vpop.f32.mrf.mxu0
  %1898 = vdwg.mxu0
  %1899 = vmatpush.bf16.msra.mxu0 %v1355
  %1900 = vmatpush.bf16.msra.mxu0 %v1351
  %1901 = vmatpush.bf16.msra.mxu0 %v1347
  %1902 = vmatpush.bf16.msra.mxu0 %v1343
  %1903 = vmatpush.bf16.msra.mxu0 %v1339
  %1904 = vmatpush.bf16.msra.mxu0 %v1335
  %1905 = vmatpush.bf16.msra.mxu0 %v1331
  %1906 = vmatpush.bf16.msra.mxu0 %v1327
  %1907 = vmatmul.bf16.gmra.mxu0 %v1885
  %v1908 = vpop.f32.mrf.mxu0
  %v1909 = vadd.f32 0.0, %v1908
  %v1910 = vpop.f32.mrf.mxu0
  %1911 = vdwg.mxu0
  %1912 = vmatpush.bf16.msra.mxu0 %v1356
  %1913 = vmatpush.bf16.msra.mxu0 %v1352
  %1914 = vmatpush.bf16.msra.mxu0 %v1348
  %1915 = vmatpush.bf16.msra.mxu0 %v1344
  %1916 = vmatpush.bf16.msra.mxu0 %v1340
  %1917 = vmatpush.bf16.msra.mxu0 %v1336
  %1918 = vmatpush.bf16.msra.mxu0 %v1332
  %1919 = vmatpush.bf16.msra.mxu0 %v1328
  %1920 = vmatmul.bf16.gmra.mxu0 %v1885
  %v1921 = vpop.f32.mrf.mxu0
  %v1922 = vadd.f32 0.0, %v1921
  %v1923 = vpop.f32.mrf.mxu0
  %1924 = vdwg.mxu0
  %1925 = vmatpush.bf16.msra.mxu0 %v1357
  %1926 = vmatpush.bf16.msra.mxu0 %v1353
  %1927 = vmatpush.bf16.msra.mxu0 %v1349
  %1928 = vmatpush.bf16.msra.mxu0 %v1345
  %1929 = vmatpush.bf16.msra.mxu0 %v1341
  %1930 = vmatpush.bf16.msra.mxu0 %v1337
  %1931 = vmatpush.bf16.msra.mxu0 %v1333
  %1932 = vmatpush.bf16.msra.mxu0 %v1329
  %1933 = vmatmul.bf16.gmra.mxu0 %v1885
  %v1934 = vpop.f32.mrf.mxu0
  %v1935 = vadd.f32 0.0, %v1934
  %v1936 = vpop.f32.mrf.mxu0
  %1937 = vdwg.mxu0
  %v1938 = vadd.f32 %v1881, %v1896
  %v1939 = vadd.f32 %v1882, %v1909
  %v1940 = vadd.f32 %v1883, %v1922
  %v1941 = vadd.f32 %v1884, %v1935
  %v1942 = vxor.u32 %v1938, 2147483648
  %v1943 = vmul.f32 %v1942, 1.442695
  %v1944 = vpow.pop %v1943
  %v1945 = vadd.f32 %v1944, 1.0
  %v1946 = vrcp.pop %v1945
  %v1947 = vmul.f32 %v1945, %v1946
  %v1948 = vsub.f32 1.0, %v1947
  %v1949 = vmul.f32 %v1946, %v1948
  %v1950 = vadd.f32 %v1946, %v1949
  %vm1951 = vweird.f32 %v1945
  %vm1952 = vweird.f32 %v1946
  %vm1953 = vmor %vm1951, %vm1952
  %v1954 = vsel %vm1953, %v1946, %v1950
  %v1955 = vand.u32 2147483647, %v1945
  %vm1956 = vcmp.eq.f32.partialorder %v1955, 8.507059e+37
  %v1957 = vand.u32 %v1945, 2147483648
  %v1958 = vor.u32 1.1754944e-38, %v1957
  %v1959 = vsel %vm1956, %v1958, %v1954
  %v1960 = vmul.f32 1.0, %v1959
  %v1961 = vxor.u32 %v1939, 2147483648
  %v1962 = vmul.f32 %v1961, 1.442695
  %v1963 = vpow.pop %v1962
  %v1964 = vadd.f32 %v1963, 1.0
  %v1965 = vrcp.pop %v1964
  %v1966 = vmul.f32 %v1964, %v1965
  %v1967 = vsub.f32 1.0, %v1966
  %v1968 = vmul.f32 %v1965, %v1967
  %v1969 = vadd.f32 %v1965, %v1968
  %vm1970 = vweird.f32 %v1964
  %vm1971 = vweird.f32 %v1965
  %vm1972 = vmor %vm1970, %vm1971
  %v1973 = vsel %vm1972, %v1965, %v1969
  %v1974 = vand.u32 2147483647, %v1964
  %vm1975 = vcmp.eq.f32.partialorder %v1974, 8.507059e+37
  %v1976 = vand.u32 %v1964, 2147483648
  %v1977 = vor.u32 1.1754944e-38, %v1976
  %v1978 = vsel %vm1975, %v1977, %v1973
  %v1979 = vmul.f32 1.0, %v1978
  %v1980 = vtanh.pop %v1940
  %v1981 = vxor.u32 %v1941, 2147483648
  %v1982 = vmul.f32 %v1981, 1.442695
  %v1983 = vpow.pop %v1982
  %v1984 = vadd.f32 %v1983, 1.0
  %v1985 = vrcp.pop %v1984
  %v1986 = vmul.f32 %v1984, %v1985
  %v1987 = vsub.f32 1.0, %v1986
  %v1988 = vmul.f32 %v1985, %v1987
  %v1989 = vadd.f32 %v1985, %v1988
  %vm1990 = vweird.f32 %v1984
  %vm1991 = vweird.f32 %v1985
  %vm1992 = vmor %vm1990, %vm1991
  %v1993 = vsel %vm1992, %v1985, %v1989
  %v1994 = vand.u32 2147483647, %v1984
  %vm1995 = vcmp.eq.f32.partialorder %v1994, 8.507059e+37
  %v1996 = vand.u32 %v1984, 2147483648
  %v1997 = vor.u32 1.1754944e-38, %v1996
  %v1998 = vsel %vm1995, %v1997, %v1993
  %v1999 = vmul.f32 1.0, %v1998
  %v2000 = vmul.f32 %v1979, %v1878
  %v2001 = vmul.f32 %v1960, %v1980
  %v2002 = vadd.f32 %v2000, %v2001
  %v2003 = vtanh.pop %v2002
  %v2004 = vmul.f32 %v1999, %v2003
  %v2005 = vld [vmem:[%s896] sm:$0xff]
  %v2006 = vld [vmem:[%s896 + $0x8] sm:$0xff]
  %v2007 = vld [vmem:[%s896 + $0x10] sm:$0xff]
  %v2008 = vld [vmem:[%s896 + $0x18] sm:$0xff]
  %v2009 = vpack.c.bf16 %v2004, %v2004
  %2010 = vmatpush.bf16.msra.mxu0 %v1354
  %2011 = vmatpush.bf16.msra.mxu0 %v1350
  %2012 = vmatpush.bf16.msra.mxu0 %v1346
  %2013 = vmatpush.bf16.msra.mxu0 %v1342
  %2014 = vmatpush.bf16.msra.mxu0 %v1338
  %2015 = vmatpush.bf16.msra.mxu0 %v1334
  %2016 = vmatpush.bf16.msra.mxu0 %v1330
  %2017 = vmatpush.bf16.msra.mxu0 %v1326
  %2018 = vmatmul.bf16.gmra.mxu0 %v2009
  %v2019 = vpop.f32.mrf.mxu0
  %v2020 = vadd.f32 0.0, %v2019
  %v2021 = vpop.f32.mrf.mxu0
  %2022 = vdwg.mxu0
  %2023 = vmatpush.bf16.msra.mxu0 %v1355
  %2024 = vmatpush.bf16.msra.mxu0 %v1351
  %2025 = vmatpush.bf16.msra.mxu0 %v1347
  %2026 = vmatpush.bf16.msra.mxu0 %v1343
  %2027 = vmatpush.bf16.msra.mxu0 %v1339
  %2028 = vmatpush.bf16.msra.mxu0 %v1335
  %2029 = vmatpush.bf16.msra.mxu0 %v1331
  %2030 = vmatpush.bf16.msra.mxu0 %v1327
  %2031 = vmatmul.bf16.gmra.mxu0 %v2009
  %v2032 = vpop.f32.mrf.mxu0
  %v2033 = vadd.f32 0.0, %v2032
  %v2034 = vpop.f32.mrf.mxu0
  %2035 = vdwg.mxu0
  %2036 = vmatpush.bf16.msra.mxu0 %v1356
  %2037 = vmatpush.bf16.msra.mxu0 %v1352
  %2038 = vmatpush.bf16.msra.mxu0 %v1348
  %2039 = vmatpush.bf16.msra.mxu0 %v1344
  %2040 = vmatpush.bf16.msra.mxu0 %v1340
  %2041 = vmatpush.bf16.msra.mxu0 %v1336
  %2042 = vmatpush.bf16.msra.mxu0 %v1332
  %2043 = vmatpush.bf16.msra.mxu0 %v1328
  %2044 = vmatmul.bf16.gmra.mxu0 %v2009
  %v2045 = vpop.f32.mrf.mxu0
  %v2046 = vadd.f32 0.0, %v2045
  %v2047 = vpop.f32.mrf.mxu0
  %2048 = vdwg.mxu0
  %2049 = vmatpush.bf16.msra.mxu0 %v1357
  %2050 = vmatpush.bf16.msra.mxu0 %v1353
  %2051 = vmatpush.bf16.msra.mxu0 %v1349
  %2052 = vmatpush.bf16.msra.mxu0 %v1345
  %2053 = vmatpush.bf16.msra.mxu0 %v1341
  %2054 = vmatpush.bf16.msra.mxu0 %v1337
  %2055 = vmatpush.bf16.msra.mxu0 %v1333
  %2056 = vmatpush.bf16.msra.mxu0 %v1329
  %2057 = vmatmul.bf16.gmra.mxu0 %v2009
  %v2058 = vpop.f32.mrf.mxu0
  %v2059 = vadd.f32 0.0, %v2058
  %v2060 = vpop.f32.mrf.mxu0
  %2061 = vdwg.mxu0
  %v2062 = vadd.f32 %v2005, %v2020
  %v2063 = vadd.f32 %v2006, %v2033
  %v2064 = vadd.f32 %v2007, %v2046
  %v2065 = vadd.f32 %v2008, %v2059
  %v2066 = vxor.u32 %v2062, 2147483648
  %v2067 = vmul.f32 %v2066, 1.442695
  %v2068 = vpow.pop %v2067
  %v2069 = vadd.f32 %v2068, 1.0
  %v2070 = vrcp.pop %v2069
  %v2071 = vmul.f32 %v2069, %v2070
  %v2072 = vsub.f32 1.0, %v2071
  %v2073 = vmul.f32 %v2070, %v2072
  %v2074 = vadd.f32 %v2070, %v2073
  %vm2075 = vweird.f32 %v2069
  %vm2076 = vweird.f32 %v2070
  %vm2077 = vmor %vm2075, %vm2076
  %v2078 = vsel %vm2077, %v2070, %v2074
  %v2079 = vand.u32 2147483647, %v2069
  %vm2080 = vcmp.eq.f32.partialorder %v2079, 8.507059e+37
  %v2081 = vand.u32 %v2069, 2147483648
  %v2082 = vor.u32 1.1754944e-38, %v2081
  %v2083 = vsel %vm2080, %v2082, %v2078
  %v2084 = vmul.f32 1.0, %v2083
  %v2085 = vxor.u32 %v2063, 2147483648
  %v2086 = vmul.f32 %v2085, 1.442695
  %v2087 = vpow.pop %v2086
  %v2088 = vadd.f32 %v2087, 1.0
  %v2089 = vrcp.pop %v2088
  %v2090 = vmul.f32 %v2088, %v2089
  %v2091 = vsub.f32 1.0, %v2090
  %v2092 = vmul.f32 %v2089, %v2091
  %v2093 = vadd.f32 %v2089, %v2092
  %vm2094 = vweird.f32 %v2088
  %vm2095 = vweird.f32 %v2089
  %vm2096 = vmor %vm2094, %vm2095
  %v2097 = vsel %vm2096, %v2089, %v2093
  %v2098 = vand.u32 2147483647, %v2088
  %vm2099 = vcmp.eq.f32.partialorder %v2098, 8.507059e+37
  %v2100 = vand.u32 %v2088, 2147483648
  %v2101 = vor.u32 1.1754944e-38, %v2100
  %v2102 = vsel %vm2099, %v2101, %v2097
  %v2103 = vmul.f32 1.0, %v2102
  %v2104 = vtanh.pop %v2064
  %v2105 = vxor.u32 %v2065, 2147483648
  %v2106 = vmul.f32 %v2105, 1.442695
  %v2107 = vpow.pop %v2106
  %v2108 = vadd.f32 %v2107, 1.0
  %v2109 = vrcp.pop %v2108
  %v2110 = vmul.f32 %v2108, %v2109
  %v2111 = vsub.f32 1.0, %v2110
  %v2112 = vmul.f32 %v2109, %v2111
  %v2113 = vadd.f32 %v2109, %v2112
  %vm2114 = vweird.f32 %v2108
  %vm2115 = vweird.f32 %v2109
  %vm2116 = vmor %vm2114, %vm2115
  %v2117 = vsel %vm2116, %v2109, %v2113
  %v2118 = vand.u32 2147483647, %v2108
  %vm2119 = vcmp.eq.f32.partialorder %v2118, 8.507059e+37
  %v2120 = vand.u32 %v2108, 2147483648
  %v2121 = vor.u32 1.1754944e-38, %v2120
  %v2122 = vsel %vm2119, %v2121, %v2117
  %v2123 = vmul.f32 1.0, %v2122
  %v2124 = vmul.f32 %v2103, %v2002
  %v2125 = vmul.f32 %v2084, %v2104
  %v2126 = vadd.f32 %v2124, %v2125
  %v2127 = vtanh.pop %v2126
  %v2128 = vmul.f32 %v2123, %v2127
  %v2129 = vld [vmem:[%s1041] sm:$0xff]
  %v2130 = vld [vmem:[%s1041 + $0x8] sm:$0xff]
  %v2131 = vld [vmem:[%s1041 + $0x10] sm:$0xff]
  %v2132 = vld [vmem:[%s1041 + $0x18] sm:$0xff]
  %v2133 = vpack.c.bf16 %v2128, %v2128
  %2134 = vmatpush.bf16.msra.mxu0 %v1354
  %2135 = vmatpush.bf16.msra.mxu0 %v1350
  %2136 = vmatpush.bf16.msra.mxu0 %v1346
  %2137 = vmatpush.bf16.msra.mxu0 %v1342
  %2138 = vmatpush.bf16.msra.mxu0 %v1338
  %2139 = vmatpush.bf16.msra.mxu0 %v1334
  %2140 = vmatpush.bf16.msra.mxu0 %v1330
  %2141 = vmatpush.bf16.msra.mxu0 %v1326
  %2142 = vmatmul.bf16.gmra.mxu0 %v2133
  %v2143 = vpop.f32.mrf.mxu0
  %v2144 = vadd.f32 0.0, %v2143
  %v2145 = vpop.f32.mrf.mxu0
  %2146 = vdwg.mxu0
  %2147 = vmatpush.bf16.msra.mxu0 %v1355
  %2148 = vmatpush.bf16.msra.mxu0 %v1351
  %2149 = vmatpush.bf16.msra.mxu0 %v1347
  %2150 = vmatpush.bf16.msra.mxu0 %v1343
  %2151 = vmatpush.bf16.msra.mxu0 %v1339
  %2152 = vmatpush.bf16.msra.mxu0 %v1335
  %2153 = vmatpush.bf16.msra.mxu0 %v1331
  %2154 = vmatpush.bf16.msra.mxu0 %v1327
  %2155 = vmatmul.bf16.gmra.mxu0 %v2133
  %v2156 = vpop.f32.mrf.mxu0
  %v2157 = vadd.f32 0.0, %v2156
  %v2158 = vpop.f32.mrf.mxu0
  %2159 = vdwg.mxu0
  %2160 = vmatpush.bf16.msra.mxu0 %v1356
  %2161 = vmatpush.bf16.msra.mxu0 %v1352
  %2162 = vmatpush.bf16.msra.mxu0 %v1348
  %2163 = vmatpush.bf16.msra.mxu0 %v1344
  %2164 = vmatpush.bf16.msra.mxu0 %v1340
  %2165 = vmatpush.bf16.msra.mxu0 %v1336
  %2166 = vmatpush.bf16.msra.mxu0 %v1332
  %2167 = vmatpush.bf16.msra.mxu0 %v1328
  %2168 = vmatmul.bf16.gmra.mxu0 %v2133
  %v2169 = vpop.f32.mrf.mxu0
  %v2170 = vadd.f32 0.0, %v2169
  %v2171 = vpop.f32.mrf.mxu0
  %2172 = vdwg.mxu0
  %2173 = vmatpush.bf16.msra.mxu0 %v1357
  %2174 = vmatpush.bf16.msra.mxu0 %v1353
  %2175 = vmatpush.bf16.msra.mxu0 %v1349
  %2176 = vmatpush.bf16.msra.mxu0 %v1345
  %2177 = vmatpush.bf16.msra.mxu0 %v1341
  %2178 = vmatpush.bf16.msra.mxu0 %v1337
  %2179 = vmatpush.bf16.msra.mxu0 %v1333
  %2180 = vmatpush.bf16.msra.mxu0 %v1329
  %2181 = vmatmul.bf16.gmra.mxu0 %v2133
  %v2182 = vpop.f32.mrf.mxu0
  %v2183 = vadd.f32 0.0, %v2182
  %v2184 = vpop.f32.mrf.mxu0
  %2185 = vdwg.mxu0
  %v2186 = vadd.f32 %v2129, %v2144
  %v2187 = vadd.f32 %v2130, %v2157
  %v2188 = vadd.f32 %v2131, %v2170
  %v2189 = vadd.f32 %v2132, %v2183
  %v2190 = vxor.u32 %v2186, 2147483648
  %v2191 = vmul.f32 %v2190, 1.442695
  %v2192 = vpow.pop %v2191
  %v2193 = vadd.f32 %v2192, 1.0
  %v2194 = vrcp.pop %v2193
  %v2195 = vmul.f32 %v2193, %v2194
  %v2196 = vsub.f32 1.0, %v2195
  %v2197 = vmul.f32 %v2194, %v2196
  %v2198 = vadd.f32 %v2194, %v2197
  %vm2199 = vweird.f32 %v2193
  %vm2200 = vweird.f32 %v2194
  %vm2201 = vmor %vm2199, %vm2200
  %v2202 = vsel %vm2201, %v2194, %v2198
  %v2203 = vand.u32 2147483647, %v2193
  %vm2204 = vcmp.eq.f32.partialorder %v2203, 8.507059e+37
  %v2205 = vand.u32 %v2193, 2147483648
  %v2206 = vor.u32 1.1754944e-38, %v2205
  %v2207 = vsel %vm2204, %v2206, %v2202
  %v2208 = vmul.f32 1.0, %v2207
  %v2209 = vxor.u32 %v2187, 2147483648
  %v2210 = vmul.f32 %v2209, 1.442695
  %v2211 = vpow.pop %v2210
  %v2212 = vadd.f32 %v2211, 1.0
  %v2213 = vrcp.pop %v2212
  %v2214 = vmul.f32 %v2212, %v2213
  %v2215 = vsub.f32 1.0, %v2214
  %v2216 = vmul.f32 %v2213, %v2215
  %v2217 = vadd.f32 %v2213, %v2216
  %vm2218 = vweird.f32 %v2212
  %vm2219 = vweird.f32 %v2213
  %vm2220 = vmor %vm2218, %vm2219
  %v2221 = vsel %vm2220, %v2213, %v2217
  %v2222 = vand.u32 2147483647, %v2212
  %vm2223 = vcmp.eq.f32.partialorder %v2222, 8.507059e+37
  %v2224 = vand.u32 %v2212, 2147483648
  %v2225 = vor.u32 1.1754944e-38, %v2224
  %v2226 = vsel %vm2223, %v2225, %v2221
  %v2227 = vmul.f32 1.0, %v2226
  %v2228 = vtanh.pop %v2188
  %v2229 = vxor.u32 %v2189, 2147483648
  %v2230 = vmul.f32 %v2229, 1.442695
  %v2231 = vpow.pop %v2230
  %v2232 = vadd.f32 %v2231, 1.0
  %v2233 = vrcp.pop %v2232
  %v2234 = vmul.f32 %v2232, %v2233
  %v2235 = vsub.f32 1.0, %v2234
  %v2236 = vmul.f32 %v2233, %v2235
  %v2237 = vadd.f32 %v2233, %v2236
  %vm2238 = vweird.f32 %v2232
  %vm2239 = vweird.f32 %v2233
  %vm2240 = vmor %vm2238, %vm2239
  %v2241 = vsel %vm2240, %v2233, %v2237
  %v2242 = vand.u32 2147483647, %v2232
  %vm2243 = vcmp.eq.f32.partialorder %v2242, 8.507059e+37
  %v2244 = vand.u32 %v2232, 2147483648
  %v2245 = vor.u32 1.1754944e-38, %v2244
  %v2246 = vsel %vm2243, %v2245, %v2241
  %v2247 = vmul.f32 1.0, %v2246
  %v2248 = vmul.f32 %v2227, %v2126
  %v2249 = vmul.f32 %v2208, %v2228
  %v2250 = vadd.f32 %v2248, %v2249
  %v2251 = vtanh.pop %v2250
  %v2252 = vmul.f32 %v2247, %v2251
  %v2253 = vld [vmem:[%s1186] sm:$0xff]
  %v2254 = vld [vmem:[%s1186 + $0x8] sm:$0xff]
  %v2255 = vld [vmem:[%s1186 + $0x10] sm:$0xff]
  %v2256 = vld [vmem:[%s1186 + $0x18] sm:$0xff]
  %v2257 = vpack.c.bf16 %v2252, %v2252
  %2258 = vmatpush.bf16.msra.mxu0 %v1354
  %2259 = vmatpush.bf16.msra.mxu0 %v1350
  %2260 = vmatpush.bf16.msra.mxu0 %v1346
  %2261 = vmatpush.bf16.msra.mxu0 %v1342
  %2262 = vmatpush.bf16.msra.mxu0 %v1338
  %2263 = vmatpush.bf16.msra.mxu0 %v1334
  %2264 = vmatpush.bf16.msra.mxu0 %v1330
  %2265 = vmatpush.bf16.msra.mxu0 %v1326
  %2266 = vmatmul.bf16.gmra.mxu0 %v2257
  %v2267 = vpop.f32.mrf.mxu0
  %v2268 = vadd.f32 0.0, %v2267
  %v2269 = vpop.f32.mrf.mxu0
  %2270 = vdwg.mxu0
  %2271 = vmatpush.bf16.msra.mxu0 %v1355
  %2272 = vmatpush.bf16.msra.mxu0 %v1351
  %2273 = vmatpush.bf16.msra.mxu0 %v1347
  %2274 = vmatpush.bf16.msra.mxu0 %v1343
  %2275 = vmatpush.bf16.msra.mxu0 %v1339
  %2276 = vmatpush.bf16.msra.mxu0 %v1335
  %2277 = vmatpush.bf16.msra.mxu0 %v1331
  %2278 = vmatpush.bf16.msra.mxu0 %v1327
  %2279 = vmatmul.bf16.gmra.mxu0 %v2257
  %v2280 = vpop.f32.mrf.mxu0
  %v2281 = vadd.f32 0.0, %v2280
  %v2282 = vpop.f32.mrf.mxu0
  %2283 = vdwg.mxu0
  %2284 = vmatpush.bf16.msra.mxu0 %v1356
  %2285 = vmatpush.bf16.msra.mxu0 %v1352
  %2286 = vmatpush.bf16.msra.mxu0 %v1348
  %2287 = vmatpush.bf16.msra.mxu0 %v1344
  %2288 = vmatpush.bf16.msra.mxu0 %v1340
  %2289 = vmatpush.bf16.msra.mxu0 %v1336
  %2290 = vmatpush.bf16.msra.mxu0 %v1332
  %2291 = vmatpush.bf16.msra.mxu0 %v1328
  %2292 = vmatmul.bf16.gmra.mxu0 %v2257
  %v2293 = vpop.f32.mrf.mxu0
  %v2294 = vadd.f32 0.0, %v2293
  %v2295 = vpop.f32.mrf.mxu0
  %2296 = vdwg.mxu0
  %2297 = vmatpush.bf16.msra.mxu0 %v1357
  %2298 = vmatpush.bf16.msra.mxu0 %v1353
  %2299 = vmatpush.bf16.msra.mxu0 %v1349
  %2300 = vmatpush.bf16.msra.mxu0 %v1345
  %2301 = vmatpush.bf16.msra.mxu0 %v1341
  %2302 = vmatpush.bf16.msra.mxu0 %v1337
  %2303 = vmatpush.bf16.msra.mxu0 %v1333
  %2304 = vmatpush.bf16.msra.mxu0 %v1329
  %2305 = vmatmul.bf16.gmra.mxu0 %v2257
  %v2306 = vpop.f32.mrf.mxu0
  %v2307 = vadd.f32 0.0, %v2306
  %v2308 = vpop.f32.mrf.mxu0
  %2309 = vdwg.mxu0
  %v2310 = vadd.f32 %v2253, %v2268
  %v2311 = vadd.f32 %v2254, %v2281
  %v2312 = vadd.f32 %v2255, %v2294
  %v2313 = vadd.f32 %v2256, %v2307
  %v2314 = vxor.u32 %v2310, 2147483648
  %v2315 = vmul.f32 %v2314, 1.442695
  %v2316 = vpow.pop %v2315
  %v2317 = vadd.f32 %v2316, 1.0
  %v2318 = vrcp.pop %v2317
  %v2319 = vmul.f32 %v2317, %v2318
  %v2320 = vsub.f32 1.0, %v2319
  %v2321 = vmul.f32 %v2318, %v2320
  %v2322 = vadd.f32 %v2318, %v2321
  %vm2323 = vweird.f32 %v2317
  %vm2324 = vweird.f32 %v2318
  %vm2325 = vmor %vm2323, %vm2324
  %v2326 = vsel %vm2325, %v2318, %v2322
  %v2327 = vand.u32 2147483647, %v2317
  %vm2328 = vcmp.eq.f32.partialorder %v2327, 8.507059e+37
  %v2329 = vand.u32 %v2317, 2147483648
  %v2330 = vor.u32 1.1754944e-38, %v2329
  %v2331 = vsel %vm2328, %v2330, %v2326
  %v2332 = vmul.f32 1.0, %v2331
  %v2333 = vxor.u32 %v2311, 2147483648
  %v2334 = vmul.f32 %v2333, 1.442695
  %v2335 = vpow.pop %v2334
  %v2336 = vadd.f32 %v2335, 1.0
  %v2337 = vrcp.pop %v2336
  %v2338 = vmul.f32 %v2336, %v2337
  %v2339 = vsub.f32 1.0, %v2338
  %v2340 = vmul.f32 %v2337, %v2339
  %v2341 = vadd.f32 %v2337, %v2340
  %vm2342 = vweird.f32 %v2336
  %vm2343 = vweird.f32 %v2337
  %vm2344 = vmor %vm2342, %vm2343
  %v2345 = vsel %vm2344, %v2337, %v2341
  %v2346 = vand.u32 2147483647, %v2336
  %vm2347 = vcmp.eq.f32.partialorder %v2346, 8.507059e+37
  %v2348 = vand.u32 %v2336, 2147483648
  %v2349 = vor.u32 1.1754944e-38, %v2348
  %v2350 = vsel %vm2347, %v2349, %v2345
  %v2351 = vmul.f32 1.0, %v2350
  %v2352 = vtanh.pop %v2312
  %v2353 = vxor.u32 %v2313, 2147483648
  %v2354 = vmul.f32 %v2353, 1.442695
  %v2355 = vpow.pop %v2354
  %v2356 = vadd.f32 %v2355, 1.0
  %v2357 = vrcp.pop %v2356
  %v2358 = vmul.f32 %v2356, %v2357
  %v2359 = vsub.f32 1.0, %v2358
  %v2360 = vmul.f32 %v2357, %v2359
  %v2361 = vadd.f32 %v2357, %v2360
  %vm2362 = vweird.f32 %v2356
  %vm2363 = vweird.f32 %v2357
  %vm2364 = vmor %vm2362, %vm2363
  %v2365 = vsel %vm2364, %v2357, %v2361
  %v2366 = vand.u32 2147483647, %v2356
  %vm2367 = vcmp.eq.f32.partialorder %v2366, 8.507059e+37
  %v2368 = vand.u32 %v2356, 2147483648
  %v2369 = vor.u32 1.1754944e-38, %v2368
  %v2370 = vsel %vm2367, %v2369, %v2365
  %v2371 = vmul.f32 1.0, %v2370
  %v2372 = vmul.f32 %v2351, %v2250
  %v2373 = vmul.f32 %v2332, %v2352
  %v2374 = vadd.f32 %v2372, %v2373
  %v2375 = vtanh.pop %v2374
  %v2376 = vmul.f32 %v2371, %v2375
  %2377 = vst [vmem:[#allocation2] sm:$0xff] %v2376
  %2378 = vst [vmem:[#allocation3] sm:$0xff] %v2374
  // Predicated region
  $region22: #{custom_fine_tune_forward.3} parent=0 // pred_check
    %p2379 = pneg %p19
  $region23: #{custom_fine_tune_forward.3} parent=0 // pred_check_branch
    %2381 = sbr.rel (%p2379) target = $region25
  $region24: #{custom_fine_tune_forward.3} parent=0 // pred_region
    %v2382 = vld [vmem:[%s2] sm:$0x1]
    %v2384 = vperm.slane %v2382, 0
    %v2386 = vmul.f32 %v2376, %v2384
    %2387 = vadd.xlane.f32.xlu0 %v2386
    %v2388 = vpop.xlane.xlu0 %2387
    %v2389 = vld [vmem:[#allocation5] sm:$0x1]
    %v2391 = vperm.slane %v2389, 0
    %v2393 = vadd.f32 %v2388, %v2391
    %vm2394 = vcmask 7168
    %2395 = vst.msk [vmem:[%s4] sm:$0xff] %vm2394, %v2393
  $region25: #{custom_fine_tune_forward.3} parent=0 // pred_fallthru
    _
  // Predicated region
  $region26: #{custom_fine_tune_forward.3} parent=0 // pred_check
    _
  $region27: #{custom_fine_tune_forward.3} parent=0 // pred_check_branch
    %2397 = sbr.rel (0) target = $region29
  $region28: #{custom_fine_tune_forward.3} parent=0 // pred_region
    _
  $region29: #{custom_fine_tune_forward.3} parent=0 // pred_fallthru
    _
  // Predicated region
  $region30: #{custom_fine_tune_forward.3} parent=0 // pred_check
    _
  $region31: #{custom_fine_tune_forward.3} parent=0 // pred_check_branch
    %2399 = sbr.rel (0) target = $region33
  $region32: #{custom_fine_tune_forward.3} parent=0 // pred_region
    _
  $region33: #{custom_fine_tune_forward.3} parent=0 // pred_fallthru
    _

</llo_original>
